<compile_context>
chip_gen: v7x
topology: tpu7x:2x2x1
jax: 0.10.0
libtpu: 0.0.40
codegen_flags: <defaults>
</compile_context>

<pallas_src>
import math

import jax
import jax.numpy as jnp
from jax.experimental import pallas as pl
from jax.experimental.pallas import tpu as pltpu  # noqa: F401  (kept for completeness)

# ----------------------- model hyper-parameters (small) -----------------------
BATCH         = 2
CHANNELS      = 3
IMAGE_SIZE    = 16
PATCH         = 8
FRAMES        = 4
FRAME_PATCH   = 2
DIM           = 32          # mapping_vit(backbone) -> (depth, heads, dim, mlp_dim)
DEPTH         = 2
HEADS         = 2
DIM_HEAD      = 16
MLP_DIM       = 64
DOWN_DIM      = 64          # Adapter default down_dim
NUM_CLASSES   = 10
ADAPTER_SCALE = 1.0         # adapter_scalar='1.0'
LN_EPS        = 1e-5

INNER     = HEADS * DIM_HEAD
N_PATCHES = (IMAGE_SIZE // PATCH) * (IMAGE_SIZE // PATCH) * (FRAMES // FRAME_PATCH)
N_TOKENS  = N_PATCHES + 1
PATCH_DIM = CHANNELS * PATCH * PATCH * FRAME_PATCH
ROWS      = BATCH * N_TOKENS
FUSE_DIM  = MLP_DIM + DOWN_DIM          # 128 — lane-dense fused hidden width


# ------------------------------- kernel helpers -------------------------------
def _ln_normalize(x, eps=LN_EPS):
    """(x - mean) * rsqrt(var + eps).  Affine params are folded into weights."""
    mu = jnp.mean(x, axis=-1, keepdims=True)
    var = jnp.mean((x - mu) ** 2, axis=-1, keepdims=True)
    return (x - mu) * jax.lax.rsqrt(var + eps)


def _gelu_exact(x):
    # torch nn.GELU default (erf based)
    return 0.5 * x * (1.0 + jax.lax.erf(x * (1.0 / math.sqrt(2.0))))


# ----------------------------- fused Pallas kernel -----------------------------
def adaptformer_kernel(
    patches,                      # (ROWS, PATCH_DIM)   cls rows are zero
    conv_w,                       # (PATCH_DIM, DIM)
    emb,                          # (ROWS, DIM)         cls+pos[0] / pos[1:]+conv_b
    w_qkv, b_qkv,                 # (DEPTH, DIM, 3*INNER), (DEPTH, 1, 3*INNER)  LN+scale folded
    w_out, b_out,                 # (DEPTH, INNER, DIM), (DEPTH, 1, DIM)
    w_df, b_df,                   # (DEPTH, DIM, FUSE_DIM)  [FF1 | adapter-down], LN folded
    w_uf, b_uf,                   # (DEPTH, FUSE_DIM, DIM)  [FF2 ; scale*adapter-up]
    head_w, head_b,               # (DIM, NUM_CLASSES), (1, NUM_CLASSES)  final-LN folded
    o_ref,                        # (BATCH, NUM_CLASSES)
):
    # ---- patch embedding + cls token + positional embedding (one dot + one add) ----
    x = jnp.dot(patches[...], conv_w[...],
                preferred_element_type=jnp.float32) + emb[...]          # (ROWS, DIM)

    # ---- transformer layers (static unroll; weights indexed by layer) ----
    for l in range(DEPTH):
        # -- Attention (pre-LN; LN gains and 1/sqrt(dh) already folded into w_qkv) --
        xhat = _ln_normalize(x)
        qkv = jnp.dot(xhat, w_qkv[l],
                      preferred_element_type=jnp.float32) + b_qkv[l]    # (ROWS, 3*INNER)
        qkv3 = qkv.reshape(BATCH, N_TOKENS, 3 * INNER)

        head_outs = []
        for h in range(HEADS):
            c = h * DIM_HEAD
            q = qkv3[:, :, c:c + DIM_HEAD]                              # (B, N, Dh)
            k = qkv3[:, :, INNER + c:INNER + c + DIM_HEAD]
            v = qkv3[:, :, 2 * INNER + c:2 * INNER + c + DIM_HEAD]
            s = jnp.einsum('bnd,bmd->bnm', q, k,
                           preferred_element_type=jnp.float32)          # (B, N, N)
            s = s - jnp.max(s, axis=-1, keepdims=True)
            p = jnp.exp(s)
            p = p * pl.reciprocal(jnp.sum(p, axis=-1, keepdims=True), approx=True)
            head_outs.append(jnp.einsum('bnm,bmd->bnd', p, v,
                                        preferred_element_type=jnp.float32))
        attn_out = jnp.concatenate(head_outs, axis=-1).reshape(ROWS, INNER)
        x = jnp.dot(attn_out, w_out[l],
                    preferred_element_type=jnp.float32) + b_out[l] + x  # x = attn(x) + x

        # -- Adapter + FeedForward share one LN pass (same input x, LN gains folded) --
        xhat = _ln_normalize(x)
        # fused (18,32)x(32,128): columns [0:MLP_DIM) = FF hidden, [MLP_DIM:) = adapter down
        hcat = jnp.dot(xhat, w_df[l],
                       preferred_element_type=jnp.float32) + b_df[l]    # (ROWS, 128)
        col = jax.lax.broadcasted_iota(jnp.int32, hcat.shape, 1)
        act = jnp.where(col < MLP_DIM, _gelu_exact(hcat), jnp.maximum(hcat, 0.0))
        # fused (18,128)x(128,32): x = ff(x) + x + scale * adapter(x)
        x = jnp.dot(act, w_uf[l],
                    preferred_element_type=jnp.float32) + b_uf[l] + x

    # ---- final LayerNorm (affine folded into head) on cls tokens + mlp_head ----
    cls = x.reshape(BATCH, N_TOKENS, DIM)[:, 0, :]                      # (B, DIM)
    cls_n = _ln_normalize(cls)
    o_ref[...] = jnp.dot(cls_n, head_w[...],
                         preferred_element_type=jnp.float32) + head_b[...]


# ------------------------------- parameter init -------------------------------
def init_params(key):
    """Raw parameters mirroring the PyTorch module layout (pre-transposed)."""
    ks = iter(jax.random.split(key, 64))

    def unif(shape, bound):
        return jax.random.uniform(next(ks), shape, jnp.float32, -bound, bound)

    p = {}
    # Conv3d(channels, dim, kernel=stride=(fp, p, p)): weight (dim, C, fp, p, p)
    conv_w5 = unif((DIM, CHANNELS, FRAME_PATCH, PATCH, PATCH),
                   1.0 / math.sqrt(PATCH_DIM))
    p["conv_w"] = conv_w5.reshape(DIM, PATCH_DIM).T          # (PATCH_DIM, DIM)
    p["conv_b"] = unif((1, DIM), 1.0 / math.sqrt(PATCH_DIM))

    p["cls_token"] = jax.random.normal(next(ks), (1, DIM), jnp.float32)
    p["pos_embedding"] = jax.random.normal(next(ks), (N_TOKENS, DIM), jnp.float32)

    ones = jnp.ones((1, DIM), jnp.float32)
    zeros = jnp.zeros((1, DIM), jnp.float32)

    def stack(fn):
        return jnp.stack([fn() for _ in range(DEPTH)], axis=0)

    # Attention
    p["a_ln_g"] = jnp.stack([ones] * DEPTH)
    p["a_ln_b"] = jnp.stack([zeros] * DEPTH)
    p["w_qkv"]  = stack(lambda: unif((DIM, 3 * INNER), 1.0 / math.sqrt(DIM)))   # no bias
    p["w_out"]  = stack(lambda: unif((INNER, DIM), 1.0 / math.sqrt(INNER)))
    p["b_out"]  = stack(lambda: unif((1, DIM), 1.0 / math.sqrt(INNER)))
    # Adapter ('in' layernorm, down 64, relu, up, scale=1.0)
    p["d_ln_g"] = jnp.stack([ones] * DEPTH)
    p["d_ln_b"] = jnp.stack([zeros] * DEPTH)
    p["w_down"] = stack(lambda: unif((DIM, DOWN_DIM), 1.0 / math.sqrt(DIM)))    # kaiming(a=sqrt(5))
    p["b_down"] = jnp.zeros((DEPTH, 1, DOWN_DIM), jnp.float32)
    # NOTE: the reference lora init zeros w_up/b_up (adapter output identically 0 at
    # init); we use small random w_up so the adapter path contributes numerically.
    p["w_up"]   = stack(lambda: unif((DOWN_DIM, DIM), 0.02))
    p["b_up"]   = jnp.zeros((DEPTH, 1, DIM), jnp.float32)
    # FeedForward
    p["f_ln_g"] = jnp.stack([ones] * DEPTH)
    p["f_ln_b"] = jnp.stack([zeros] * DEPTH)
    p["w1"]     = stack(lambda: unif((DIM, MLP_DIM), 1.0 / math.sqrt(DIM)))
    p["b1"]     = stack(lambda: unif((1, MLP_DIM), 1.0 / math.sqrt(DIM)))
    p["w2"]     = stack(lambda: unif((MLP_DIM, DIM), 1.0 / math.sqrt(MLP_DIM)))
    p["b2"]     = stack(lambda: unif((1, DIM), 1.0 / math.sqrt(MLP_DIM)))

    # final LN + mlp_head (xavier_uniform weight, zero bias)
    p["final_ln_g"] = jnp.ones((1, DIM), jnp.float32)
    p["final_ln_b"] = jnp.zeros((1, DIM), jnp.float32)
    xb = math.sqrt(6.0 / (DIM + NUM_CLASSES))
    p["head_w"] = unif((DIM, NUM_CLASSES), xb)
    p["head_b"] = jnp.zeros((1, NUM_CLASSES), jnp.float32)
    return p


def fuse_params(p):
    """Fold LN affines / attention scale / adapter scale into weights; build the
    additive embedding slab.  Exact math, done once outside the kernel."""
    scale = DIM_HEAD ** -0.5
    f = {}
    f["conv_w"] = p["conv_w"]

    # additive embedding: cls rows get cls+pos[0]; patch rows get pos[1:]+conv_b
    emb_one = jnp.concatenate(
        [p["cls_token"] + p["pos_embedding"][0:1, :],
         p["pos_embedding"][1:, :] + p["conv_b"]], axis=0)      # (N_TOKENS, DIM)
    f["emb"] = jnp.tile(emb_one, (BATCH, 1))                    # (ROWS, DIM)

    # Attention: fold LN gamma/beta into w_qkv (+bias) and 1/sqrt(dh) into Q columns.
    g_a = jnp.swapaxes(p["a_ln_g"], 1, 2)                       # (DEPTH, DIM, 1)
    w_qkv = p["w_qkv"] * g_a
    b_qkv = jnp.einsum('lod,ldk->lok', p["a_ln_b"], p["w_qkv"])
    qscale = jnp.concatenate(
        [jnp.full((INNER,), scale, jnp.float32),
         jnp.ones((2 * INNER,), jnp.float32)], axis=0)
    f["w_qkv"] = w_qkv * qscale
    f["b_qkv"] = b_qkv * qscale
    f["w_out"] = p["w_out"]
    f["b_out"] = p["b_out"]

    # Fused adapter-down | FF-1 (LN gains folded), and FF-2 ; scale*adapter-up.
    w1  = p["w1"] * jnp.swapaxes(p["f_ln_g"], 1, 2)
    b1  = p["b1"] + jnp.einsum('lod,ldk->lok', p["f_ln_b"], p["w1"])
    wdn = p["w_down"] * jnp.swapaxes(p["d_ln_g"], 1, 2)
    bdn = p["b_down"] + jnp.einsum('lod,ldk->lok', p["d_ln_b"], p["w_down"])
    f["w_df"] = jnp.concatenate([w1, wdn], axis=2)              # (DEPTH, DIM, 128)
    f["b_df"] = jnp.concatenate([b1, bdn], axis=2)              # (DEPTH, 1, 128)
    f["w_uf"] = jnp.concatenate([p["w2"], ADAPTER_SCALE * p["w_up"]], axis=1)  # (DEPTH, 128, DIM)
    f["b_uf"] = p["b2"] + ADAPTER_SCALE * p["b_up"]             # (DEPTH, 1, DIM)

    # Final LN affine folded into the classifier head.
    f["head_w"] = p["head_w"] * p["final_ln_g"].T               # (DIM, NUM_CLASSES)
    f["head_b"] = p["head_b"] + p["final_ln_b"] @ p["head_w"]   # (1, NUM_CLASSES)
    return f


# --------------------------------- forward -----------------------------------
@jax.jit
def adaptformer_forward(img, fused):
    B, C, F, H, W = img.shape
    fp, ph, pw = FRAME_PATCH, PATCH, PATCH
    Fp, Hp, Wp = F // fp, H // ph, W // pw

    # Extract non-overlapping 3D patches, matching Conv3d(stride=kernel) +
    # flatten(2).transpose(1,2): tokens raveled over (f', h', w'), patch
    # features raveled over (c, kf, kh, kw).  Pure layout plumbing (XLA).
    patches = img.reshape(B, C, Fp, fp, Hp, ph, Wp, pw)
    patches = patches.transpose(0, 2, 4, 6, 1, 3, 5, 7)
    patches = patches.reshape(B, Fp * Hp * Wp, C * fp * ph * pw)
    # Prepend a zero row per batch (cls position) so the in-kernel embed stage is
    # a single dot + add over all ROWS tokens.
    padded = jnp.concatenate(
        [jnp.zeros((B, 1, PATCH_DIM), jnp.float32), patches], axis=1
    ).reshape(B * N_TOKENS, PATCH_DIM)

    args = (
        padded, fused["conv_w"], fused["emb"],
        fused["w_qkv"], fused["b_qkv"], fused["w_out"], fused["b_out"],
        fused["w_df"], fused["b_df"], fused["w_uf"], fused["b_uf"],
        fused["head_w"], fused["head_b"],
    )
    # Single fused kernel, no grid: the whole model (~100 KB of weights + a few KB
    # of activations) lives in VMEM; only (B, NUM_CLASSES) is written back to HBM.
    return pl.pallas_call(
        adaptformer_kernel,
        out_shape=jax.ShapeDtypeStruct((B, NUM_CLASSES), jnp.float32),
    )(*args)


# ----------------------------------- main -------------------------------------
if __name__ == "__main__":
    key = jax.random.PRNGKey(0)
    k_img, k_par = jax.random.split(key)
    img = jax.random.normal(
        k_img, (BATCH, CHANNELS, FRAMES, IMAGE_SIZE, IMAGE_SIZE), jnp.float32
    )
    params = init_params(k_par)
    fused = fuse_params(params)

    out = adaptformer_forward(img, fused)
    out = jax.block_until_ready(out)
    assert out.shape == (BATCH, NUM_CLASSES)
    assert bool(jnp.all(jnp.isfinite(out)))
    print("KERNEL_OK")
</pallas_src>

<mosaic_0001>
module attributes {stable_mosaic.version = 11 : i64} {
  func.func @adaptformer_kernel(%arg0: memref<18x384xf32, #tpu.memory_space<vmem>>, %arg1: memref<384x32xf32, #tpu.memory_space<vmem>>, %arg2: memref<18x32xf32, #tpu.memory_space<vmem>>, %arg3: memref<2x32x96xf32, #tpu.memory_space<vmem>>, %arg4: memref<2x1x96xf32, #tpu.memory_space<vmem>>, %arg5: memref<2x32x32xf32, #tpu.memory_space<vmem>>, %arg6: memref<2x1x32xf32, #tpu.memory_space<vmem>>, %arg7: memref<2x32x128xf32, #tpu.memory_space<vmem>>, %arg8: memref<2x1x128xf32, #tpu.memory_space<vmem>>, %arg9: memref<2x128x32xf32, #tpu.memory_space<vmem>>, %arg10: memref<2x1x32xf32, #tpu.memory_space<vmem>>, %arg11: memref<32x10xf32, #tpu.memory_space<vmem>>, %arg12: memref<1x10xf32, #tpu.memory_space<vmem>>, %arg13: memref<2x10xf32, #tpu.memory_space<vmem>>) attributes {dimension_semantics = [], scalar_prefetch = 0 : i64, scratch_operands = 0 : i64, tpu.core_type = #tpu.core_type<tc>} {
    %c0 = arith.constant 0 : index
    %c0_0 = arith.constant 0 : index
    %0 = vector.load %arg0[%c0, %c0_0] : memref<18x384xf32, #tpu.memory_space<vmem>>, vector<18x384xf32>
    %c0_1 = arith.constant 0 : index
    %c0_2 = arith.constant 0 : index
    %1 = vector.load %arg1[%c0_1, %c0_2] : memref<384x32xf32, #tpu.memory_space<vmem>>, vector<384x32xf32>
    %cst = arith.constant dense<0.000000e+00> : vector<18x32xf32>
    %2 = tpu.matmul %0, %1, %cst {dimension_numbers = #tpu.dot_dimension_numbers<[1], [0], [0], [1], [0, 0, 1, 1], [], []>} : vector<18x384xf32>, vector<384x32xf32>, vector<18x32xf32> -> vector<18x32xf32>
    %c0_3 = arith.constant 0 : index
    %c0_4 = arith.constant 0 : index
    %3 = vector.load %arg2[%c0_3, %c0_4] : memref<18x32xf32, #tpu.memory_space<vmem>>, vector<18x32xf32>
    %4 = arith.addf %2, %3 : vector<18x32xf32>
    %cst_5 = arith.constant dense<0.000000e+00> : vector<18xf32>
    %5 = vector.multi_reduction <add>, %4, %cst_5 [1] : vector<18x32xf32> to vector<18xf32>
    %6 = vector.shape_cast %5 : vector<18xf32> to vector<18x1xf32>
    %cst_6 = arith.constant 3.200000e+01 : f32
    %7 = vector.broadcast %cst_6 : f32 to vector<18x1xf32>
    %8 = arith.divf %6, %7 : vector<18x1xf32>
    %9 = vector.broadcast %8 : vector<18x1xf32> to vector<18x32xf32>
    %10 = arith.subf %4, %9 : vector<18x32xf32>
    %11 = arith.mulf %10, %10 : vector<18x32xf32>
    %cst_7 = arith.constant dense<0.000000e+00> : vector<18xf32>
    %12 = vector.multi_reduction <add>, %11, %cst_7 [1] : vector<18x32xf32> to vector<18xf32>
    %13 = vector.shape_cast %12 : vector<18xf32> to vector<18x1xf32>
    %cst_8 = arith.constant 3.200000e+01 : f32
    %14 = vector.broadcast %cst_8 : f32 to vector<18x1xf32>
    %15 = arith.divf %13, %14 : vector<18x1xf32>
    %16 = vector.broadcast %8 : vector<18x1xf32> to vector<18x32xf32>
    %17 = arith.subf %4, %16 : vector<18x32xf32>
    %cst_9 = arith.constant 9.99999974E-6 : f32
    %18 = vector.broadcast %cst_9 : f32 to vector<18x1xf32>
    %19 = arith.addf %15, %18 : vector<18x1xf32>
    %20 = math.rsqrt %19 : vector<18x1xf32>
    %21 = vector.broadcast %20 : vector<18x1xf32> to vector<18x32xf32>
    %22 = arith.mulf %17, %21 : vector<18x32xf32>
    %c0_10 = arith.constant 0 : index
    %c0_11 = arith.constant 0 : index
    %c0_12 = arith.constant 0 : index
    %23 = vector.load %arg3[%c0_10, %c0_11, %c0_12] : memref<2x32x96xf32, #tpu.memory_space<vmem>>, vector<1x32x96xf32>
    %24 = vector.shape_cast %23 : vector<1x32x96xf32> to vector<32x96xf32>
    %cst_13 = arith.constant dense<0.000000e+00> : vector<18x96xf32>
    %25 = tpu.matmul %22, %24, %cst_13 {dimension_numbers = #tpu.dot_dimension_numbers<[1], [0], [0], [1], [0, 0, 1, 1], [], []>} : vector<18x32xf32>, vector<32x96xf32>, vector<18x96xf32> -> vector<18x96xf32>
    %c0_14 = arith.constant 0 : index
    %c0_15 = arith.constant 0 : index
    %c0_16 = arith.constant 0 : index
    %26 = vector.load %arg4[%c0_14, %c0_15, %c0_16] : memref<2x1x96xf32, #tpu.memory_space<vmem>>, vector<1x1x96xf32>
    %27 = vector.shape_cast %26 : vector<1x1x96xf32> to vector<1x96xf32>
    %28 = vector.broadcast %27 : vector<1x96xf32> to vector<18x96xf32>
    %29 = arith.addf %25, %28 : vector<18x96xf32>
    %30 = vector.shape_cast %29 : vector<18x96xf32> to vector<2x9x96xf32>
    %31 = vector.extract_strided_slice %30 {offsets = [0, 0, 0], sizes = [2, 9, 16], strides = [1, 1, 1]} : vector<2x9x96xf32> to vector<2x9x16xf32>
    %32 = vector.extract_strided_slice %30 {offsets = [0, 0, 32], sizes = [2, 9, 16], strides = [1, 1, 1]} : vector<2x9x96xf32> to vector<2x9x16xf32>
    %33 = vector.extract_strided_slice %30 {offsets = [0, 0, 64], sizes = [2, 9, 16], strides = [1, 1, 1]} : vector<2x9x96xf32> to vector<2x9x16xf32>
    "tpu.trace_start"() <{level = 10 : i32, message = "bnd,bmd->bnm"}> : () -> ()
    %cst_17 = arith.constant dense<0.000000e+00> : vector<2x9x9xf32>
    %34 = tpu.matmul %31, %32, %cst_17 {dimension_numbers = #tpu.dot_dimension_numbers<[2], [2], [1], [1], [0, 0, 0, 1, 1, 1], [0], [0]>} : vector<2x9x16xf32>, vector<2x9x16xf32>, vector<2x9x9xf32> -> vector<2x9x9xf32>
    "tpu.trace_stop"() : () -> ()
    %cst_18 = arith.constant dense<0xFF800000> : vector<2x9xf32>
    %35 = vector.multi_reduction <maximumf>, %34, %cst_18 [2] : vector<2x9x9xf32> to vector<2x9xf32>
    %36 = vector.shape_cast %35 : vector<2x9xf32> to vector<2x9x1xf32>
    %37 = vector.broadcast %36 : vector<2x9x1xf32> to vector<2x9x9xf32>
    %38 = arith.subf %34, %37 : vector<2x9x9xf32>
    %39 = math.exp %38 : vector<2x9x9xf32>
    %cst_19 = arith.constant dense<0.000000e+00> : vector<2x9xf32>
    %40 = vector.multi_reduction <add>, %39, %cst_19 [2] : vector<2x9x9xf32> to vector<2x9xf32>
    %41 = vector.shape_cast %40 : vector<2x9xf32> to vector<2x9x1xf32>
    %42 = tpu.reciprocal %41 {approx = true} : vector<2x9x1xf32> -> vector<2x9x1xf32>
    %43 = vector.broadcast %42 : vector<2x9x1xf32> to vector<2x9x9xf32>
    %44 = arith.mulf %39, %43 : vector<2x9x9xf32>
    "tpu.trace_start"() <{level = 10 : i32, message = "bnm,bmd->bnd"}> : () -> ()
    %cst_20 = arith.constant dense<0.000000e+00> : vector<2x9x16xf32>
    %45 = tpu.matmul %44, %33, %cst_20 {dimension_numbers = #tpu.dot_dimension_numbers<[2], [1], [1], [2], [0, 0, 0, 1, 1, 2], [0], [0]>} : vector<2x9x9xf32>, vector<2x9x16xf32>, vector<2x9x16xf32> -> vector<2x9x16xf32>
    "tpu.trace_stop"() : () -> ()
    %46 = vector.extract_strided_slice %30 {offsets = [0, 0, 16], sizes = [2, 9, 16], strides = [1, 1, 1]} : vector<2x9x96xf32> to vector<2x9x16xf32>
    %47 = vector.extract_strided_slice %30 {offsets = [0, 0, 48], sizes = [2, 9, 16], strides = [1, 1, 1]} : vector<2x9x96xf32> to vector<2x9x16xf32>
    %48 = vector.extract_strided_slice %30 {offsets = [0, 0, 80], sizes = [2, 9, 16], strides = [1, 1, 1]} : vector<2x9x96xf32> to vector<2x9x16xf32>
    "tpu.trace_start"() <{level = 10 : i32, message = "bnd,bmd->bnm"}> : () -> ()
    %cst_21 = arith.constant dense<0.000000e+00> : vector<2x9x9xf32>
    %49 = tpu.matmul %46, %47, %cst_21 {dimension_numbers = #tpu.dot_dimension_numbers<[2], [2], [1], [1], [0, 0, 0, 1, 1, 1], [0], [0]>} : vector<2x9x16xf32>, vector<2x9x16xf32>, vector<2x9x9xf32> -> vector<2x9x9xf32>
    "tpu.trace_stop"() : () -> ()
    %cst_22 = arith.constant dense<0xFF800000> : vector<2x9xf32>
    %50 = vector.multi_reduction <maximumf>, %49, %cst_22 [2] : vector<2x9x9xf32> to vector<2x9xf32>
    %51 = vector.shape_cast %50 : vector<2x9xf32> to vector<2x9x1xf32>
    %52 = vector.broadcast %51 : vector<2x9x1xf32> to vector<2x9x9xf32>
    %53 = arith.subf %49, %52 : vector<2x9x9xf32>
    %54 = math.exp %53 : vector<2x9x9xf32>
    %cst_23 = arith.constant dense<0.000000e+00> : vector<2x9xf32>
    %55 = vector.multi_reduction <add>, %54, %cst_23 [2] : vector<2x9x9xf32> to vector<2x9xf32>
    %56 = vector.shape_cast %55 : vector<2x9xf32> to vector<2x9x1xf32>
    %57 = tpu.reciprocal %56 {approx = true} : vector<2x9x1xf32> -> vector<2x9x1xf32>
    %58 = vector.broadcast %57 : vector<2x9x1xf32> to vector<2x9x9xf32>
    %59 = arith.mulf %54, %58 : vector<2x9x9xf32>
    "tpu.trace_start"() <{level = 10 : i32, message = "bnm,bmd->bnd"}> : () -> ()
    %cst_24 = arith.constant dense<0.000000e+00> : vector<2x9x16xf32>
    %60 = tpu.matmul %59, %48, %cst_24 {dimension_numbers = #tpu.dot_dimension_numbers<[2], [1], [1], [2], [0, 0, 0, 1, 1, 2], [0], [0]>} : vector<2x9x9xf32>, vector<2x9x16xf32>, vector<2x9x16xf32> -> vector<2x9x16xf32>
    "tpu.trace_stop"() : () -> ()
    %61 = tpu.concatenate %45, %60 in 2 : vector<2x9x16xf32>, vector<2x9x16xf32> -> vector<2x9x32xf32>
    %62 = vector.shape_cast %61 : vector<2x9x32xf32> to vector<18x32xf32>
    %c0_25 = arith.constant 0 : index
    %c0_26 = arith.constant 0 : index
    %c0_27 = arith.constant 0 : index
    %63 = vector.load %arg5[%c0_25, %c0_26, %c0_27] : memref<2x32x32xf32, #tpu.memory_space<vmem>>, vector<1x32x32xf32>
    %64 = vector.shape_cast %63 : vector<1x32x32xf32> to vector<32x32xf32>
    %cst_28 = arith.constant dense<0.000000e+00> : vector<18x32xf32>
    %65 = tpu.matmul %62, %64, %cst_28 {dimension_numbers = #tpu.dot_dimension_numbers<[1], [0], [0], [1], [0, 0, 1, 1], [], []>} : vector<18x32xf32>, vector<32x32xf32>, vector<18x32xf32> -> vector<18x32xf32>
    %c0_29 = arith.constant 0 : index
    %c0_30 = arith.constant 0 : index
    %c0_31 = arith.constant 0 : index
    %66 = vector.load %arg6[%c0_29, %c0_30, %c0_31] : memref<2x1x32xf32, #tpu.memory_space<vmem>>, vector<1x1x32xf32>
    %67 = vector.shape_cast %66 : vector<1x1x32xf32> to vector<1x32xf32>
    %68 = vector.broadcast %67 : vector<1x32xf32> to vector<18x32xf32>
    %69 = arith.addf %65, %68 : vector<18x32xf32>
    %70 = arith.addf %69, %4 : vector<18x32xf32>
    %cst_32 = arith.constant dense<0.000000e+00> : vector<18xf32>
    %71 = vector.multi_reduction <add>, %70, %cst_32 [1] : vector<18x32xf32> to vector<18xf32>
    %72 = vector.shape_cast %71 : vector<18xf32> to vector<18x1xf32>
    %cst_33 = arith.constant 3.200000e+01 : f32
    %73 = vector.broadcast %cst_33 : f32 to vector<18x1xf32>
    %74 = arith.divf %72, %73 : vector<18x1xf32>
    %75 = vector.broadcast %74 : vector<18x1xf32> to vector<18x32xf32>
    %76 = arith.subf %70, %75 : vector<18x32xf32>
    %77 = arith.mulf %76, %76 : vector<18x32xf32>
    %cst_34 = arith.constant dense<0.000000e+00> : vector<18xf32>
    %78 = vector.multi_reduction <add>, %77, %cst_34 [1] : vector<18x32xf32> to vector<18xf32>
    %79 = vector.shape_cast %78 : vector<18xf32> to vector<18x1xf32>
    %cst_35 = arith.constant 3.200000e+01 : f32
    %80 = vector.broadcast %cst_35 : f32 to vector<18x1xf32>
    %81 = arith.divf %79, %80 : vector<18x1xf32>
    %82 = vector.broadcast %74 : vector<18x1xf32> to vector<18x32xf32>
    %83 = arith.subf %70, %82 : vector<18x32xf32>
    %cst_36 = arith.constant 9.99999974E-6 : f32
    %84 = vector.broadcast %cst_36 : f32 to vector<18x1xf32>
    %85 = arith.addf %81, %84 : vector<18x1xf32>
    %86 = math.rsqrt %85 : vector<18x1xf32>
    %87 = vector.broadcast %86 : vector<18x1xf32> to vector<18x32xf32>
    %88 = arith.mulf %83, %87 : vector<18x32xf32>
    %c0_37 = arith.constant 0 : index
    %c0_38 = arith.constant 0 : index
    %c0_39 = arith.constant 0 : index
    %89 = vector.load %arg7[%c0_37, %c0_38, %c0_39] : memref<2x32x128xf32, #tpu.memory_space<vmem>>, vector<1x32x128xf32>
    %90 = vector.shape_cast %89 : vector<1x32x128xf32> to vector<32x128xf32>
    %cst_40 = arith.constant dense<0.000000e+00> : vector<18x128xf32>
    %91 = tpu.matmul %88, %90, %cst_40 {dimension_numbers = #tpu.dot_dimension_numbers<[1], [0], [0], [1], [0, 0, 1, 1], [], []>} : vector<18x32xf32>, vector<32x128xf32>, vector<18x128xf32> -> vector<18x128xf32>
    %c0_41 = arith.constant 0 : index
    %c0_42 = arith.constant 0 : index
    %c0_43 = arith.constant 0 : index
    %92 = vector.load %arg8[%c0_41, %c0_42, %c0_43] : memref<2x1x128xf32, #tpu.memory_space<vmem>>, vector<1x1x128xf32>
    %93 = vector.shape_cast %92 : vector<1x1x128xf32> to vector<1x128xf32>
    %94 = vector.broadcast %93 : vector<1x128xf32> to vector<18x128xf32>
    %95 = arith.addf %91, %94 : vector<18x128xf32>
    %96 = tpu.iota {dimensions = array<i32: 1>} : vector<18x128xi32>
    %c64_i32 = arith.constant 64 : i32
    %97 = vector.broadcast %c64_i32 : i32 to vector<18x128xi32>
    %98 = arith.cmpi slt, %96, %97 : vector<18x128xi32>
    %cst_44 = arith.constant 5.000000e-01 : f32
    %99 = vector.broadcast %cst_44 : f32 to vector<18x128xf32>
    %100 = arith.mulf %99, %95 : vector<18x128xf32>
    %cst_45 = arith.constant 0.707106769 : f32
    %101 = vector.broadcast %cst_45 : f32 to vector<18x128xf32>
    %102 = arith.mulf %95, %101 : vector<18x128xf32>
    %103 = math.erf %102 : vector<18x128xf32>
    %cst_46 = arith.constant 1.000000e+00 : f32
    %104 = vector.broadcast %cst_46 : f32 to vector<18x128xf32>
    %105 = arith.addf %104, %103 : vector<18x128xf32>
    %106 = arith.mulf %100, %105 : vector<18x128xf32>
    %cst_47 = arith.constant 0.000000e+00 : f32
    %107 = vector.broadcast %cst_47 : f32 to vector<18x128xf32>
    %108 = arith.maximumf %95, %107 : vector<18x128xf32>
    %109 = arith.select %98, %106, %108 : vector<18x128xi1>, vector<18x128xf32>
    %c0_48 = arith.constant 0 : index
    %c0_49 = arith.constant 0 : index
    %c0_50 = arith.constant 0 : index
    %110 = vector.load %arg9[%c0_48, %c0_49, %c0_50] : memref<2x128x32xf32, #tpu.memory_space<vmem>>, vector<1x128x32xf32>
    %111 = vector.shape_cast %110 : vector<1x128x32xf32> to vector<128x32xf32>
    %cst_51 = arith.constant dense<0.000000e+00> : vector<18x32xf32>
    %112 = tpu.matmul %109, %111, %cst_51 {dimension_numbers = #tpu.dot_dimension_numbers<[1], [0], [0], [1], [0, 0, 1, 1], [], []>} : vector<18x128xf32>, vector<128x32xf32>, vector<18x32xf32> -> vector<18x32xf32>
    %c0_52 = arith.constant 0 : index
    %c0_53 = arith.constant 0 : index
    %c0_54 = arith.constant 0 : index
    %113 = vector.load %arg10[%c0_52, %c0_53, %c0_54] : memref<2x1x32xf32, #tpu.memory_space<vmem>>, vector<1x1x32xf32>
    %114 = vector.shape_cast %113 : vector<1x1x32xf32> to vector<1x32xf32>
    %115 = vector.broadcast %114 : vector<1x32xf32> to vector<18x32xf32>
    %116 = arith.addf %112, %115 : vector<18x32xf32>
    %117 = arith.addf %116, %70 : vector<18x32xf32>
    %cst_55 = arith.constant dense<0.000000e+00> : vector<18xf32>
    %118 = vector.multi_reduction <add>, %117, %cst_55 [1] : vector<18x32xf32> to vector<18xf32>
    %119 = vector.shape_cast %118 : vector<18xf32> to vector<18x1xf32>
    %cst_56 = arith.constant 3.200000e+01 : f32
    %120 = vector.broadcast %cst_56 : f32 to vector<18x1xf32>
    %121 = arith.divf %119, %120 : vector<18x1xf32>
    %122 = vector.broadcast %121 : vector<18x1xf32> to vector<18x32xf32>
    %123 = arith.subf %117, %122 : vector<18x32xf32>
    %124 = arith.mulf %123, %123 : vector<18x32xf32>
    %cst_57 = arith.constant dense<0.000000e+00> : vector<18xf32>
    %125 = vector.multi_reduction <add>, %124, %cst_57 [1] : vector<18x32xf32> to vector<18xf32>
    %126 = vector.shape_cast %125 : vector<18xf32> to vector<18x1xf32>
    %cst_58 = arith.constant 3.200000e+01 : f32
    %127 = vector.broadcast %cst_58 : f32 to vector<18x1xf32>
    %128 = arith.divf %126, %127 : vector<18x1xf32>
    %129 = vector.broadcast %121 : vector<18x1xf32> to vector<18x32xf32>
    %130 = arith.subf %117, %129 : vector<18x32xf32>
    %cst_59 = arith.constant 9.99999974E-6 : f32
    %131 = vector.broadcast %cst_59 : f32 to vector<18x1xf32>
    %132 = arith.addf %128, %131 : vector<18x1xf32>
    %133 = math.rsqrt %132 : vector<18x1xf32>
    %134 = vector.broadcast %133 : vector<18x1xf32> to vector<18x32xf32>
    %135 = arith.mulf %130, %134 : vector<18x32xf32>
    %c1 = arith.constant 1 : index
    %c0_60 = arith.constant 0 : index
    %c0_61 = arith.constant 0 : index
    %136 = vector.load %arg3[%c1, %c0_60, %c0_61] : memref<2x32x96xf32, #tpu.memory_space<vmem>>, vector<1x32x96xf32>
    %137 = vector.shape_cast %136 : vector<1x32x96xf32> to vector<32x96xf32>
    %cst_62 = arith.constant dense<0.000000e+00> : vector<18x96xf32>
    %138 = tpu.matmul %135, %137, %cst_62 {dimension_numbers = #tpu.dot_dimension_numbers<[1], [0], [0], [1], [0, 0, 1, 1], [], []>} : vector<18x32xf32>, vector<32x96xf32>, vector<18x96xf32> -> vector<18x96xf32>
    %c1_63 = arith.constant 1 : index
    %c0_64 = arith.constant 0 : index
    %c0_65 = arith.constant 0 : index
    %139 = vector.load %arg4[%c1_63, %c0_64, %c0_65] : memref<2x1x96xf32, #tpu.memory_space<vmem>>, vector<1x1x96xf32>
    %140 = vector.shape_cast %139 : vector<1x1x96xf32> to vector<1x96xf32>
    %141 = vector.broadcast %140 : vector<1x96xf32> to vector<18x96xf32>
    %142 = arith.addf %138, %141 : vector<18x96xf32>
    %143 = vector.shape_cast %142 : vector<18x96xf32> to vector<2x9x96xf32>
    %144 = vector.extract_strided_slice %143 {offsets = [0, 0, 0], sizes = [2, 9, 16], strides = [1, 1, 1]} : vector<2x9x96xf32> to vector<2x9x16xf32>
    %145 = vector.extract_strided_slice %143 {offsets = [0, 0, 32], sizes = [2, 9, 16], strides = [1, 1, 1]} : vector<2x9x96xf32> to vector<2x9x16xf32>
    %146 = vector.extract_strided_slice %143 {offsets = [0, 0, 64], sizes = [2, 9, 16], strides = [1, 1, 1]} : vector<2x9x96xf32> to vector<2x9x16xf32>
    "tpu.trace_start"() <{level = 10 : i32, message = "bnd,bmd->bnm"}> : () -> ()
    %cst_66 = arith.constant dense<0.000000e+00> : vector<2x9x9xf32>
    %147 = tpu.matmul %144, %145, %cst_66 {dimension_numbers = #tpu.dot_dimension_numbers<[2], [2], [1], [1], [0, 0, 0, 1, 1, 1], [0], [0]>} : vector<2x9x16xf32>, vector<2x9x16xf32>, vector<2x9x9xf32> -> vector<2x9x9xf32>
    "tpu.trace_stop"() : () -> ()
    %cst_67 = arith.constant dense<0xFF800000> : vector<2x9xf32>
    %148 = vector.multi_reduction <maximumf>, %147, %cst_67 [2] : vector<2x9x9xf32> to vector<2x9xf32>
    %149 = vector.shape_cast %148 : vector<2x9xf32> to vector<2x9x1xf32>
    %150 = vector.broadcast %149 : vector<2x9x1xf32> to vector<2x9x9xf32>
    %151 = arith.subf %147, %150 : vector<2x9x9xf32>
    %152 = math.exp %151 : vector<2x9x9xf32>
    %cst_68 = arith.constant dense<0.000000e+00> : vector<2x9xf32>
    %153 = vector.multi_reduction <add>, %152, %cst_68 [2] : vector<2x9x9xf32> to vector<2x9xf32>
    %154 = vector.shape_cast %153 : vector<2x9xf32> to vector<2x9x1xf32>
    %155 = tpu.reciprocal %154 {approx = true} : vector<2x9x1xf32> -> vector<2x9x1xf32>
    %156 = vector.broadcast %155 : vector<2x9x1xf32> to vector<2x9x9xf32>
    %157 = arith.mulf %152, %156 : vector<2x9x9xf32>
    "tpu.trace_start"() <{level = 10 : i32, message = "bnm,bmd->bnd"}> : () -> ()
    %cst_69 = arith.constant dense<0.000000e+00> : vector<2x9x16xf32>
    %158 = tpu.matmul %157, %146, %cst_69 {dimension_numbers = #tpu.dot_dimension_numbers<[2], [1], [1], [2], [0, 0, 0, 1, 1, 2], [0], [0]>} : vector<2x9x9xf32>, vector<2x9x16xf32>, vector<2x9x16xf32> -> vector<2x9x16xf32>
    "tpu.trace_stop"() : () -> ()
    %159 = vector.extract_strided_slice %143 {offsets = [0, 0, 16], sizes = [2, 9, 16], strides = [1, 1, 1]} : vector<2x9x96xf32> to vector<2x9x16xf32>
    %160 = vector.extract_strided_slice %143 {offsets = [0, 0, 48], sizes = [2, 9, 16], strides = [1, 1, 1]} : vector<2x9x96xf32> to vector<2x9x16xf32>
    %161 = vector.extract_strided_slice %143 {offsets = [0, 0, 80], sizes = [2, 9, 16], strides = [1, 1, 1]} : vector<2x9x96xf32> to vector<2x9x16xf32>
    "tpu.trace_start"() <{level = 10 : i32, message = "bnd,bmd->bnm"}> : () -> ()
    %cst_70 = arith.constant dense<0.000000e+00> : vector<2x9x9xf32>
    %162 = tpu.matmul %159, %160, %cst_70 {dimension_numbers = #tpu.dot_dimension_numbers<[2], [2], [1], [1], [0, 0, 0, 1, 1, 1], [0], [0]>} : vector<2x9x16xf32>, vector<2x9x16xf32>, vector<2x9x9xf32> -> vector<2x9x9xf32>
    "tpu.trace_stop"() : () -> ()
    %cst_71 = arith.constant dense<0xFF800000> : vector<2x9xf32>
    %163 = vector.multi_reduction <maximumf>, %162, %cst_71 [2] : vector<2x9x9xf32> to vector<2x9xf32>
    %164 = vector.shape_cast %163 : vector<2x9xf32> to vector<2x9x1xf32>
    %165 = vector.broadcast %164 : vector<2x9x1xf32> to vector<2x9x9xf32>
    %166 = arith.subf %162, %165 : vector<2x9x9xf32>
    %167 = math.exp %166 : vector<2x9x9xf32>
    %cst_72 = arith.constant dense<0.000000e+00> : vector<2x9xf32>
    %168 = vector.multi_reduction <add>, %167, %cst_72 [2] : vector<2x9x9xf32> to vector<2x9xf32>
    %169 = vector.shape_cast %168 : vector<2x9xf32> to vector<2x9x1xf32>
    %170 = tpu.reciprocal %169 {approx = true} : vector<2x9x1xf32> -> vector<2x9x1xf32>
    %171 = vector.broadcast %170 : vector<2x9x1xf32> to vector<2x9x9xf32>
    %172 = arith.mulf %167, %171 : vector<2x9x9xf32>
    "tpu.trace_start"() <{level = 10 : i32, message = "bnm,bmd->bnd"}> : () -> ()
    %cst_73 = arith.constant dense<0.000000e+00> : vector<2x9x16xf32>
    %173 = tpu.matmul %172, %161, %cst_73 {dimension_numbers = #tpu.dot_dimension_numbers<[2], [1], [1], [2], [0, 0, 0, 1, 1, 2], [0], [0]>} : vector<2x9x9xf32>, vector<2x9x16xf32>, vector<2x9x16xf32> -> vector<2x9x16xf32>
    "tpu.trace_stop"() : () -> ()
    %174 = tpu.concatenate %158, %173 in 2 : vector<2x9x16xf32>, vector<2x9x16xf32> -> vector<2x9x32xf32>
    %175 = vector.shape_cast %174 : vector<2x9x32xf32> to vector<18x32xf32>
    %c1_74 = arith.constant 1 : index
    %c0_75 = arith.constant 0 : index
    %c0_76 = arith.constant 0 : index
    %176 = vector.load %arg5[%c1_74, %c0_75, %c0_76] : memref<2x32x32xf32, #tpu.memory_space<vmem>>, vector<1x32x32xf32>
    %177 = vector.shape_cast %176 : vector<1x32x32xf32> to vector<32x32xf32>
    %cst_77 = arith.constant dense<0.000000e+00> : vector<18x32xf32>
    %178 = tpu.matmul %175, %177, %cst_77 {dimension_numbers = #tpu.dot_dimension_numbers<[1], [0], [0], [1], [0, 0, 1, 1], [], []>} : vector<18x32xf32>, vector<32x32xf32>, vector<18x32xf32> -> vector<18x32xf32>
    %c1_78 = arith.constant 1 : index
    %c0_79 = arith.constant 0 : index
    %c0_80 = arith.constant 0 : index
    %179 = vector.load %arg6[%c1_78, %c0_79, %c0_80] : memref<2x1x32xf32, #tpu.memory_space<vmem>>, vector<1x1x32xf32>
    %180 = vector.shape_cast %179 : vector<1x1x32xf32> to vector<1x32xf32>
    %181 = vector.broadcast %180 : vector<1x32xf32> to vector<18x32xf32>
    %182 = arith.addf %178, %181 : vector<18x32xf32>
    %183 = arith.addf %182, %117 : vector<18x32xf32>
    %cst_81 = arith.constant dense<0.000000e+00> : vector<18xf32>
    %184 = vector.multi_reduction <add>, %183, %cst_81 [1] : vector<18x32xf32> to vector<18xf32>
    %185 = vector.shape_cast %184 : vector<18xf32> to vector<18x1xf32>
    %cst_82 = arith.constant 3.200000e+01 : f32
    %186 = vector.broadcast %cst_82 : f32 to vector<18x1xf32>
    %187 = arith.divf %185, %186 : vector<18x1xf32>
    %188 = vector.broadcast %187 : vector<18x1xf32> to vector<18x32xf32>
    %189 = arith.subf %183, %188 : vector<18x32xf32>
    %190 = arith.mulf %189, %189 : vector<18x32xf32>
    %cst_83 = arith.constant dense<0.000000e+00> : vector<18xf32>
    %191 = vector.multi_reduction <add>, %190, %cst_83 [1] : vector<18x32xf32> to vector<18xf32>
    %192 = vector.shape_cast %191 : vector<18xf32> to vector<18x1xf32>
    %cst_84 = arith.constant 3.200000e+01 : f32
    %193 = vector.broadcast %cst_84 : f32 to vector<18x1xf32>
    %194 = arith.divf %192, %193 : vector<18x1xf32>
    %195 = vector.broadcast %187 : vector<18x1xf32> to vector<18x32xf32>
    %196 = arith.subf %183, %195 : vector<18x32xf32>
    %cst_85 = arith.constant 9.99999974E-6 : f32
    %197 = vector.broadcast %cst_85 : f32 to vector<18x1xf32>
    %198 = arith.addf %194, %197 : vector<18x1xf32>
    %199 = math.rsqrt %198 : vector<18x1xf32>
    %200 = vector.broadcast %199 : vector<18x1xf32> to vector<18x32xf32>
    %201 = arith.mulf %196, %200 : vector<18x32xf32>
    %c1_86 = arith.constant 1 : index
    %c0_87 = arith.constant 0 : index
    %c0_88 = arith.constant 0 : index
    %202 = vector.load %arg7[%c1_86, %c0_87, %c0_88] : memref<2x32x128xf32, #tpu.memory_space<vmem>>, vector<1x32x128xf32>
    %203 = vector.shape_cast %202 : vector<1x32x128xf32> to vector<32x128xf32>
    %cst_89 = arith.constant dense<0.000000e+00> : vector<18x128xf32>
    %204 = tpu.matmul %201, %203, %cst_89 {dimension_numbers = #tpu.dot_dimension_numbers<[1], [0], [0], [1], [0, 0, 1, 1], [], []>} : vector<18x32xf32>, vector<32x128xf32>, vector<18x128xf32> -> vector<18x128xf32>
    %c1_90 = arith.constant 1 : index
    %c0_91 = arith.constant 0 : index
    %c0_92 = arith.constant 0 : index
    %205 = vector.load %arg8[%c1_90, %c0_91, %c0_92] : memref<2x1x128xf32, #tpu.memory_space<vmem>>, vector<1x1x128xf32>
    %206 = vector.shape_cast %205 : vector<1x1x128xf32> to vector<1x128xf32>
    %207 = vector.broadcast %206 : vector<1x128xf32> to vector<18x128xf32>
    %208 = arith.addf %204, %207 : vector<18x128xf32>
    %209 = tpu.iota {dimensions = array<i32: 1>} : vector<18x128xi32>
    %c64_i32_93 = arith.constant 64 : i32
    %210 = vector.broadcast %c64_i32_93 : i32 to vector<18x128xi32>
    %211 = arith.cmpi slt, %209, %210 : vector<18x128xi32>
    %cst_94 = arith.constant 5.000000e-01 : f32
    %212 = vector.broadcast %cst_94 : f32 to vector<18x128xf32>
    %213 = arith.mulf %212, %208 : vector<18x128xf32>
    %cst_95 = arith.constant 0.707106769 : f32
    %214 = vector.broadcast %cst_95 : f32 to vector<18x128xf32>
    %215 = arith.mulf %208, %214 : vector<18x128xf32>
    %216 = math.erf %215 : vector<18x128xf32>
    %cst_96 = arith.constant 1.000000e+00 : f32
    %217 = vector.broadcast %cst_96 : f32 to vector<18x128xf32>
    %218 = arith.addf %217, %216 : vector<18x128xf32>
    %219 = arith.mulf %213, %218 : vector<18x128xf32>
    %cst_97 = arith.constant 0.000000e+00 : f32
    %220 = vector.broadcast %cst_97 : f32 to vector<18x128xf32>
    %221 = arith.maximumf %208, %220 : vector<18x128xf32>
    %222 = arith.select %211, %219, %221 : vector<18x128xi1>, vector<18x128xf32>
    %c1_98 = arith.constant 1 : index
    %c0_99 = arith.constant 0 : index
    %c0_100 = arith.constant 0 : index
    %223 = vector.load %arg9[%c1_98, %c0_99, %c0_100] : memref<2x128x32xf32, #tpu.memory_space<vmem>>, vector<1x128x32xf32>
    %224 = vector.shape_cast %223 : vector<1x128x32xf32> to vector<128x32xf32>
    %cst_101 = arith.constant dense<0.000000e+00> : vector<18x32xf32>
    %225 = tpu.matmul %222, %224, %cst_101 {dimension_numbers = #tpu.dot_dimension_numbers<[1], [0], [0], [1], [0, 0, 1, 1], [], []>} : vector<18x128xf32>, vector<128x32xf32>, vector<18x32xf32> -> vector<18x32xf32>
    %c1_102 = arith.constant 1 : index
    %c0_103 = arith.constant 0 : index
    %c0_104 = arith.constant 0 : index
    %226 = vector.load %arg10[%c1_102, %c0_103, %c0_104] : memref<2x1x32xf32, #tpu.memory_space<vmem>>, vector<1x1x32xf32>
    %227 = vector.shape_cast %226 : vector<1x1x32xf32> to vector<1x32xf32>
    %228 = vector.broadcast %227 : vector<1x32xf32> to vector<18x32xf32>
    %229 = arith.addf %225, %228 : vector<18x32xf32>
    %230 = arith.addf %229, %183 : vector<18x32xf32>
    %231 = vector.shape_cast %230 : vector<18x32xf32> to vector<2x9x32xf32>
    %232 = vector.extract_strided_slice %231 {offsets = [0, 0, 0], sizes = [2, 1, 32], strides = [1, 1, 1]} : vector<2x9x32xf32> to vector<2x1x32xf32>
    %233 = vector.shape_cast %232 : vector<2x1x32xf32> to vector<2x32xf32>
    %cst_105 = arith.constant dense<0.000000e+00> : vector<2xf32>
    %234 = vector.multi_reduction <add>, %233, %cst_105 [1] : vector<2x32xf32> to vector<2xf32>
    %235 = vector.shape_cast %234 : vector<2xf32> to vector<2x1xf32>
    %cst_106 = arith.constant 3.200000e+01 : f32
    %236 = vector.broadcast %cst_106 : f32 to vector<2x1xf32>
    %237 = arith.divf %235, %236 : vector<2x1xf32>
    %238 = vector.broadcast %237 : vector<2x1xf32> to vector<2x32xf32>
    %239 = arith.subf %233, %238 : vector<2x32xf32>
    %240 = arith.mulf %239, %239 : vector<2x32xf32>
    %cst_107 = arith.constant dense<0.000000e+00> : vector<2xf32>
    %241 = vector.multi_reduction <add>, %240, %cst_107 [1] : vector<2x32xf32> to vector<2xf32>
    %242 = vector.shape_cast %241 : vector<2xf32> to vector<2x1xf32>
    %cst_108 = arith.constant 3.200000e+01 : f32
    %243 = vector.broadcast %cst_108 : f32 to vector<2x1xf32>
    %244 = arith.divf %242, %243 : vector<2x1xf32>
    %245 = vector.broadcast %237 : vector<2x1xf32> to vector<2x32xf32>
    %246 = arith.subf %233, %245 : vector<2x32xf32>
    %cst_109 = arith.constant 9.99999974E-6 : f32
    %247 = vector.broadcast %cst_109 : f32 to vector<2x1xf32>
    %248 = arith.addf %244, %247 : vector<2x1xf32>
    %249 = math.rsqrt %248 : vector<2x1xf32>
    %250 = vector.broadcast %249 : vector<2x1xf32> to vector<2x32xf32>
    %251 = arith.mulf %246, %250 : vector<2x32xf32>
    %c0_110 = arith.constant 0 : index
    %c0_111 = arith.constant 0 : index
    %252 = vector.load %arg11[%c0_110, %c0_111] : memref<32x10xf32, #tpu.memory_space<vmem>>, vector<32x10xf32>
    %cst_112 = arith.constant dense<0.000000e+00> : vector<2x10xf32>
    %253 = tpu.matmul %251, %252, %cst_112 {dimension_numbers = #tpu.dot_dimension_numbers<[1], [0], [0], [1], [0, 0, 1, 1], [], []>} : vector<2x32xf32>, vector<32x10xf32>, vector<2x10xf32> -> vector<2x10xf32>
    %c0_113 = arith.constant 0 : index
    %c0_114 = arith.constant 0 : index
    %254 = vector.load %arg12[%c0_113, %c0_114] : memref<1x10xf32, #tpu.memory_space<vmem>>, vector<1x10xf32>
    %255 = vector.broadcast %254 : vector<1x10xf32> to vector<2x10xf32>
    %256 = arith.addf %253, %255 : vector<2x10xf32>
    %c0_115 = arith.constant 0 : index
    %c0_116 = arith.constant 0 : index
    %257 = vector.load %arg13[%c0_115, %c0_116] : memref<2x10xf32, #tpu.memory_space<vmem>>, vector<2x10xf32>
    tpu.vector_store %arg13[%c0_115, %c0_116], %256 {strides = array<i32>} : memref<2x10xf32, #tpu.memory_space<vmem>>, vector<2x10xf32>,
    return
  }
}

</mosaic_0001>

<llo_original>
// kernel: adaptformer_forward.1
$region0: #{adaptformer_forward.1}
  #allocation0 [shape = 'u32[]', space=smem, size = 0x4, offset = 0x4, fixed_abs, tag = 'smem constant byte address 0x4 - core index']
  #allocation1 [shape = 'u32[144,128]{1,0:T(1,128)}', space=vmem, size = 0x12000, scoped, tag = 'internal scratch']
  %s0 = inlined_call_operand.vmem [shape: f32[18,384], index: 0, kind: input, shape index: {}]
  %s1 = inlined_call_operand.vmem [shape: f32[384,32], index: 1, kind: input, shape index: {}]
  %s2 = inlined_call_operand.vmem [shape: f32[18,32], index: 2, kind: input, shape index: {}]
  %s3 = inlined_call_operand.vmem [shape: f32[2,32,96], index: 3, kind: input, shape index: {}]
  %s4 = inlined_call_operand.vmem [shape: f32[2,1,96], index: 4, kind: input, shape index: {}]
  %s5 = inlined_call_operand.vmem [shape: f32[2,32,32], index: 5, kind: input, shape index: {}]
  %s6 = inlined_call_operand.vmem [shape: f32[2,1,32], index: 6, kind: input, shape index: {}]
  %s7 = inlined_call_operand.vmem [shape: f32[2,32,128], index: 7, kind: input, shape index: {}]
  %s8 = inlined_call_operand.vmem [shape: f32[2,1,128], index: 8, kind: input, shape index: {}]
  %s9 = inlined_call_operand.vmem [shape: f32[2,128,32], index: 9, kind: input, shape index: {}]
  %s10 = inlined_call_operand.vmem [shape: f32[2,1,32], index: 10, kind: input, shape index: {}]
  %s11 = inlined_call_operand.vmem [shape: f32[32,10], index: 11, kind: input, shape index: {}]
  %s12 = inlined_call_operand.vmem [shape: f32[1,10], index: 12, kind: input, shape index: {}]
  %s13 = inlined_call_operand.hbm [shape: f32[2,10], index: 13, kind: output, shape index: {}]
  %s14 = sld [smem:[#allocation0]]
  $region62: #{adaptformer_forward.1} parent=0
    _
  %s16 = ssub.s32 1, %s14
  %s17 = scalar_select 0, %s16, %s14
  $region1: #{adaptformer_forward.1} parent=0
    #allocation2 [shape = 'u8[1024]{0}', space=vmem, size = 0x400, scoped, tag = 'output window, operand 0, single buffered']
    #allocation3 [shape = 's32[1]{0}', space=sflag, size = 0x4, scoped, tag = 'scoped memory for adaptformer_forward.1']
    %18 = vsyncpa [#allocation3], 0
    // Predicated region
    $region2: #{adaptformer_forward.1} parent=1 // pred_check
      _
    $region3: #{adaptformer_forward.1} parent=1 // pred_check_branch
      %20 = sbr.rel (0) target = $region5
    $region4: #{adaptformer_forward.1} parent=1 // pred_region
      _
    $region5: #{adaptformer_forward.1} parent=1 // pred_fallthru
      _
    // Predicated region
    $region6: #{adaptformer_forward.1} parent=1 // pred_check
      _
    $region7: #{adaptformer_forward.1} parent=1 // pred_check_branch
      %22 = sbr.rel (0) target = $region9
    $region8: #{adaptformer_forward.1} parent=1 // pred_region
      _
    $region9: #{adaptformer_forward.1} parent=1 // pred_fallthru
      _
    // Predicated region
    $region10: #{adaptformer_forward.1} parent=1 // pred_check
      _
    $region11: #{adaptformer_forward.1} parent=1 // pred_check_branch
      %24 = sbr.rel (0) target = $region13
    $region12: #{adaptformer_forward.1} parent=1 // pred_region
      _
    $region13: #{adaptformer_forward.1} parent=1 // pred_fallthru
      _
    // Predicated region
    $region14: #{adaptformer_forward.1} parent=1 // pred_check
      _
    $region15: #{adaptformer_forward.1} parent=1 // pred_check_branch
      %26 = sbr.rel (0) target = $region17
    $region16: #{adaptformer_forward.1} parent=1 // pred_region
      _
    $region17: #{adaptformer_forward.1} parent=1 // pred_fallthru
      _
    // Predicated region
    $region18: #{adaptformer_forward.1} parent=1 // pred_check
      _
    $region19: #{adaptformer_forward.1} parent=1 // pred_check_branch
      %28 = sbr.rel (0) target = $region21
    $region20: #{adaptformer_forward.1} parent=1 // pred_region
      _
    $region21: #{adaptformer_forward.1} parent=1 // pred_fallthru
      _
    // Predicated region
    $region22: #{adaptformer_forward.1} parent=1 // pred_check
      _
    $region23: #{adaptformer_forward.1} parent=1 // pred_check_branch
      %30 = sbr.rel (0) target = $region25
    $region24: #{adaptformer_forward.1} parent=1 // pred_region
      _
    $region25: #{adaptformer_forward.1} parent=1 // pred_fallthru
      _
    // Predicated region
    $region26: #{adaptformer_forward.1} parent=1 // pred_check
      _
    $region27: #{adaptformer_forward.1} parent=1 // pred_check_branch
      %32 = sbr.rel (0) target = $region29
    $region28: #{adaptformer_forward.1} parent=1 // pred_region
      _
    $region29: #{adaptformer_forward.1} parent=1 // pred_fallthru
      _
    // Predicated region
    $region30: #{adaptformer_forward.1} parent=1 // pred_check
      _
    $region31: #{adaptformer_forward.1} parent=1 // pred_check_branch
      %34 = sbr.rel (0) target = $region33
    $region32: #{adaptformer_forward.1} parent=1 // pred_region
      _
    $region33: #{adaptformer_forward.1} parent=1 // pred_fallthru
      _
    // Predicated region
    $region34: #{adaptformer_forward.1} parent=1 // pred_check
      _
    $region35: #{adaptformer_forward.1} parent=1 // pred_check_branch
      %36 = sbr.rel (0) target = $region37
    $region36: #{adaptformer_forward.1} parent=1 // pred_region
      _
    $region37: #{adaptformer_forward.1} parent=1 // pred_fallthru
      _
    // Predicated region
    $region38: #{adaptformer_forward.1} parent=1 // pred_check
      _
    $region39: #{adaptformer_forward.1} parent=1 // pred_check_branch
      %38 = sbr.rel (0) target = $region41
    $region40: #{adaptformer_forward.1} parent=1 // pred_region
      _
    $region41: #{adaptformer_forward.1} parent=1 // pred_fallthru
      _
    // Predicated region
    $region42: #{adaptformer_forward.1} parent=1 // pred_check
      _
    $region43: #{adaptformer_forward.1} parent=1 // pred_check_branch
      %40 = sbr.rel (0) target = $region45
    $region44: #{adaptformer_forward.1} parent=1 // pred_region
      _
    $region45: #{adaptformer_forward.1} parent=1 // pred_fallthru
      _
    // Predicated region
    $region46: #{adaptformer_forward.1} parent=1 // pred_check
      _
    $region47: #{adaptformer_forward.1} parent=1 // pred_check_branch
      %42 = sbr.rel (0) target = $region49
    $region48: #{adaptformer_forward.1} parent=1 // pred_region
      _
    $region49: #{adaptformer_forward.1} parent=1 // pred_fallthru
      _
    // Predicated region
    $region50: #{adaptformer_forward.1} parent=1 // pred_check
      _
    $region51: #{adaptformer_forward.1} parent=1 // pred_check_branch
      %44 = sbr.rel (0) target = $region53
    $region52: #{adaptformer_forward.1} parent=1 // pred_region
      _
    $region53: #{adaptformer_forward.1} parent=1 // pred_fallthru
      _
    %v45 = vld [vmem:[%s0] sm:$0xff]
    %v46 = vld [vmem:[%s0 + $0x8] sm:$0xff]
    %v47 = vld [vmem:[%s0 + $0x10] sm:$0xff]
    %v48 = vld [vmem:[%s0 + $0x18] sm:$0xff]
    %v49 = vld [vmem:[%s0 + $0x20] sm:$0xff]
    %v50 = vld [vmem:[%s0 + $0x28] sm:$0xff]
    %v51 = vld [vmem:[%s0 + $0x30] sm:$0x3]
    %v52 = vld [vmem:[%s0 + $0x38] sm:$0x3]
    %v53 = vld [vmem:[%s0 + $0x40] sm:$0x3]
    %v54 = vld [vmem:[%s1] sm:$0xff]
    %v55 = vld [vmem:[%s1 + $0x8] sm:$0xff]
    %v56 = vld [vmem:[%s1 + $0x10] sm:$0xff]
    %v57 = vld [vmem:[%s1 + $0x18] sm:$0xff]
    %v58 = vld [vmem:[%s1 + $0x20] sm:$0xff]
    %v59 = vld [vmem:[%s1 + $0x28] sm:$0xff]
    %v60 = vld [vmem:[%s1 + $0x30] sm:$0xff]
    %v61 = vld [vmem:[%s1 + $0x38] sm:$0xff]
    %v62 = vld [vmem:[%s1 + $0x40] sm:$0xff]
    %v63 = vld [vmem:[%s1 + $0x48] sm:$0xff]
    %v64 = vld [vmem:[%s1 + $0x50] sm:$0xff]
    %v65 = vld [vmem:[%s1 + $0x58] sm:$0xff]
    %v66 = vld [vmem:[%s1 + $0x60] sm:$0xff]
    %v67 = vld [vmem:[%s1 + $0x68] sm:$0xff]
    %v68 = vld [vmem:[%s1 + $0x70] sm:$0xff]
    %v69 = vld [vmem:[%s1 + $0x78] sm:$0xff]
    %v70 = vld [vmem:[%s1 + $0x80] sm:$0xff]
    %v71 = vld [vmem:[%s1 + $0x88] sm:$0xff]
    %v72 = vld [vmem:[%s1 + $0x90] sm:$0xff]
    %v73 = vld [vmem:[%s1 + $0x98] sm:$0xff]
    %v74 = vld [vmem:[%s1 + $0xa0] sm:$0xff]
    %v75 = vld [vmem:[%s1 + $0xa8] sm:$0xff]
    %v76 = vld [vmem:[%s1 + $0xb0] sm:$0xff]
    %v77 = vld [vmem:[%s1 + $0xb8] sm:$0xff]
    %v78 = vld [vmem:[%s1 + $0xc0] sm:$0xff]
    %v79 = vld [vmem:[%s1 + $0xc8] sm:$0xff]
    %v80 = vld [vmem:[%s1 + $0xd0] sm:$0xff]
    %v81 = vld [vmem:[%s1 + $0xd8] sm:$0xff]
    %v82 = vld [vmem:[%s1 + $0xe0] sm:$0xff]
    %v83 = vld [vmem:[%s1 + $0xe8] sm:$0xff]
    %v84 = vld [vmem:[%s1 + $0xf0] sm:$0xff]
    %v85 = vld [vmem:[%s1 + $0xf8] sm:$0xff]
    %v86 = vld [vmem:[%s1 + $0x100] sm:$0xff]
    %v87 = vld [vmem:[%s1 + $0x108] sm:$0xff]
    %v88 = vld [vmem:[%s1 + $0x110] sm:$0xff]
    %v89 = vld [vmem:[%s1 + $0x118] sm:$0xff]
    %v90 = vld [vmem:[%s1 + $0x120] sm:$0xff]
    %v91 = vld [vmem:[%s1 + $0x128] sm:$0xff]
    %v92 = vld [vmem:[%s1 + $0x130] sm:$0xff]
    %v93 = vld [vmem:[%s1 + $0x138] sm:$0xff]
    %v94 = vld [vmem:[%s1 + $0x140] sm:$0xff]
    %v95 = vld [vmem:[%s1 + $0x148] sm:$0xff]
    %v96 = vld [vmem:[%s1 + $0x150] sm:$0xff]
    %v97 = vld [vmem:[%s1 + $0x158] sm:$0xff]
    %v98 = vld [vmem:[%s1 + $0x160] sm:$0xff]
    %v99 = vld [vmem:[%s1 + $0x168] sm:$0xff]
    %v100 = vld [vmem:[%s1 + $0x170] sm:$0xff]
    %v101 = vld [vmem:[%s1 + $0x178] sm:$0xff]
    %v102 = vld [vmem:[%s2] sm:$0xff]
    %v103 = vld [vmem:[%s2 + $0x8] sm:$0xff]
    %v104 = vld [vmem:[%s2 + $0x10] sm:$0x3]
    %105 = vmatprep.subr.mxu0 0.0
    %106 = vmatpush1.msra.mxu0 %v54
    %107 = vmatprep.subr.mxu0 0.0
    %108 = vmatpush1.msra.mxu0 %v55
    %109 = vmatprep.subr.mxu0 0.0
    %110 = vmatpush1.msra.mxu0 %v56
    %111 = vmatprep.subr.mxu0 0.0
    %112 = vmatpush1.msra.mxu0 %v57
    %113 = vmatprep.subr.mxu0 0.0
    %114 = vmatpush1.msra.mxu0 %v58
    %115 = vmatprep.subr.mxu0 0.0
    %116 = vmatpush1.msra.mxu0 %v59
    %117 = vmatprep.subr.mxu0 0.0
    %118 = vmatpush1.msra.mxu0 %v60
    %119 = vmatprep.subr.mxu0 0.0
    %120 = vmatpush1.msra.mxu0 %v61
    %121 = vmatprep.subr.mxu0 0.0
    %122 = vmatpush1.msra.mxu0 %v62
    %123 = vmatprep.subr.mxu0 0.0
    %124 = vmatpush1.msra.mxu0 %v63
    %125 = vmatprep.subr.mxu0 0.0
    %126 = vmatpush1.msra.mxu0 %v64
    %127 = vmatprep.subr.mxu0 0.0
    %128 = vmatpush1.msra.mxu0 %v65
    %129 = vmatprep.subr.mxu0 0.0
    %130 = vmatpush1.msra.mxu0 %v66
    %131 = vmatprep.subr.mxu0 0.0
    %132 = vmatpush1.msra.mxu0 %v67
    %133 = vmatprep.subr.mxu0 0.0
    %134 = vmatpush1.msra.mxu0 %v68
    %135 = vmatprep.subr.mxu0 0.0
    %136 = vmatpush1.msra.mxu0 %v69
    %137 = vmatprep.subr.mxu0 0.0
    %138 = vmatpush1.msra.mxu0 %v70
    %139 = vmatprep.subr.mxu0 0.0
    %140 = vmatpush1.msra.mxu0 %v71
    %141 = vmatprep.subr.mxu0 0.0
    %142 = vmatpush1.msra.mxu0 %v72
    %143 = vmatprep.subr.mxu0 0.0
    %144 = vmatpush1.msra.mxu0 %v73
    %145 = vmatprep.subr.mxu0 0.0
    %146 = vmatpush1.msra.mxu0 %v74
    %147 = vmatprep.subr.mxu0 0.0
    %148 = vmatpush1.msra.mxu0 %v75
    %149 = vmatprep.subr.mxu0 0.0
    %150 = vmatpush1.msra.mxu0 %v76
    %151 = vmatprep.subr.mxu0 0.0
    %152 = vmatpush1.msra.mxu0 %v77
    %153 = vmatprep.subr.mxu0 0.0
    %154 = vmatpush1.msra.mxu0 %v78
    %155 = vmatprep.subr.mxu0 0.0
    %156 = vmatpush1.msra.mxu0 %v79
    %157 = vmatprep.subr.mxu0 0.0
    %158 = vmatpush1.msra.mxu0 %v80
    %159 = vmatprep.subr.mxu0 0.0
    %160 = vmatpush1.msra.mxu0 %v81
    %161 = vmatprep.subr.mxu0 0.0
    %162 = vmatpush1.msra.mxu0 %v82
    %163 = vmatprep.subr.mxu0 0.0
    %164 = vmatpush1.msra.mxu0 %v83
    %165 = vmatprep.subr.mxu0 0.0
    %166 = vmatpush1.msra.mxu0 %v84
    %167 = vmatprep.subr.mxu0 0.0
    %168 = vmatpush1.msra.mxu0 %v85
    %169 = vmatprep.mubr.f32.mxu0 %v46
    %170 = vmatmul.mubr.f32.gmra.mrb[0].mxu0 %v45
    %v171 = vpop.f32.mrb[0].mxu0
    %v172 = vadd.f32 %v102, %v171
    %v173 = vpop.f32.mrb[0].mxu0
    %174 = vmatprep.mubr.f32.mxu0 %v49
    %175 = vmatmul.mubr.f32.gmra.mrb[0].mxu0 %v48
    %v176 = vpop.f32.mrb[0].mxu0
    %v177 = vadd.f32 %v103, %v176
    %v178 = vpop.f32.mrb[0].mxu0
    %179 = vmatprep.mubr.f32.mxu0 %v52
    %180 = vmatmul.mubr.f32.gmra.mrb[0].mxu0 %v51
    %v181 = vpop.f32.mrb[0].mxu0
    %v182 = vadd.f32 %v104, %v181
    %v183 = vpop.f32.mrb[0].mxu0
    %184 = vdwg.mxu0
    %185 = vmatprep.subr.mxu0 0.0
    %186 = vmatpush1.msra.mxu0 %v86
    %187 = vmatprep.subr.mxu0 0.0
    %188 = vmatpush1.msra.mxu0 %v87
    %189 = vmatprep.subr.mxu0 0.0
    %190 = vmatpush1.msra.mxu0 %v88
    %191 = vmatprep.subr.mxu0 0.0
    %192 = vmatpush1.msra.mxu0 %v89
    %193 = vmatprep.subr.mxu0 0.0
    %194 = vmatpush1.msra.mxu0 %v90
    %195 = vmatprep.subr.mxu0 0.0
    %196 = vmatpush1.msra.mxu0 %v91
    %197 = vmatprep.subr.mxu0 0.0
    %198 = vmatpush1.msra.mxu0 %v92
    %199 = vmatprep.subr.mxu0 0.0
    %200 = vmatpush1.msra.mxu0 %v93
    %201 = vmatprep.subr.mxu0 0.0
    %202 = vmatpush1.msra.mxu0 %v94
    %203 = vmatprep.subr.mxu0 0.0
    %204 = vmatpush1.msra.mxu0 %v95
    %205 = vmatprep.subr.mxu0 0.0
    %206 = vmatpush1.msra.mxu0 %v96
    %207 = vmatprep.subr.mxu0 0.0
    %208 = vmatpush1.msra.mxu0 %v97
    %209 = vmatprep.subr.mxu0 0.0
    %210 = vmatpush1.msra.mxu0 %v98
    %211 = vmatprep.subr.mxu0 0.0
    %212 = vmatpush1.msra.mxu0 %v99
    %213 = vmatprep.subr.mxu0 0.0
    %214 = vmatpush1.msra.mxu0 %v100
    %215 = vmatprep.subr.mxu0 0.0
    %216 = vmatpush1.msra.mxu0 %v101
    %217 = vmatprep.subr.mxu0 0.0
    %218 = vmatpush1.msra.mxu0 0.0
    %219 = vmatprep.subr.mxu0 0.0
    %220 = vmatpush1.msra.mxu0 0.0
    %221 = vmatprep.subr.mxu0 0.0
    %222 = vmatpush1.msra.mxu0 0.0
    %223 = vmatprep.subr.mxu0 0.0
    %224 = vmatpush1.msra.mxu0 0.0
    %225 = vmatprep.subr.mxu0 0.0
    %226 = vmatpush1.msra.mxu0 0.0
    %227 = vmatprep.subr.mxu0 0.0
    %228 = vmatpush1.msra.mxu0 0.0
    %229 = vmatprep.subr.mxu0 0.0
    %230 = vmatpush1.msra.mxu0 0.0
    %231 = vmatprep.subr.mxu0 0.0
    %232 = vmatpush1.msra.mxu0 0.0
    %233 = vmatprep.subr.mxu0 0.0
    %234 = vmatpush1.msra.mxu0 0.0
    %235 = vmatprep.subr.mxu0 0.0
    %236 = vmatpush1.msra.mxu0 0.0
    %237 = vmatprep.subr.mxu0 0.0
    %238 = vmatpush1.msra.mxu0 0.0
    %239 = vmatprep.subr.mxu0 0.0
    %240 = vmatpush1.msra.mxu0 0.0
    %241 = vmatprep.subr.mxu0 0.0
    %242 = vmatpush1.msra.mxu0 0.0
    %243 = vmatprep.subr.mxu0 0.0
    %244 = vmatpush1.msra.mxu0 0.0
    %245 = vmatprep.subr.mxu0 0.0
    %246 = vmatpush1.msra.mxu0 0.0
    %247 = vmatprep.subr.mxu0 0.0
    %248 = vmatpush1.msra.mxu0 0.0
    %249 = vmatprep.mubr.f32.mxu0 0.0
    %250 = vmatmul.mubr.f32.gmra.mrb[0].mxu0 %v47
    %v251 = vpop.f32.mrb[0].mxu0
    %v252 = vadd.f32 %v172, %v251
    %v253 = vpop.f32.mrb[0].mxu0
    %254 = vmatprep.mubr.f32.mxu0 0.0
    %255 = vmatmul.mubr.f32.gmra.mrb[0].mxu0 %v50
    %v256 = vpop.f32.mrb[0].mxu0
    %v257 = vadd.f32 %v177, %v256
    %v258 = vpop.f32.mrb[0].mxu0
    %259 = vmatprep.mubr.f32.mxu0 0.0
    %260 = vmatmul.mubr.f32.gmra.mrb[0].mxu0 %v53
    %v261 = vpop.f32.mrb[0].mxu0
    %v262 = vadd.f32 %v182, %v261
    %v263 = vpop.f32.mrb[0].mxu0
    %264 = vdwg.mxu0
    %vm265 = vcmask 261120
    %v266 = vsel %vm265, %v252, 0.0
    %267 = vadd.xlane.f32.xlu0 %v266
    %v268 = vpop.xlane.xlu0 %267
    %v269 = vsel %vm265, %v257, 0.0
    %270 = vadd.xlane.f32.xlu0 %v269
    %v271 = vpop.xlane.xlu0 %270
    %vm272 = vcmask 254976
    %v273 = vsel %vm272, %v262, 0.0
    %274 = vadd.xlane.f32.xlu0 %v273
    %v275 = vpop.xlane.xlu0 %274
    %v276 = vrcp.pop 32.0
    %v277 = vmul.f32 %v268, %v276
    %v278 = vmul.f32 %v271, %v276
    %v279 = vmul.f32 %v275, %v276
    %v280 = vsub.f32 %v252, %v277
    %v281 = vsub.f32 %v257, %v278
    %v282 = vsub.f32 %v262, %v279
    %v283 = vmul.f32 %v280, %v280
    %v284 = vmul.f32 %v281, %v281
    %v285 = vmul.f32 %v282, %v282
    %v286 = vsel %vm265, %v283, 0.0
    %287 = vadd.xlane.f32.xlu0 %v286
    %v288 = vpop.xlane.xlu0 %287
    %v289 = vsel %vm265, %v284, 0.0
    %290 = vadd.xlane.f32.xlu0 %v289
    %v291 = vpop.xlane.xlu0 %290
    %v292 = vsel %vm272, %v285, 0.0
    %293 = vadd.xlane.f32.xlu0 %v292
    %v294 = vpop.xlane.xlu0 %293
    %v295 = vmul.f32 %v288, %v276
    %v296 = vmul.f32 %v291, %v276
    %v297 = vmul.f32 %v294, %v276
    %v298 = vadd.f32 %v295, 1e-05
    %v299 = vadd.f32 %v296, 1e-05
    %v300 = vadd.f32 %v297, 1e-05
    %v301 = vrsqrt.pop %v298
    %v302 = vrsqrt.pop %v299
    %v303 = vrsqrt.pop %v300
    %v304 = vmul.f32 %v280, %v301
    %v305 = vmul.f32 %v281, %v302
    %v306 = vmul.f32 %v282, %v303
    %v307 = vld [vmem:[%s3] sm:$0xff]
    %v308 = vld [vmem:[%s3 + $0x8] sm:$0xff]
    %v309 = vld [vmem:[%s3 + $0x10] sm:$0xff]
    %v310 = vld [vmem:[%s3 + $0x18] sm:$0xff]
    %v311 = vld [vmem:[%s4] sm:$0x1]
    %v313 = vlaneseq
    %v314 = vshrl.u32 %v313, 7
    %v315 = vsub.s32 0, %v314
    %v316 = vrot.slane %v311, %v315
    %v319 = vsel %vm265, %v304, 0
    %v322 = vsel %vm265, %v305, 0
    %v325 = vsel %vm265, %v306, 0
    %327 = vmatprep.subr.mxu0 0.0
    %328 = vmatpush1.msra.mxu0 %v307
    %329 = vmatprep.subr.mxu0 0.0
    %330 = vmatpush1.msra.mxu0 %v308
    %331 = vmatprep.subr.mxu0 0.0
    %332 = vmatpush1.msra.mxu0 %v309
    %333 = vmatprep.subr.mxu0 0.0
    %334 = vmatpush1.msra.mxu0 %v310
    %335 = vmatprep.subr.mxu0 0.0
    %336 = vmatpush1.msra.mxu0 0.0
    %337 = vmatprep.subr.mxu0 0.0
    %338 = vmatpush1.msra.mxu0 0.0
    %339 = vmatprep.subr.mxu0 0.0
    %340 = vmatpush1.msra.mxu0 0.0
    %341 = vmatprep.subr.mxu0 0.0
    %342 = vmatpush1.msra.mxu0 0.0
    %343 = vmatprep.subr.mxu0 0.0
    %344 = vmatpush1.msra.mxu0 0.0
    %345 = vmatprep.subr.mxu0 0.0
    %346 = vmatpush1.msra.mxu0 0.0
    %347 = vmatprep.subr.mxu0 0.0
    %348 = vmatpush1.msra.mxu0 0.0
    %349 = vmatprep.subr.mxu0 0.0
    %350 = vmatpush1.msra.mxu0 0.0
    %351 = vmatprep.subr.mxu0 0.0
    %352 = vmatpush1.msra.mxu0 0.0
    %353 = vmatprep.subr.mxu0 0.0
    %354 = vmatpush1.msra.mxu0 0.0
    %355 = vmatprep.subr.mxu0 0.0
    %356 = vmatpush1.msra.mxu0 0.0
    %357 = vmatprep.subr.mxu0 0.0
    %358 = vmatpush1.msra.mxu0 0.0
    %359 = vmatprep.subr.mxu0 0.0
    %360 = vmatpush1.msra.mxu0 0.0
    %361 = vmatprep.subr.mxu0 0.0
    %362 = vmatpush1.msra.mxu0 0.0
    %363 = vmatprep.subr.mxu0 0.0
    %364 = vmatpush1.msra.mxu0 0.0
    %365 = vmatprep.subr.mxu0 0.0
    %366 = vmatpush1.msra.mxu0 0.0
    %367 = vmatprep.subr.mxu0 0.0
    %368 = vmatpush1.msra.mxu0 0.0
    %369 = vmatprep.subr.mxu0 0.0
    %370 = vmatpush1.msra.mxu0 0.0
    %371 = vmatprep.subr.mxu0 0.0
    %372 = vmatpush1.msra.mxu0 0.0
    %373 = vmatprep.subr.mxu0 0.0
    %374 = vmatpush1.msra.mxu0 0.0
    %375 = vmatprep.subr.mxu0 0.0
    %376 = vmatpush1.msra.mxu0 0.0
    %377 = vmatprep.subr.mxu0 0.0
    %378 = vmatpush1.msra.mxu0 0.0
    %379 = vmatprep.subr.mxu0 0.0
    %380 = vmatpush1.msra.mxu0 0.0
    %381 = vmatprep.subr.mxu0 0.0
    %382 = vmatpush1.msra.mxu0 0.0
    %383 = vmatprep.subr.mxu0 0.0
    %384 = vmatpush1.msra.mxu0 0.0
    %385 = vmatprep.subr.mxu0 0.0
    %386 = vmatpush1.msra.mxu0 0.0
    %387 = vmatprep.subr.mxu0 0.0
    %388 = vmatpush1.msra.mxu0 0.0
    %389 = vmatprep.subr.mxu0 0.0
    %390 = vmatpush1.msra.mxu0 0.0
    %391 = vmatprep.mubr.f32.mxu0 0.0
    %392 = vmatmul.mubr.f32.gmra.mrb[0].mxu0 %v319
    %v393 = vpop.f32.mrb[0].mxu0
    %v394 = vadd.f32 %v316, %v393
    %v395 = vpop.f32.mrb[0].mxu0
    %396 = vmatprep.mubr.f32.mxu0 0.0
    %397 = vmatmul.mubr.f32.gmra.mrb[0].mxu0 %v322
    %v398 = vpop.f32.mrb[0].mxu0
    %v399 = vadd.f32 %v316, %v398
    %v400 = vpop.f32.mrb[0].mxu0
    %401 = vmatprep.mubr.f32.mxu0 0.0
    %402 = vmatmul.mubr.f32.gmra.mrb[0].mxu0 %v325
    %v403 = vpop.f32.mrb[0].mxu0
    %v404 = vadd.f32 %v316, %v403
    %v405 = vpop.f32.mrb[0].mxu0
    %406 = vdwg.mxu0
    %v410 = vcombine.high %v394, %v394
    %v412 = vunpack.c.l.s4 1966171168
    %v413 = vunpack.c.0.s8 %v412
    %v414 = vlaneseq
    %v415 = vshrl.u32 %v414, 7
    %v416 = vsub.s32 %v413, %v415
    %v417 = vrot.slane %v394, %v416
    %v419 = vunpack.c.l.s4 1966171168
    %v420 = vunpack.c.0.s8 %v419
    %v421 = vlaneseq
    %v422 = vshrl.u32 %v421, 7
    %v423 = vsub.s32 %v420, %v422
    %v424 = vrot.slane %v410, %v423
    %v425 = vcombine.high %v417, %v417
    %v426 = vcombine.high %v424, %v424
    %v428 = vunpack.c.l.s4 1966171168
    %v429 = vunpack.c.0.s8 %v428
    %v430 = vlaneseq
    %v431 = vshrl.u32 %v430, 7
    %v432 = vsub.s32 %v429, %v431
    %v433 = vrot.slane %v417, %v432
    %v435 = vunpack.c.l.s4 1966171168
    %v436 = vunpack.c.0.s8 %v435
    %v437 = vlaneseq
    %v438 = vshrl.u32 %v437, 7
    %v439 = vsub.s32 %v436, %v438
    %v440 = vrot.slane %v424, %v439
    %v442 = vunpack.c.l.s4 1966171168
    %v443 = vunpack.c.0.s8 %v442
    %v444 = vlaneseq
    %v445 = vshrl.u32 %v444, 7
    %v446 = vsub.s32 %v443, %v445
    %v447 = vrot.slane %v425, %v446
    %v449 = vunpack.c.l.s4 1966171168
    %v450 = vunpack.c.0.s8 %v449
    %v451 = vlaneseq
    %v452 = vshrl.u32 %v451, 7
    %v453 = vsub.s32 %v450, %v452
    %v454 = vrot.slane %v426, %v453
    %v455 = vcombine.high %v433, %v433
    %v456 = vcombine.high %v440, %v440
    %v457 = vcombine.high %v447, %v447
    %v458 = vcombine.high %v454, %v454
    %v459 = vcombine.high %v399, %v399
    %v461 = vunpack.c.l.s4 1966171168
    %v462 = vunpack.c.0.s8 %v461
    %v463 = vlaneseq
    %v464 = vshrl.u32 %v463, 7
    %v465 = vsub.s32 %v462, %v464
    %v466 = vrot.slane %v399, %v465
    %v468 = vunpack.c.l.s4 1966171168
    %v469 = vunpack.c.0.s8 %v468
    %v470 = vlaneseq
    %v471 = vshrl.u32 %v470, 7
    %v472 = vsub.s32 %v469, %v471
    %v473 = vrot.slane %v459, %v472
    %v474 = vcombine.high %v466, %v466
    %v475 = vcombine.high %v473, %v473
    %v477 = vunpack.c.l.s4 1966171168
    %v478 = vunpack.c.0.s8 %v477
    %v479 = vlaneseq
    %v480 = vshrl.u32 %v479, 7
    %v481 = vsub.s32 %v478, %v480
    %v482 = vrot.slane %v466, %v481
    %v484 = vunpack.c.l.s4 1966171168
    %v485 = vunpack.c.0.s8 %v484
    %v486 = vlaneseq
    %v487 = vshrl.u32 %v486, 7
    %v488 = vsub.s32 %v485, %v487
    %v489 = vrot.slane %v473, %v488
    %v491 = vunpack.c.l.s4 1966171168
    %v492 = vunpack.c.0.s8 %v491
    %v493 = vlaneseq
    %v494 = vshrl.u32 %v493, 7
    %v495 = vsub.s32 %v492, %v494
    %v496 = vrot.slane %v474, %v495
    %v498 = vunpack.c.l.s4 1966171168
    %v499 = vunpack.c.0.s8 %v498
    %v500 = vlaneseq
    %v501 = vshrl.u32 %v500, 7
    %v502 = vsub.s32 %v499, %v501
    %v503 = vrot.slane %v475, %v502
    %v504 = vcombine.high %v482, %v482
    %v505 = vcombine.high %v489, %v489
    %v506 = vcombine.high %v496, %v496
    %v507 = vcombine.high %v503, %v503
    %v509 = vunpack.c.l.s4 1966171168
    %v510 = vunpack.c.0.s8 %v509
    %v511 = vlaneseq
    %v512 = vshrl.u32 %v511, 7
    %v513 = vsub.s32 %v510, %v512
    %v514 = vrot.slane %v404, %v513
    %v515 = vcombine.high %v514, %v514
    %v517 = vunpack.c.l.s4 1966171168
    %v518 = vunpack.c.0.s8 %v517
    %v519 = vlaneseq
    %v520 = vshrl.u32 %v519, 7
    %v521 = vsub.s32 %v518, %v520
    %v522 = vrot.slane %v514, %v521
    %v524 = vunpack.c.l.s4 1966171168
    %v525 = vunpack.c.0.s8 %v524
    %v526 = vlaneseq
    %v527 = vshrl.u32 %v526, 7
    %v528 = vsub.s32 %v525, %v527
    %v529 = vrot.slane %v515, %v528
    %v530 = vcombine.low %v433, %v447
    %v531 = vcombine.low %v455, %v457
    %v532 = vcombine.low %v440, %v454
    %v533 = vcombine.low %v456, %v458
    %v535 = vunpack.c.l.s4 1966171168
    %v536 = vunpack.c.0.s8 %v535
    %v537 = vlaneseq
    %v538 = vshrl.u32 %v537, 7
    %v539 = vsub.s32 %v536, %v538
    %v540 = vrot.slane %v530, %v539
    %v542 = vunpack.c.l.s4 1966171168
    %v543 = vunpack.c.0.s8 %v542
    %v544 = vlaneseq
    %v545 = vshrl.u32 %v544, 7
    %v546 = vsub.s32 %v543, %v545
    %v547 = vrot.slane %v531, %v546
    %v549 = vunpack.c.l.s4 1966171168
    %v550 = vunpack.c.0.s8 %v549
    %v551 = vlaneseq
    %v552 = vshrl.u32 %v551, 7
    %v553 = vsub.s32 %v550, %v552
    %v554 = vrot.slane %v532, %v553
    %v556 = vunpack.c.l.s4 1966171168
    %v557 = vunpack.c.0.s8 %v556
    %v558 = vlaneseq
    %v559 = vshrl.u32 %v558, 7
    %v560 = vsub.s32 %v557, %v559
    %v561 = vrot.slane %v533, %v560
    %v562 = vcombine.low %v540, %v547
    %v563 = vcombine.low %v554, %v561
    %v565 = vunpack.c.l.s4 1966171168
    %v566 = vunpack.c.0.s8 %v565
    %v567 = vlaneseq
    %v568 = vshrl.u32 %v567, 7
    %v569 = vsub.s32 %v566, %v568
    %v570 = vrot.slane %v562, %v569
    %v572 = vunpack.c.l.s4 1966171168
    %v573 = vunpack.c.0.s8 %v572
    %v574 = vlaneseq
    %v575 = vshrl.u32 %v574, 7
    %v576 = vsub.s32 %v573, %v575
    %v577 = vrot.slane %v563, %v576
    %v578 = vcombine.low %v570, %v577
    %v580 = vunpack.c.l.s4 1966171168
    %v581 = vunpack.c.0.s8 %v580
    %v582 = vlaneseq
    %v583 = vshrl.u32 %v582, 7
    %v584 = vsub.s32 %v581, %v583
    %v585 = vrot.slane %v482, %v584
    %v587 = vunpack.c.l.s4 1966171168
    %v588 = vunpack.c.0.s8 %v587
    %v589 = vlaneseq
    %v590 = vshrl.u32 %v589, 7
    %v591 = vsub.s32 %v588, %v590
    %v592 = vrot.slane %v585, %v591
    %593 = vrot.lane.b32.xlu0 %v578, 96
    %v594 = vpop.permute.xlu0 %593
    %595 = vrot.lane.b32.xlu0 %v592, 96
    %v596 = vpop.permute.xlu0 %595
    %vm597 = vcmask 130048
    %v598 = vsel %vm597, %v578, 0
    %v600 = vsel %vm597, %v592, 0
    %v602 = vsel %vm597, %v594, 0
    %v604 = vsel %vm597, %v596, 0
    %606 = vmatprep.subr.mxu0 0.0
    %607 = vmatpush1.xpose.msra.mxu0 %v602
    %608 = vmatprep.subr.mxu0 0.0
    %609 = vmatpush1.xpose.msra.mxu0 %v604
    %610 = vmatprep.subr.mxu0 0.0
    %611 = vmatpush1.xpose.msra.mxu0 0.0
    %612 = vmatprep.subr.mxu0 0.0
    %613 = vmatpush1.xpose.msra.mxu0 0.0
    %614 = vmatprep.subr.mxu0 0.0
    %615 = vmatpush1.xpose.msra.mxu0 0.0
    %616 = vmatprep.subr.mxu0 0.0
    %617 = vmatpush1.xpose.msra.mxu0 0.0
    %618 = vmatprep.subr.mxu0 0.0
    %619 = vmatpush1.xpose.msra.mxu0 0.0
    %620 = vmatprep.subr.mxu0 0.0
    %621 = vmatpush1.xpose.msra.mxu0 0.0
    %622 = vmatprep.subr.mxu0 0.0
    %623 = vmatpush1.xpose.msra.mxu0 0.0
    %624 = vmatprep.subr.mxu0 0.0
    %625 = vmatpush1.xpose.msra.mxu0 0.0
    %626 = vmatprep.subr.mxu0 0.0
    %627 = vmatpush1.xpose.msra.mxu0 0.0
    %628 = vmatprep.subr.mxu0 0.0
    %629 = vmatpush1.xpose.msra.mxu0 0.0
    %630 = vmatprep.subr.mxu0 0.0
    %631 = vmatpush1.xpose.msra.mxu0 0.0
    %632 = vmatprep.subr.mxu0 0.0
    %633 = vmatpush1.xpose.msra.mxu0 0.0
    %634 = vmatprep.subr.mxu0 0.0
    %635 = vmatpush1.xpose.msra.mxu0 0.0
    %636 = vmatprep.subr.mxu0 0.0
    %637 = vmatpush1.xpose.msra.mxu0 0.0
    %638 = vmatprep.subr.mxu0 0.0
    %639 = vmatpush1.xpose.msra.mxu0 0.0
    %640 = vmatprep.subr.mxu0 0.0
    %641 = vmatpush1.xpose.msra.mxu0 0.0
    %642 = vmatprep.subr.mxu0 0.0
    %643 = vmatpush1.xpose.msra.mxu0 0.0
    %644 = vmatprep.subr.mxu0 0.0
    %645 = vmatpush1.xpose.msra.mxu0 0.0
    %646 = vmatprep.subr.mxu0 0.0
    %647 = vmatpush1.xpose.msra.mxu0 0.0
    %648 = vmatprep.subr.mxu0 0.0
    %649 = vmatpush1.xpose.msra.mxu0 0.0
    %650 = vmatprep.subr.mxu0 0.0
    %651 = vmatpush1.xpose.msra.mxu0 0.0
    %652 = vmatprep.subr.mxu0 0.0
    %653 = vmatpush1.xpose.msra.mxu0 0.0
    %654 = vmatprep.subr.mxu0 0.0
    %655 = vmatpush1.xpose.msra.mxu0 0.0
    %656 = vmatprep.subr.mxu0 0.0
    %657 = vmatpush1.xpose.msra.mxu0 0.0
    %658 = vmatprep.subr.mxu0 0.0
    %659 = vmatpush1.xpose.msra.mxu0 0.0
    %660 = vmatprep.subr.mxu0 0.0
    %661 = vmatpush1.xpose.msra.mxu0 0.0
    %662 = vmatprep.subr.mxu0 0.0
    %663 = vmatpush1.xpose.msra.mxu0 0.0
    %664 = vmatprep.subr.mxu0 0.0
    %665 = vmatpush1.xpose.msra.mxu0 0.0
    %666 = vmatprep.subr.mxu0 0.0
    %667 = vmatpush1.xpose.msra.mxu0 0.0
    %668 = vmatprep.subr.mxu0 0.0
    %669 = vmatpush1.xpose.msra.mxu0 0.0
    %670 = vmatprep.mubr.f32.mxu0 0.0
    %671 = vmatmul.mubr.f32.gmra.mrb[0].mxu0 %v598
    %v672 = vpop.f32.mrb[0].mxu0
    %v673 = vadd.f32 0.0, %v672
    %v674 = vpop.f32.mrb[0].mxu0
    %675 = vmatprep.mubr.f32.mxu0 0.0
    %676 = vmatmul.mubr.f32.gmra.mrb[0].mxu0 %v600
    %v677 = vpop.f32.mrb[0].mxu0
    %v678 = vadd.f32 0.0, %v677
    %v679 = vpop.f32.mrb[0].mxu0
    %680 = vdwg.mxu0
    %v681 = vcombine.low %v496, %v504
    %v682 = vcombine.low %v506, %v489
    %v683 = vcombine.low %v503, %v505
    %v684 = vcombine.low %v507, %v522
    %v686 = vunpack.c.l.s4 1966171168
    %v687 = vunpack.c.0.s8 %v686
    %v688 = vlaneseq
    %v689 = vshrl.u32 %v688, 7
    %v690 = vsub.s32 %v687, %v689
    %v691 = vrot.slane %v681, %v690
    %v693 = vunpack.c.l.s4 1966171168
    %v694 = vunpack.c.0.s8 %v693
    %v695 = vlaneseq
    %v696 = vshrl.u32 %v695, 7
    %v697 = vsub.s32 %v694, %v696
    %v698 = vrot.slane %v682, %v697
    %v700 = vunpack.c.l.s4 1966171168
    %v701 = vunpack.c.0.s8 %v700
    %v702 = vlaneseq
    %v703 = vshrl.u32 %v702, 7
    %v704 = vsub.s32 %v701, %v703
    %v705 = vrot.slane %v683, %v704
    %v707 = vunpack.c.l.s4 1966171168
    %v708 = vunpack.c.0.s8 %v707
    %v709 = vlaneseq
    %v710 = vshrl.u32 %v709, 7
    %v711 = vsub.s32 %v708, %v710
    %v712 = vrot.slane %v684, %v711
    %v713 = vcombine.low %v691, %v698
    %v714 = vcombine.low %v705, %v712
    %v716 = vunpack.c.l.s4 1966171168
    %v717 = vunpack.c.0.s8 %v716
    %v718 = vlaneseq
    %v719 = vshrl.u32 %v718, 7
    %v720 = vsub.s32 %v717, %v719
    %v721 = vrot.slane %v713, %v720
    %v723 = vunpack.c.l.s4 1966171168
    %v724 = vunpack.c.0.s8 %v723
    %v725 = vlaneseq
    %v726 = vshrl.u32 %v725, 7
    %v727 = vsub.s32 %v724, %v726
    %v728 = vrot.slane %v714, %v727
    %v729 = vcombine.low %v721, %v728
    %v731 = vunpack.c.l.s4 1966171168
    %v732 = vunpack.c.0.s8 %v731
    %v733 = vlaneseq
    %v734 = vshrl.u32 %v733, 7
    %v735 = vsub.s32 %v732, %v734
    %v736 = vrot.slane %v529, %v735
    %v738 = vunpack.c.l.s4 1966171168
    %v739 = vunpack.c.0.s8 %v738
    %v740 = vlaneseq
    %v741 = vshrl.u32 %v740, 7
    %v742 = vsub.s32 %v739, %v741
    %v743 = vrot.slane %v736, %v742
    %744 = vrot.lane.b32.xlu0 %v729, 96
    %v745 = vpop.permute.xlu0 %744
    %746 = vrot.lane.b32.xlu0 %v743, 96
    %v747 = vpop.permute.xlu0 %746
    %v748 = vsel %vm597, %v729, 0
    %v750 = vsel %vm597, %v743, 0
    %v752 = vsel %vm597, %v745, 0
    %v754 = vsel %vm597, %v747, 0
    %756 = vmatprep.subr.mxu0 0.0
    %757 = vmatpush1.xpose.msra.mxu0 %v752
    %758 = vmatprep.subr.mxu0 0.0
    %759 = vmatpush1.xpose.msra.mxu0 %v754
    %760 = vmatprep.subr.mxu0 0.0
    %761 = vmatpush1.xpose.msra.mxu0 0.0
    %762 = vmatprep.subr.mxu0 0.0
    %763 = vmatpush1.xpose.msra.mxu0 0.0
    %764 = vmatprep.subr.mxu0 0.0
    %765 = vmatpush1.xpose.msra.mxu0 0.0
    %766 = vmatprep.subr.mxu0 0.0
    %767 = vmatpush1.xpose.msra.mxu0 0.0
    %768 = vmatprep.subr.mxu0 0.0
    %769 = vmatpush1.xpose.msra.mxu0 0.0
    %770 = vmatprep.subr.mxu0 0.0
    %771 = vmatpush1.xpose.msra.mxu0 0.0
    %772 = vmatprep.subr.mxu0 0.0
    %773 = vmatpush1.xpose.msra.mxu0 0.0
    %774 = vmatprep.subr.mxu0 0.0
    %775 = vmatpush1.xpose.msra.mxu0 0.0
    %776 = vmatprep.subr.mxu0 0.0
    %777 = vmatpush1.xpose.msra.mxu0 0.0
    %778 = vmatprep.subr.mxu0 0.0
    %779 = vmatpush1.xpose.msra.mxu0 0.0
    %780 = vmatprep.subr.mxu0 0.0
    %781 = vmatpush1.xpose.msra.mxu0 0.0
    %782 = vmatprep.subr.mxu0 0.0
    %783 = vmatpush1.xpose.msra.mxu0 0.0
    %784 = vmatprep.subr.mxu0 0.0
    %785 = vmatpush1.xpose.msra.mxu0 0.0
    %786 = vmatprep.subr.mxu0 0.0
    %787 = vmatpush1.xpose.msra.mxu0 0.0
    %788 = vmatprep.subr.mxu0 0.0
    %789 = vmatpush1.xpose.msra.mxu0 0.0
    %790 = vmatprep.subr.mxu0 0.0
    %791 = vmatpush1.xpose.msra.mxu0 0.0
    %792 = vmatprep.subr.mxu0 0.0
    %793 = vmatpush1.xpose.msra.mxu0 0.0
    %794 = vmatprep.subr.mxu0 0.0
    %795 = vmatpush1.xpose.msra.mxu0 0.0
    %796 = vmatprep.subr.mxu0 0.0
    %797 = vmatpush1.xpose.msra.mxu0 0.0
    %798 = vmatprep.subr.mxu0 0.0
    %799 = vmatpush1.xpose.msra.mxu0 0.0
    %800 = vmatprep.subr.mxu0 0.0
    %801 = vmatpush1.xpose.msra.mxu0 0.0
    %802 = vmatprep.subr.mxu0 0.0
    %803 = vmatpush1.xpose.msra.mxu0 0.0
    %804 = vmatprep.subr.mxu0 0.0
    %805 = vmatpush1.xpose.msra.mxu0 0.0
    %806 = vmatprep.subr.mxu0 0.0
    %807 = vmatpush1.xpose.msra.mxu0 0.0
    %808 = vmatprep.subr.mxu0 0.0
    %809 = vmatpush1.xpose.msra.mxu0 0.0
    %810 = vmatprep.subr.mxu0 0.0
    %811 = vmatpush1.xpose.msra.mxu0 0.0
    %812 = vmatprep.subr.mxu0 0.0
    %813 = vmatpush1.xpose.msra.mxu0 0.0
    %814 = vmatprep.subr.mxu0 0.0
    %815 = vmatpush1.xpose.msra.mxu0 0.0
    %816 = vmatprep.subr.mxu0 0.0
    %817 = vmatpush1.xpose.msra.mxu0 0.0
    %818 = vmatprep.subr.mxu0 0.0
    %819 = vmatpush1.xpose.msra.mxu0 0.0
    %820 = vmatprep.mubr.f32.mxu0 0.0
    %821 = vmatmul.mubr.f32.gmra.mrb[0].mxu0 %v748
    %v822 = vpop.f32.mrb[0].mxu0
    %v823 = vadd.f32 0.0, %v822
    %v824 = vpop.f32.mrb[0].mxu0
    %825 = vmatprep.mubr.f32.mxu0 0.0
    %826 = vmatmul.mubr.f32.gmra.mrb[0].mxu0 %v750
    %v827 = vpop.f32.mrb[0].mxu0
    %v828 = vadd.f32 0.0, %v827
    %v829 = vpop.f32.mrb[0].mxu0
    %830 = vdwg.mxu0
    %vm831 = vcmask 72704
    %v832 = vsel %vm831, %v673, -inf
    %833 = vmax.xlane.f32.xlu0 %v832
    %v834 = vpop.xlane.xlu0 %833
    %vm835 = vcmask 65536
    %v836 = vsel %vm835, %v678, -inf
    %837 = vmax.xlane.f32.xlu0 %v836
    %v838 = vpop.xlane.xlu0 %837
    %v839 = vsel %vm831, %v823, -inf
    %840 = vmax.xlane.f32.xlu0 %v839
    %v841 = vpop.xlane.xlu0 %840
    %v842 = vsel %vm835, %v828, -inf
    %843 = vmax.xlane.f32.xlu0 %v842
    %v844 = vpop.xlane.xlu0 %843
    %v845 = vsub.f32 %v673, %v834
    %v846 = vsub.f32 %v678, %v838
    %v847 = vsub.f32 %v823, %v841
    %v848 = vsub.f32 %v828, %v844
    %v849 = vmul.f32 %v845, 1.442695
    %v850 = vpow.pop %v849
    %v851 = vmul.f32 %v846, 1.442695
    %v852 = vpow.pop %v851
    %v853 = vmul.f32 %v847, 1.442695
    %v854 = vpow.pop %v853
    %v855 = vmul.f32 %v848, 1.442695
    %v856 = vpow.pop %v855
    %v857 = vsel %vm831, %v850, 0.0
    %858 = vadd.xlane.f32.xlu0 %v857
    %v859 = vpop.xlane.xlu0 %858
    %v860 = vsel %vm835, %v852, 0.0
    %861 = vadd.xlane.f32.xlu0 %v860
    %v862 = vpop.xlane.xlu0 %861
    %v863 = vsel %vm831, %v854, 0.0
    %864 = vadd.xlane.f32.xlu0 %v863
    %v865 = vpop.xlane.xlu0 %864
    %v866 = vsel %vm835, %v856, 0.0
    %867 = vadd.xlane.f32.xlu0 %v866
    %v868 = vpop.xlane.xlu0 %867
    %v869 = vrcp.pop %v859
    %v870 = vrcp.pop %v862
    %v871 = vrcp.pop %v865
    %v872 = vrcp.pop %v868
    %v873 = vmul.f32 %v850, %v869
    %v874 = vmul.f32 %v852, %v870
    %v875 = vmul.f32 %v854, %v871
    %v876 = vmul.f32 %v856, %v872
    %877 = vrot.lane.b32.xlu0 %v578, 64
    %v878 = vpop.permute.xlu0 %877
    %879 = vrot.lane.b32.xlu0 %v592, 64
    %v880 = vpop.permute.xlu0 %879
    %v883 = vsel %vm831, %v873, 0
    %v886 = vsel %vm831, %v874, 0
    %vm888 = vcmask 1040384
    %v889 = vsel %vm888, %v880, 0
    %891 = vmatprep.subr.mxu0 0.0
    %892 = vmatpush1.msra.mxu0 %v878
    %893 = vmatprep.subr.mxu0 0.0
    %894 = vmatpush1.msra.mxu0 %v889
    %895 = vmatprep.subr.mxu0 0.0
    %896 = vmatpush1.msra.mxu0 0.0
    %897 = vmatprep.subr.mxu0 0.0
    %898 = vmatpush1.msra.mxu0 0.0
    %899 = vmatprep.subr.mxu0 0.0
    %900 = vmatpush1.msra.mxu0 0.0
    %901 = vmatprep.subr.mxu0 0.0
    %902 = vmatpush1.msra.mxu0 0.0
    %903 = vmatprep.subr.mxu0 0.0
    %904 = vmatpush1.msra.mxu0 0.0
    %905 = vmatprep.subr.mxu0 0.0
    %906 = vmatpush1.msra.mxu0 0.0
    %907 = vmatprep.subr.mxu0 0.0
    %908 = vmatpush1.msra.mxu0 0.0
    %909 = vmatprep.subr.mxu0 0.0
    %910 = vmatpush1.msra.mxu0 0.0
    %911 = vmatprep.subr.mxu0 0.0
    %912 = vmatpush1.msra.mxu0 0.0
    %913 = vmatprep.subr.mxu0 0.0
    %914 = vmatpush1.msra.mxu0 0.0
    %915 = vmatprep.subr.mxu0 0.0
    %916 = vmatpush1.msra.mxu0 0.0
    %917 = vmatprep.subr.mxu0 0.0
    %918 = vmatpush1.msra.mxu0 0.0
    %919 = vmatprep.subr.mxu0 0.0
    %920 = vmatpush1.msra.mxu0 0.0
    %921 = vmatprep.subr.mxu0 0.0
    %922 = vmatpush1.msra.mxu0 0.0
    %923 = vmatprep.subr.mxu0 0.0
    %924 = vmatpush1.msra.mxu0 0.0
    %925 = vmatprep.subr.mxu0 0.0
    %926 = vmatpush1.msra.mxu0 0.0
    %927 = vmatprep.subr.mxu0 0.0
    %928 = vmatpush1.msra.mxu0 0.0
    %929 = vmatprep.subr.mxu0 0.0
    %930 = vmatpush1.msra.mxu0 0.0
    %931 = vmatprep.subr.mxu0 0.0
    %932 = vmatpush1.msra.mxu0 0.0
    %933 = vmatprep.subr.mxu0 0.0
    %934 = vmatpush1.msra.mxu0 0.0
    %935 = vmatprep.subr.mxu0 0.0
    %936 = vmatpush1.msra.mxu0 0.0
    %937 = vmatprep.subr.mxu0 0.0
    %938 = vmatpush1.msra.mxu0 0.0
    %939 = vmatprep.subr.mxu0 0.0
    %940 = vmatpush1.msra.mxu0 0.0
    %941 = vmatprep.subr.mxu0 0.0
    %942 = vmatpush1.msra.mxu0 0.0
    %943 = vmatprep.subr.mxu0 0.0
    %944 = vmatpush1.msra.mxu0 0.0
    %945 = vmatprep.subr.mxu0 0.0
    %946 = vmatpush1.msra.mxu0 0.0
    %947 = vmatprep.subr.mxu0 0.0
    %948 = vmatpush1.msra.mxu0 0.0
    %949 = vmatprep.subr.mxu0 0.0
    %950 = vmatpush1.msra.mxu0 0.0
    %951 = vmatprep.subr.mxu0 0.0
    %952 = vmatpush1.msra.mxu0 0.0
    %953 = vmatprep.subr.mxu0 0.0
    %954 = vmatpush1.msra.mxu0 0.0
    %955 = vmatprep.mubr.f32.mxu0 0.0
    %956 = vmatmul.mubr.f32.gmra.mrb[0].mxu0 %v883
    %v957 = vpop.f32.mrb[0].mxu0
    %v958 = vadd.f32 0.0, %v957
    %v959 = vpop.f32.mrb[0].mxu0
    %960 = vmatprep.mubr.f32.mxu0 0.0
    %961 = vmatmul.mubr.f32.gmra.mrb[0].mxu0 %v886
    %v962 = vpop.f32.mrb[0].mxu0
    %v963 = vadd.f32 0.0, %v962
    %v964 = vpop.f32.mrb[0].mxu0
    %965 = vdwg.mxu0
    %966 = vrot.lane.b32.xlu0 %v729, 64
    %v967 = vpop.permute.xlu0 %966
    %968 = vrot.lane.b32.xlu0 %v743, 64
    %v969 = vpop.permute.xlu0 %968
    %v972 = vsel %vm831, %v875, 0
    %v975 = vsel %vm831, %v876, 0
    %v977 = vsel %vm888, %v969, 0
    %979 = vmatprep.subr.mxu0 0.0
    %980 = vmatpush1.msra.mxu0 %v967
    %981 = vmatprep.subr.mxu0 0.0
    %982 = vmatpush1.msra.mxu0 %v977
    %983 = vmatprep.subr.mxu0 0.0
    %984 = vmatpush1.msra.mxu0 0.0
    %985 = vmatprep.subr.mxu0 0.0
    %986 = vmatpush1.msra.mxu0 0.0
    %987 = vmatprep.subr.mxu0 0.0
    %988 = vmatpush1.msra.mxu0 0.0
    %989 = vmatprep.subr.mxu0 0.0
    %990 = vmatpush1.msra.mxu0 0.0
    %991 = vmatprep.subr.mxu0 0.0
    %992 = vmatpush1.msra.mxu0 0.0
    %993 = vmatprep.subr.mxu0 0.0
    %994 = vmatpush1.msra.mxu0 0.0
    %995 = vmatprep.subr.mxu0 0.0
    %996 = vmatpush1.msra.mxu0 0.0
    %997 = vmatprep.subr.mxu0 0.0
    %998 = vmatpush1.msra.mxu0 0.0
    %999 = vmatprep.subr.mxu0 0.0
    %1000 = vmatpush1.msra.mxu0 0.0
    %1001 = vmatprep.subr.mxu0 0.0
    %1002 = vmatpush1.msra.mxu0 0.0
    %1003 = vmatprep.subr.mxu0 0.0
    %1004 = vmatpush1.msra.mxu0 0.0
    %1005 = vmatprep.subr.mxu0 0.0
    %1006 = vmatpush1.msra.mxu0 0.0
    %1007 = vmatprep.subr.mxu0 0.0
    %1008 = vmatpush1.msra.mxu0 0.0
    %1009 = vmatprep.subr.mxu0 0.0
    %1010 = vmatpush1.msra.mxu0 0.0
    %1011 = vmatprep.subr.mxu0 0.0
    %1012 = vmatpush1.msra.mxu0 0.0
    %1013 = vmatprep.subr.mxu0 0.0
    %1014 = vmatpush1.msra.mxu0 0.0
    %1015 = vmatprep.subr.mxu0 0.0
    %1016 = vmatpush1.msra.mxu0 0.0
    %1017 = vmatprep.subr.mxu0 0.0
    %1018 = vmatpush1.msra.mxu0 0.0
    %1019 = vmatprep.subr.mxu0 0.0
    %1020 = vmatpush1.msra.mxu0 0.0
    %1021 = vmatprep.subr.mxu0 0.0
    %1022 = vmatpush1.msra.mxu0 0.0
    %1023 = vmatprep.subr.mxu0 0.0
    %1024 = vmatpush1.msra.mxu0 0.0
    %1025 = vmatprep.subr.mxu0 0.0
    %1026 = vmatpush1.msra.mxu0 0.0
    %1027 = vmatprep.subr.mxu0 0.0
    %1028 = vmatpush1.msra.mxu0 0.0
    %1029 = vmatprep.subr.mxu0 0.0
    %1030 = vmatpush1.msra.mxu0 0.0
    %1031 = vmatprep.subr.mxu0 0.0
    %1032 = vmatpush1.msra.mxu0 0.0
    %1033 = vmatprep.subr.mxu0 0.0
    %1034 = vmatpush1.msra.mxu0 0.0
    %1035 = vmatprep.subr.mxu0 0.0
    %1036 = vmatpush1.msra.mxu0 0.0
    %1037 = vmatprep.subr.mxu0 0.0
    %1038 = vmatpush1.msra.mxu0 0.0
    %1039 = vmatprep.subr.mxu0 0.0
    %1040 = vmatpush1.msra.mxu0 0.0
    %1041 = vmatprep.subr.mxu0 0.0
    %1042 = vmatpush1.msra.mxu0 0.0
    %1043 = vmatprep.mubr.f32.mxu0 0.0
    %1044 = vmatmul.mubr.f32.gmra.mrb[0].mxu0 %v972
    %v1045 = vpop.f32.mrb[0].mxu0
    %v1046 = vadd.f32 0.0, %v1045
    %v1047 = vpop.f32.mrb[0].mxu0
    %1048 = vmatprep.mubr.f32.mxu0 0.0
    %1049 = vmatmul.mubr.f32.gmra.mrb[0].mxu0 %v975
    %v1050 = vpop.f32.mrb[0].mxu0
    %v1051 = vadd.f32 0.0, %v1050
    %v1052 = vpop.f32.mrb[0].mxu0
    %1053 = vdwg.mxu0
    %1054 = vrot.lane.b32.xlu0 %v578, 112
    %v1055 = vpop.permute.xlu0 %1054
    %1056 = vrot.lane.b32.xlu0 %v592, 112
    %v1057 = vpop.permute.xlu0 %1056
    %1058 = vrot.lane.b32.xlu0 %v578, 80
    %v1059 = vpop.permute.xlu0 %1058
    %1060 = vrot.lane.b32.xlu0 %v592, 80
    %v1061 = vpop.permute.xlu0 %1060
    %v1062 = vsel %vm597, %v1055, 0
    %v1064 = vsel %vm597, %v1057, 0
    %v1066 = vsel %vm597, %v1059, 0
    %v1068 = vsel %vm597, %v1061, 0
    %1070 = vmatprep.subr.mxu0 0.0
    %1071 = vmatpush1.xpose.msra.mxu0 %v1066
    %1072 = vmatprep.subr.mxu0 0.0
    %1073 = vmatpush1.xpose.msra.mxu0 %v1068
    %1074 = vmatprep.subr.mxu0 0.0
    %1075 = vmatpush1.xpose.msra.mxu0 0.0
    %1076 = vmatprep.subr.mxu0 0.0
    %1077 = vmatpush1.xpose.msra.mxu0 0.0
    %1078 = vmatprep.subr.mxu0 0.0
    %1079 = vmatpush1.xpose.msra.mxu0 0.0
    %1080 = vmatprep.subr.mxu0 0.0
    %1081 = vmatpush1.xpose.msra.mxu0 0.0
    %1082 = vmatprep.subr.mxu0 0.0
    %1083 = vmatpush1.xpose.msra.mxu0 0.0
    %1084 = vmatprep.subr.mxu0 0.0
    %1085 = vmatpush1.xpose.msra.mxu0 0.0
    %1086 = vmatprep.subr.mxu0 0.0
    %1087 = vmatpush1.xpose.msra.mxu0 0.0
    %1088 = vmatprep.subr.mxu0 0.0
    %1089 = vmatpush1.xpose.msra.mxu0 0.0
    %1090 = vmatprep.subr.mxu0 0.0
    %1091 = vmatpush1.xpose.msra.mxu0 0.0
    %1092 = vmatprep.subr.mxu0 0.0
    %1093 = vmatpush1.xpose.msra.mxu0 0.0
    %1094 = vmatprep.subr.mxu0 0.0
    %1095 = vmatpush1.xpose.msra.mxu0 0.0
    %1096 = vmatprep.subr.mxu0 0.0
    %1097 = vmatpush1.xpose.msra.mxu0 0.0
    %1098 = vmatprep.subr.mxu0 0.0
    %1099 = vmatpush1.xpose.msra.mxu0 0.0
    %1100 = vmatprep.subr.mxu0 0.0
    %1101 = vmatpush1.xpose.msra.mxu0 0.0
    %1102 = vmatprep.subr.mxu0 0.0
    %1103 = vmatpush1.xpose.msra.mxu0 0.0
    %1104 = vmatprep.subr.mxu0 0.0
    %1105 = vmatpush1.xpose.msra.mxu0 0.0
    %1106 = vmatprep.subr.mxu0 0.0
    %1107 = vmatpush1.xpose.msra.mxu0 0.0
    %1108 = vmatprep.subr.mxu0 0.0
    %1109 = vmatpush1.xpose.msra.mxu0 0.0
    %1110 = vmatprep.subr.mxu0 0.0
    %1111 = vmatpush1.xpose.msra.mxu0 0.0
    %1112 = vmatprep.subr.mxu0 0.0
    %1113 = vmatpush1.xpose.msra.mxu0 0.0
    %1114 = vmatprep.subr.mxu0 0.0
    %1115 = vmatpush1.xpose.msra.mxu0 0.0
    %1116 = vmatprep.subr.mxu0 0.0
    %1117 = vmatpush1.xpose.msra.mxu0 0.0
    %1118 = vmatprep.subr.mxu0 0.0
    %1119 = vmatpush1.xpose.msra.mxu0 0.0
    %1120 = vmatprep.subr.mxu0 0.0
    %1121 = vmatpush1.xpose.msra.mxu0 0.0
    %1122 = vmatprep.subr.mxu0 0.0
    %1123 = vmatpush1.xpose.msra.mxu0 0.0
    %1124 = vmatprep.subr.mxu0 0.0
    %1125 = vmatpush1.xpose.msra.mxu0 0.0
    %1126 = vmatprep.subr.mxu0 0.0
    %1127 = vmatpush1.xpose.msra.mxu0 0.0
    %1128 = vmatprep.subr.mxu0 0.0
    %1129 = vmatpush1.xpose.msra.mxu0 0.0
    %1130 = vmatprep.subr.mxu0 0.0
    %1131 = vmatpush1.xpose.msra.mxu0 0.0
    %1132 = vmatprep.subr.mxu0 0.0
    %1133 = vmatpush1.xpose.msra.mxu0 0.0
    %1134 = vmatprep.mubr.f32.mxu0 0.0
    %1135 = vmatmul.mubr.f32.gmra.mrb[0].mxu0 %v1062
    %v1136 = vpop.f32.mrb[0].mxu0
    %v1137 = vadd.f32 0.0, %v1136
    %v1138 = vpop.f32.mrb[0].mxu0
    %1139 = vmatprep.mubr.f32.mxu0 0.0
    %1140 = vmatmul.mubr.f32.gmra.mrb[0].mxu0 %v1064
    %v1141 = vpop.f32.mrb[0].mxu0
    %v1142 = vadd.f32 0.0, %v1141
    %v1143 = vpop.f32.mrb[0].mxu0
    %1144 = vdwg.mxu0
    %1145 = vrot.lane.b32.xlu0 %v729, 112
    %v1146 = vpop.permute.xlu0 %1145
    %1147 = vrot.lane.b32.xlu0 %v743, 112
    %v1148 = vpop.permute.xlu0 %1147
    %1149 = vrot.lane.b32.xlu0 %v729, 80
    %v1150 = vpop.permute.xlu0 %1149
    %1151 = vrot.lane.b32.xlu0 %v743, 80
    %v1152 = vpop.permute.xlu0 %1151
    %v1153 = vsel %vm597, %v1146, 0
    %v1155 = vsel %vm597, %v1148, 0
    %v1157 = vsel %vm597, %v1150, 0
    %v1159 = vsel %vm597, %v1152, 0
    %1161 = vmatprep.subr.mxu0 0.0
    %1162 = vmatpush1.xpose.msra.mxu0 %v1157
    %1163 = vmatprep.subr.mxu0 0.0
    %1164 = vmatpush1.xpose.msra.mxu0 %v1159
    %1165 = vmatprep.subr.mxu0 0.0
    %1166 = vmatpush1.xpose.msra.mxu0 0.0
    %1167 = vmatprep.subr.mxu0 0.0
    %1168 = vmatpush1.xpose.msra.mxu0 0.0
    %1169 = vmatprep.subr.mxu0 0.0
    %1170 = vmatpush1.xpose.msra.mxu0 0.0
    %1171 = vmatprep.subr.mxu0 0.0
    %1172 = vmatpush1.xpose.msra.mxu0 0.0
    %1173 = vmatprep.subr.mxu0 0.0
    %1174 = vmatpush1.xpose.msra.mxu0 0.0
    %1175 = vmatprep.subr.mxu0 0.0
    %1176 = vmatpush1.xpose.msra.mxu0 0.0
    %1177 = vmatprep.subr.mxu0 0.0
    %1178 = vmatpush1.xpose.msra.mxu0 0.0
    %1179 = vmatprep.subr.mxu0 0.0
    %1180 = vmatpush1.xpose.msra.mxu0 0.0
    %1181 = vmatprep.subr.mxu0 0.0
    %1182 = vmatpush1.xpose.msra.mxu0 0.0
    %1183 = vmatprep.subr.mxu0 0.0
    %1184 = vmatpush1.xpose.msra.mxu0 0.0
    %1185 = vmatprep.subr.mxu0 0.0
    %1186 = vmatpush1.xpose.msra.mxu0 0.0
    %1187 = vmatprep.subr.mxu0 0.0
    %1188 = vmatpush1.xpose.msra.mxu0 0.0
    %1189 = vmatprep.subr.mxu0 0.0
    %1190 = vmatpush1.xpose.msra.mxu0 0.0
    %1191 = vmatprep.subr.mxu0 0.0
    %1192 = vmatpush1.xpose.msra.mxu0 0.0
    %1193 = vmatprep.subr.mxu0 0.0
    %1194 = vmatpush1.xpose.msra.mxu0 0.0
    %1195 = vmatprep.subr.mxu0 0.0
    %1196 = vmatpush1.xpose.msra.mxu0 0.0
    %1197 = vmatprep.subr.mxu0 0.0
    %1198 = vmatpush1.xpose.msra.mxu0 0.0
    %1199 = vmatprep.subr.mxu0 0.0
    %1200 = vmatpush1.xpose.msra.mxu0 0.0
    %1201 = vmatprep.subr.mxu0 0.0
    %1202 = vmatpush1.xpose.msra.mxu0 0.0
    %1203 = vmatprep.subr.mxu0 0.0
    %1204 = vmatpush1.xpose.msra.mxu0 0.0
    %1205 = vmatprep.subr.mxu0 0.0
    %1206 = vmatpush1.xpose.msra.mxu0 0.0
    %1207 = vmatprep.subr.mxu0 0.0
    %1208 = vmatpush1.xpose.msra.mxu0 0.0
    %1209 = vmatprep.subr.mxu0 0.0
    %1210 = vmatpush1.xpose.msra.mxu0 0.0
    %1211 = vmatprep.subr.mxu0 0.0
    %1212 = vmatpush1.xpose.msra.mxu0 0.0
    %1213 = vmatprep.subr.mxu0 0.0
    %1214 = vmatpush1.xpose.msra.mxu0 0.0
    %1215 = vmatprep.subr.mxu0 0.0
    %1216 = vmatpush1.xpose.msra.mxu0 0.0
    %1217 = vmatprep.subr.mxu0 0.0
    %1218 = vmatpush1.xpose.msra.mxu0 0.0
    %1219 = vmatprep.subr.mxu0 0.0
    %1220 = vmatpush1.xpose.msra.mxu0 0.0
    %1221 = vmatprep.subr.mxu0 0.0
    %1222 = vmatpush1.xpose.msra.mxu0 0.0
    %1223 = vmatprep.subr.mxu0 0.0
    %1224 = vmatpush1.xpose.msra.mxu0 0.0
    %1225 = vmatprep.mubr.f32.mxu0 0.0
    %1226 = vmatmul.mubr.f32.gmra.mrb[0].mxu0 %v1153
    %v1227 = vpop.f32.mrb[0].mxu0
    %v1228 = vadd.f32 0.0, %v1227
    %v1229 = vpop.f32.mrb[0].mxu0
    %1230 = vmatprep.mubr.f32.mxu0 0.0
    %1231 = vmatmul.mubr.f32.gmra.mrb[0].mxu0 %v1155
    %v1232 = vpop.f32.mrb[0].mxu0
    %v1233 = vadd.f32 0.0, %v1232
    %v1234 = vpop.f32.mrb[0].mxu0
    %1235 = vdwg.mxu0
    %v1236 = vsel %vm831, %v1137, -inf
    %1237 = vmax.xlane.f32.xlu0 %v1236
    %v1238 = vpop.xlane.xlu0 %1237
    %v1239 = vsel %vm835, %v1142, -inf
    %1240 = vmax.xlane.f32.xlu0 %v1239
    %v1241 = vpop.xlane.xlu0 %1240
    %v1242 = vsel %vm831, %v1228, -inf
    %1243 = vmax.xlane.f32.xlu0 %v1242
    %v1244 = vpop.xlane.xlu0 %1243
    %v1245 = vsel %vm835, %v1233, -inf
    %1246 = vmax.xlane.f32.xlu0 %v1245
    %v1247 = vpop.xlane.xlu0 %1246
    %v1248 = vsub.f32 %v1137, %v1238
    %v1249 = vsub.f32 %v1142, %v1241
    %v1250 = vsub.f32 %v1228, %v1244
    %v1251 = vsub.f32 %v1233, %v1247
    %v1252 = vmul.f32 %v1248, 1.442695
    %v1253 = vpow.pop %v1252
    %v1254 = vmul.f32 %v1249, 1.442695
    %v1255 = vpow.pop %v1254
    %v1256 = vmul.f32 %v1250, 1.442695
    %v1257 = vpow.pop %v1256
    %v1258 = vmul.f32 %v1251, 1.442695
    %v1259 = vpow.pop %v1258
    %v1260 = vsel %vm831, %v1253, 0.0
    %1261 = vadd.xlane.f32.xlu0 %v1260
    %v1262 = vpop.xlane.xlu0 %1261
    %v1263 = vsel %vm835, %v1255, 0.0
    %1264 = vadd.xlane.f32.xlu0 %v1263
    %v1265 = vpop.xlane.xlu0 %1264
    %v1266 = vsel %vm831, %v1257, 0.0
    %1267 = vadd.xlane.f32.xlu0 %v1266
    %v1268 = vpop.xlane.xlu0 %1267
    %v1269 = vsel %vm835, %v1259, 0.0
    %1270 = vadd.xlane.f32.xlu0 %v1269
    %v1271 = vpop.xlane.xlu0 %1270
    %v1272 = vrcp.pop %v1262
    %v1273 = vrcp.pop %v1265
    %v1274 = vrcp.pop %v1268
    %v1275 = vrcp.pop %v1271
    %v1276 = vmul.f32 %v1253, %v1272
    %v1277 = vmul.f32 %v1255, %v1273
    %v1278 = vmul.f32 %v1257, %v1274
    %v1279 = vmul.f32 %v1259, %v1275
    %1280 = vrot.lane.b32.xlu0 %v578, 48
    %v1281 = vpop.permute.xlu0 %1280
    %1282 = vrot.lane.b32.xlu0 %v592, 48
    %v1283 = vpop.permute.xlu0 %1282
    %v1286 = vsel %vm831, %v1276, 0
    %v1289 = vsel %vm831, %v1277, 0
    %v1291 = vsel %vm888, %v1283, 0
    %1293 = vmatprep.subr.mxu0 0.0
    %1294 = vmatpush1.msra.mxu0 %v1281
    %1295 = vmatprep.subr.mxu0 0.0
    %1296 = vmatpush1.msra.mxu0 %v1291
    %1297 = vmatprep.subr.mxu0 0.0
    %1298 = vmatpush1.msra.mxu0 0.0
    %1299 = vmatprep.subr.mxu0 0.0
    %1300 = vmatpush1.msra.mxu0 0.0
    %1301 = vmatprep.subr.mxu0 0.0
    %1302 = vmatpush1.msra.mxu0 0.0
    %1303 = vmatprep.subr.mxu0 0.0
    %1304 = vmatpush1.msra.mxu0 0.0
    %1305 = vmatprep.subr.mxu0 0.0
    %1306 = vmatpush1.msra.mxu0 0.0
    %1307 = vmatprep.subr.mxu0 0.0
    %1308 = vmatpush1.msra.mxu0 0.0
    %1309 = vmatprep.subr.mxu0 0.0
    %1310 = vmatpush1.msra.mxu0 0.0
    %1311 = vmatprep.subr.mxu0 0.0
    %1312 = vmatpush1.msra.mxu0 0.0
    %1313 = vmatprep.subr.mxu0 0.0
    %1314 = vmatpush1.msra.mxu0 0.0
    %1315 = vmatprep.subr.mxu0 0.0
    %1316 = vmatpush1.msra.mxu0 0.0
    %1317 = vmatprep.subr.mxu0 0.0
    %1318 = vmatpush1.msra.mxu0 0.0
    %1319 = vmatprep.subr.mxu0 0.0
    %1320 = vmatpush1.msra.mxu0 0.0
    %1321 = vmatprep.subr.mxu0 0.0
    %1322 = vmatpush1.msra.mxu0 0.0
    %1323 = vmatprep.subr.mxu0 0.0
    %1324 = vmatpush1.msra.mxu0 0.0
    %1325 = vmatprep.subr.mxu0 0.0
    %1326 = vmatpush1.msra.mxu0 0.0
    %1327 = vmatprep.subr.mxu0 0.0
    %1328 = vmatpush1.msra.mxu0 0.0
    %1329 = vmatprep.subr.mxu0 0.0
    %1330 = vmatpush1.msra.mxu0 0.0
    %1331 = vmatprep.subr.mxu0 0.0
    %1332 = vmatpush1.msra.mxu0 0.0
    %1333 = vmatprep.subr.mxu0 0.0
    %1334 = vmatpush1.msra.mxu0 0.0
    %1335 = vmatprep.subr.mxu0 0.0
    %1336 = vmatpush1.msra.mxu0 0.0
    %1337 = vmatprep.subr.mxu0 0.0
    %1338 = vmatpush1.msra.mxu0 0.0
    %1339 = vmatprep.subr.mxu0 0.0
    %1340 = vmatpush1.msra.mxu0 0.0
    %1341 = vmatprep.subr.mxu0 0.0
    %1342 = vmatpush1.msra.mxu0 0.0
    %1343 = vmatprep.subr.mxu0 0.0
    %1344 = vmatpush1.msra.mxu0 0.0
    %1345 = vmatprep.subr.mxu0 0.0
    %1346 = vmatpush1.msra.mxu0 0.0
    %1347 = vmatprep.subr.mxu0 0.0
    %1348 = vmatpush1.msra.mxu0 0.0
    %1349 = vmatprep.subr.mxu0 0.0
    %1350 = vmatpush1.msra.mxu0 0.0
    %1351 = vmatprep.subr.mxu0 0.0
    %1352 = vmatpush1.msra.mxu0 0.0
    %1353 = vmatprep.subr.mxu0 0.0
    %1354 = vmatpush1.msra.mxu0 0.0
    %1355 = vmatprep.subr.mxu0 0.0
    %1356 = vmatpush1.msra.mxu0 0.0
    %1357 = vmatprep.mubr.f32.mxu0 0.0
    %1358 = vmatmul.mubr.f32.gmra.mrb[0].mxu0 %v1286
    %v1359 = vpop.f32.mrb[0].mxu0
    %v1360 = vadd.f32 0.0, %v1359
    %v1361 = vpop.f32.mrb[0].mxu0
    %1362 = vmatprep.mubr.f32.mxu0 0.0
    %1363 = vmatmul.mubr.f32.gmra.mrb[0].mxu0 %v1289
    %v1364 = vpop.f32.mrb[0].mxu0
    %v1365 = vadd.f32 0.0, %v1364
    %v1366 = vpop.f32.mrb[0].mxu0
    %1367 = vdwg.mxu0
    %1368 = vrot.lane.b32.xlu0 %v729, 48
    %v1369 = vpop.permute.xlu0 %1368
    %1370 = vrot.lane.b32.xlu0 %v743, 48
    %v1371 = vpop.permute.xlu0 %1370
    %v1374 = vsel %vm831, %v1278, 0
    %v1377 = vsel %vm831, %v1279, 0
    %v1379 = vsel %vm888, %v1371, 0
    %1381 = vmatprep.subr.mxu0 0.0
    %1382 = vmatpush1.msra.mxu0 %v1369
    %1383 = vmatprep.subr.mxu0 0.0
    %1384 = vmatpush1.msra.mxu0 %v1379
    %1385 = vmatprep.subr.mxu0 0.0
    %1386 = vmatpush1.msra.mxu0 0.0
    %1387 = vmatprep.subr.mxu0 0.0
    %1388 = vmatpush1.msra.mxu0 0.0
    %1389 = vmatprep.subr.mxu0 0.0
    %1390 = vmatpush1.msra.mxu0 0.0
    %1391 = vmatprep.subr.mxu0 0.0
    %1392 = vmatpush1.msra.mxu0 0.0
    %1393 = vmatprep.subr.mxu0 0.0
    %1394 = vmatpush1.msra.mxu0 0.0
    %1395 = vmatprep.subr.mxu0 0.0
    %1396 = vmatpush1.msra.mxu0 0.0
    %1397 = vmatprep.subr.mxu0 0.0
    %1398 = vmatpush1.msra.mxu0 0.0
    %1399 = vmatprep.subr.mxu0 0.0
    %1400 = vmatpush1.msra.mxu0 0.0
    %1401 = vmatprep.subr.mxu0 0.0
    %1402 = vmatpush1.msra.mxu0 0.0
    %1403 = vmatprep.subr.mxu0 0.0
    %1404 = vmatpush1.msra.mxu0 0.0
    %1405 = vmatprep.subr.mxu0 0.0
    %1406 = vmatpush1.msra.mxu0 0.0
    %1407 = vmatprep.subr.mxu0 0.0
    %1408 = vmatpush1.msra.mxu0 0.0
    %1409 = vmatprep.subr.mxu0 0.0
    %1410 = vmatpush1.msra.mxu0 0.0
    %1411 = vmatprep.subr.mxu0 0.0
    %1412 = vmatpush1.msra.mxu0 0.0
    %1413 = vmatprep.subr.mxu0 0.0
    %1414 = vmatpush1.msra.mxu0 0.0
    %1415 = vmatprep.subr.mxu0 0.0
    %1416 = vmatpush1.msra.mxu0 0.0
    %1417 = vmatprep.subr.mxu0 0.0
    %1418 = vmatpush1.msra.mxu0 0.0
    %1419 = vmatprep.subr.mxu0 0.0
    %1420 = vmatpush1.msra.mxu0 0.0
    %1421 = vmatprep.subr.mxu0 0.0
    %1422 = vmatpush1.msra.mxu0 0.0
    %1423 = vmatprep.subr.mxu0 0.0
    %1424 = vmatpush1.msra.mxu0 0.0
    %1425 = vmatprep.subr.mxu0 0.0
    %1426 = vmatpush1.msra.mxu0 0.0
    %1427 = vmatprep.subr.mxu0 0.0
    %1428 = vmatpush1.msra.mxu0 0.0
    %1429 = vmatprep.subr.mxu0 0.0
    %1430 = vmatpush1.msra.mxu0 0.0
    %1431 = vmatprep.subr.mxu0 0.0
    %1432 = vmatpush1.msra.mxu0 0.0
    %1433 = vmatprep.subr.mxu0 0.0
    %1434 = vmatpush1.msra.mxu0 0.0
    %1435 = vmatprep.subr.mxu0 0.0
    %1436 = vmatpush1.msra.mxu0 0.0
    %1437 = vmatprep.subr.mxu0 0.0
    %1438 = vmatpush1.msra.mxu0 0.0
    %1439 = vmatprep.subr.mxu0 0.0
    %1440 = vmatpush1.msra.mxu0 0.0
    %1441 = vmatprep.subr.mxu0 0.0
    %1442 = vmatpush1.msra.mxu0 0.0
    %1443 = vmatprep.subr.mxu0 0.0
    %1444 = vmatpush1.msra.mxu0 0.0
    %1445 = vmatprep.mubr.f32.mxu0 0.0
    %1446 = vmatmul.mubr.f32.gmra.mrb[0].mxu0 %v1374
    %v1447 = vpop.f32.mrb[0].mxu0
    %v1448 = vadd.f32 0.0, %v1447
    %v1449 = vpop.f32.mrb[0].mxu0
    %1450 = vmatprep.mubr.f32.mxu0 0.0
    %1451 = vmatmul.mubr.f32.gmra.mrb[0].mxu0 %v1377
    %v1452 = vpop.f32.mrb[0].mxu0
    %v1453 = vadd.f32 0.0, %v1452
    %v1454 = vpop.f32.mrb[0].mxu0
    %1455 = vdwg.mxu0
    %1460 = vrot.lane.b32.xlu0 %v1360, 16
    %v1461 = vpop.permute.xlu0 %1460
    %1462 = vrot.lane.b32.xlu0 %v1365, 16
    %v1463 = vpop.permute.xlu0 %1462
    %1464 = vrot.lane.b32.xlu0 %v1448, 16
    %v1465 = vpop.permute.xlu0 %1464
    %1466 = vrot.lane.b32.xlu0 %v1453, 16
    %v1467 = vpop.permute.xlu0 %1466
    %v1472 = vsel %vm597, %v958, %v1461
    %v1473 = vsel %vm597, %v963, %v1463
    %v1474 = vsel %vm597, %v1046, %v1465
    %v1475 = vsel %vm597, %v1051, %v1467
    %v1480 = vcombine.high %v1472, %v1472
    %v1482 = vunpack.c.l.s4 1966171168
    %v1483 = vunpack.c.0.s8 %v1482
    %v1484 = vlaneseq
    %v1485 = vshrl.u32 %v1484, 7
    %v1486 = vsub.s32 %v1483, %v1485
    %v1487 = vrot.slane %v1472, %v1486
    %v1489 = vunpack.c.l.s4 1966171168
    %v1490 = vunpack.c.0.s8 %v1489
    %v1491 = vlaneseq
    %v1492 = vshrl.u32 %v1491, 7
    %v1493 = vsub.s32 %v1490, %v1492
    %v1494 = vrot.slane %v1480, %v1493
    %v1495 = vcombine.high %v1487, %v1487
    %v1496 = vcombine.high %v1494, %v1494
    %v1498 = vunpack.c.l.s4 1966171168
    %v1499 = vunpack.c.0.s8 %v1498
    %v1500 = vlaneseq
    %v1501 = vshrl.u32 %v1500, 7
    %v1502 = vsub.s32 %v1499, %v1501
    %v1503 = vrot.slane %v1487, %v1502
    %v1505 = vunpack.c.l.s4 1966171168
    %v1506 = vunpack.c.0.s8 %v1505
    %v1507 = vlaneseq
    %v1508 = vshrl.u32 %v1507, 7
    %v1509 = vsub.s32 %v1506, %v1508
    %v1510 = vrot.slane %v1494, %v1509
    %v1512 = vunpack.c.l.s4 1966171168
    %v1513 = vunpack.c.0.s8 %v1512
    %v1514 = vlaneseq
    %v1515 = vshrl.u32 %v1514, 7
    %v1516 = vsub.s32 %v1513, %v1515
    %v1517 = vrot.slane %v1495, %v1516
    %v1519 = vunpack.c.l.s4 1966171168
    %v1520 = vunpack.c.0.s8 %v1519
    %v1521 = vlaneseq
    %v1522 = vshrl.u32 %v1521, 7
    %v1523 = vsub.s32 %v1520, %v1522
    %v1524 = vrot.slane %v1496, %v1523
    %v1525 = vcombine.high %v1503, %v1503
    %v1526 = vcombine.high %v1510, %v1510
    %v1527 = vcombine.high %v1517, %v1517
    %v1528 = vcombine.high %v1524, %v1524
    %v1530 = vunpack.c.l.s4 1966171168
    %v1531 = vunpack.c.0.s8 %v1530
    %v1532 = vlaneseq
    %v1533 = vshrl.u32 %v1532, 7
    %v1534 = vsub.s32 %v1531, %v1533
    %v1535 = vrot.slane %v1473, %v1534
    %v1537 = vunpack.c.l.s4 1966171168
    %v1538 = vunpack.c.0.s8 %v1537
    %v1539 = vlaneseq
    %v1540 = vshrl.u32 %v1539, 7
    %v1541 = vsub.s32 %v1538, %v1540
    %v1542 = vrot.slane %v1535, %v1541
    %v1543 = vcombine.high %v1474, %v1474
    %v1545 = vunpack.c.l.s4 1966171168
    %v1546 = vunpack.c.0.s8 %v1545
    %v1547 = vlaneseq
    %v1548 = vshrl.u32 %v1547, 7
    %v1549 = vsub.s32 %v1546, %v1548
    %v1550 = vrot.slane %v1474, %v1549
    %v1552 = vunpack.c.l.s4 1966171168
    %v1553 = vunpack.c.0.s8 %v1552
    %v1554 = vlaneseq
    %v1555 = vshrl.u32 %v1554, 7
    %v1556 = vsub.s32 %v1553, %v1555
    %v1557 = vrot.slane %v1543, %v1556
    %v1558 = vcombine.high %v1550, %v1550
    %v1559 = vcombine.high %v1557, %v1557
    %v1561 = vunpack.c.l.s4 1966171168
    %v1562 = vunpack.c.0.s8 %v1561
    %v1563 = vlaneseq
    %v1564 = vshrl.u32 %v1563, 7
    %v1565 = vsub.s32 %v1562, %v1564
    %v1566 = vrot.slane %v1550, %v1565
    %v1568 = vunpack.c.l.s4 1966171168
    %v1569 = vunpack.c.0.s8 %v1568
    %v1570 = vlaneseq
    %v1571 = vshrl.u32 %v1570, 7
    %v1572 = vsub.s32 %v1569, %v1571
    %v1573 = vrot.slane %v1557, %v1572
    %v1575 = vunpack.c.l.s4 1966171168
    %v1576 = vunpack.c.0.s8 %v1575
    %v1577 = vlaneseq
    %v1578 = vshrl.u32 %v1577, 7
    %v1579 = vsub.s32 %v1576, %v1578
    %v1580 = vrot.slane %v1558, %v1579
    %v1582 = vunpack.c.l.s4 1966171168
    %v1583 = vunpack.c.0.s8 %v1582
    %v1584 = vlaneseq
    %v1585 = vshrl.u32 %v1584, 7
    %v1586 = vsub.s32 %v1583, %v1585
    %v1587 = vrot.slane %v1559, %v1586
    %v1588 = vcombine.high %v1566, %v1566
    %v1589 = vcombine.high %v1573, %v1573
    %v1590 = vcombine.high %v1580, %v1580
    %v1591 = vcombine.high %v1587, %v1587
    %v1593 = vunpack.c.l.s4 1966171168
    %v1594 = vunpack.c.0.s8 %v1593
    %v1595 = vlaneseq
    %v1596 = vshrl.u32 %v1595, 7
    %v1597 = vsub.s32 %v1594, %v1596
    %v1598 = vrot.slane %v1475, %v1597
    %v1600 = vunpack.c.l.s4 1966171168
    %v1601 = vunpack.c.0.s8 %v1600
    %v1602 = vlaneseq
    %v1603 = vshrl.u32 %v1602, 7
    %v1604 = vsub.s32 %v1601, %v1603
    %v1605 = vrot.slane %v1598, %v1604
    %v1606 = vld [vmem:[%s5] sm:$0xff]
    %v1607 = vld [vmem:[%s5 + $0x8] sm:$0xff]
    %v1608 = vld [vmem:[%s5 + $0x10] sm:$0xff]
    %v1609 = vld [vmem:[%s5 + $0x18] sm:$0xff]
    %v1610 = vld [vmem:[%s6] sm:$0x1]
    %v1612 = vlaneseq
    %v1613 = vshrl.u32 %v1612, 7
    %v1614 = vsub.s32 0, %v1613
    %v1615 = vrot.slane %v1610, %v1614
    %v1617 = vcombine.low %v1503, %v1517
    %v1618 = vcombine.low %v1525, %v1527
    %v1619 = vcombine.low %v1510, %v1524
    %v1620 = vcombine.low %v1526, %v1528
    %v1622 = vunpack.c.l.s4 1966171168
    %v1623 = vunpack.c.0.s8 %v1622
    %v1624 = vlaneseq
    %v1625 = vshrl.u32 %v1624, 7
    %v1626 = vsub.s32 %v1623, %v1625
    %v1627 = vrot.slane %v1617, %v1626
    %v1629 = vunpack.c.l.s4 1966171168
    %v1630 = vunpack.c.0.s8 %v1629
    %v1631 = vlaneseq
    %v1632 = vshrl.u32 %v1631, 7
    %v1633 = vsub.s32 %v1630, %v1632
    %v1634 = vrot.slane %v1618, %v1633
    %v1636 = vunpack.c.l.s4 1966171168
    %v1637 = vunpack.c.0.s8 %v1636
    %v1638 = vlaneseq
    %v1639 = vshrl.u32 %v1638, 7
    %v1640 = vsub.s32 %v1637, %v1639
    %v1641 = vrot.slane %v1619, %v1640
    %v1643 = vunpack.c.l.s4 1966171168
    %v1644 = vunpack.c.0.s8 %v1643
    %v1645 = vlaneseq
    %v1646 = vshrl.u32 %v1645, 7
    %v1647 = vsub.s32 %v1644, %v1646
    %v1648 = vrot.slane %v1620, %v1647
    %v1649 = vcombine.low %v1627, %v1634
    %v1650 = vcombine.low %v1641, %v1648
    %v1652 = vunpack.c.l.s4 1966171168
    %v1653 = vunpack.c.0.s8 %v1652
    %v1654 = vlaneseq
    %v1655 = vshrl.u32 %v1654, 7
    %v1656 = vsub.s32 %v1653, %v1655
    %v1657 = vrot.slane %v1649, %v1656
    %v1659 = vunpack.c.l.s4 1966171168
    %v1660 = vunpack.c.0.s8 %v1659
    %v1661 = vlaneseq
    %v1662 = vshrl.u32 %v1661, 7
    %v1663 = vsub.s32 %v1660, %v1662
    %v1664 = vrot.slane %v1650, %v1663
    %v1665 = vcombine.low %v1657, %v1664
    %v1666 = vcombine.low %v1542, %v1566
    %v1667 = vcombine.low %v1580, %v1588
    %v1668 = vcombine.low %v1590, %v1573
    %v1669 = vcombine.low %v1587, %v1589
    %v1671 = vunpack.c.l.s4 1966171168
    %v1672 = vunpack.c.0.s8 %v1671
    %v1673 = vlaneseq
    %v1674 = vshrl.u32 %v1673, 7
    %v1675 = vsub.s32 %v1672, %v1674
    %v1676 = vrot.slane %v1666, %v1675
    %v1678 = vunpack.c.l.s4 1966171168
    %v1679 = vunpack.c.0.s8 %v1678
    %v1680 = vlaneseq
    %v1681 = vshrl.u32 %v1680, 7
    %v1682 = vsub.s32 %v1679, %v1681
    %v1683 = vrot.slane %v1667, %v1682
    %v1685 = vunpack.c.l.s4 1966171168
    %v1686 = vunpack.c.0.s8 %v1685
    %v1687 = vlaneseq
    %v1688 = vshrl.u32 %v1687, 7
    %v1689 = vsub.s32 %v1686, %v1688
    %v1690 = vrot.slane %v1668, %v1689
    %v1692 = vunpack.c.l.s4 1966171168
    %v1693 = vunpack.c.0.s8 %v1692
    %v1694 = vlaneseq
    %v1695 = vshrl.u32 %v1694, 7
    %v1696 = vsub.s32 %v1693, %v1695
    %v1697 = vrot.slane %v1669, %v1696
    %v1698 = vcombine.low %v1676, %v1683
    %v1699 = vcombine.low %v1690, %v1697
    %v1701 = vunpack.c.l.s4 1966171168
    %v1702 = vunpack.c.0.s8 %v1701
    %v1703 = vlaneseq
    %v1704 = vshrl.u32 %v1703, 7
    %v1705 = vsub.s32 %v1702, %v1704
    %v1706 = vrot.slane %v1698, %v1705
    %v1708 = vunpack.c.l.s4 1966171168
    %v1709 = vunpack.c.0.s8 %v1708
    %v1710 = vlaneseq
    %v1711 = vshrl.u32 %v1710, 7
    %v1712 = vsub.s32 %v1709, %v1711
    %v1713 = vrot.slane %v1699, %v1712
    %v1714 = vcombine.low %v1706, %v1713
    %v1715 = vcombine.low %v1591, %v1605
    %v1717 = vunpack.c.l.s4 1966171168
    %v1718 = vunpack.c.0.s8 %v1717
    %v1719 = vlaneseq
    %v1720 = vshrl.u32 %v1719, 7
    %v1721 = vsub.s32 %v1718, %v1720
    %v1722 = vrot.slane %v1715, %v1721
    %v1724 = vunpack.c.l.s4 1966171168
    %v1725 = vunpack.c.0.s8 %v1724
    %v1726 = vlaneseq
    %v1727 = vshrl.u32 %v1726, 7
    %v1728 = vsub.s32 %v1725, %v1727
    %v1729 = vrot.slane %v1722, %v1728
    %v1730 = vsel %vm265, %v1665, 0
    %v1732 = vsel %vm265, %v1714, 0
    %v1734 = vsel %vm265, %v1729, 0
    %1736 = vmatprep.subr.mxu0 0.0
    %1737 = vmatpush1.msra.mxu0 %v1606
    %1738 = vmatprep.subr.mxu0 0.0
    %1739 = vmatpush1.msra.mxu0 %v1607
    %1740 = vmatprep.subr.mxu0 0.0
    %1741 = vmatpush1.msra.mxu0 %v1608
    %1742 = vmatprep.subr.mxu0 0.0
    %1743 = vmatpush1.msra.mxu0 %v1609
    %1744 = vmatprep.subr.mxu0 0.0
    %1745 = vmatpush1.msra.mxu0 0.0
    %1746 = vmatprep.subr.mxu0 0.0
    %1747 = vmatpush1.msra.mxu0 0.0
    %1748 = vmatprep.subr.mxu0 0.0
    %1749 = vmatpush1.msra.mxu0 0.0
    %1750 = vmatprep.subr.mxu0 0.0
    %1751 = vmatpush1.msra.mxu0 0.0
    %1752 = vmatprep.subr.mxu0 0.0
    %1753 = vmatpush1.msra.mxu0 0.0
    %1754 = vmatprep.subr.mxu0 0.0
    %1755 = vmatpush1.msra.mxu0 0.0
    %1756 = vmatprep.subr.mxu0 0.0
    %1757 = vmatpush1.msra.mxu0 0.0
    %1758 = vmatprep.subr.mxu0 0.0
    %1759 = vmatpush1.msra.mxu0 0.0
    %1760 = vmatprep.subr.mxu0 0.0
    %1761 = vmatpush1.msra.mxu0 0.0
    %1762 = vmatprep.subr.mxu0 0.0
    %1763 = vmatpush1.msra.mxu0 0.0
    %1764 = vmatprep.subr.mxu0 0.0
    %1765 = vmatpush1.msra.mxu0 0.0
    %1766 = vmatprep.subr.mxu0 0.0
    %1767 = vmatpush1.msra.mxu0 0.0
    %1768 = vmatprep.subr.mxu0 0.0
    %1769 = vmatpush1.msra.mxu0 0.0
    %1770 = vmatprep.subr.mxu0 0.0
    %1771 = vmatpush1.msra.mxu0 0.0
    %1772 = vmatprep.subr.mxu0 0.0
    %1773 = vmatpush1.msra.mxu0 0.0
    %1774 = vmatprep.subr.mxu0 0.0
    %1775 = vmatpush1.msra.mxu0 0.0
    %1776 = vmatprep.subr.mxu0 0.0
    %1777 = vmatpush1.msra.mxu0 0.0
    %1778 = vmatprep.subr.mxu0 0.0
    %1779 = vmatpush1.msra.mxu0 0.0
    %1780 = vmatprep.subr.mxu0 0.0
    %1781 = vmatpush1.msra.mxu0 0.0
    %1782 = vmatprep.subr.mxu0 0.0
    %1783 = vmatpush1.msra.mxu0 0.0
    %1784 = vmatprep.subr.mxu0 0.0
    %1785 = vmatpush1.msra.mxu0 0.0
    %1786 = vmatprep.subr.mxu0 0.0
    %1787 = vmatpush1.msra.mxu0 0.0
    %1788 = vmatprep.subr.mxu0 0.0
    %1789 = vmatpush1.msra.mxu0 0.0
    %1790 = vmatprep.subr.mxu0 0.0
    %1791 = vmatpush1.msra.mxu0 0.0
    %1792 = vmatprep.subr.mxu0 0.0
    %1793 = vmatpush1.msra.mxu0 0.0
    %1794 = vmatprep.subr.mxu0 0.0
    %1795 = vmatpush1.msra.mxu0 0.0
    %1796 = vmatprep.subr.mxu0 0.0
    %1797 = vmatpush1.msra.mxu0 0.0
    %1798 = vmatprep.subr.mxu0 0.0
    %1799 = vmatpush1.msra.mxu0 0.0
    %1800 = vmatprep.mubr.f32.mxu0 0.0
    %1801 = vmatmul.mubr.f32.gmra.mrb[0].mxu0 %v1730
    %v1802 = vpop.f32.mrb[0].mxu0
    %v1803 = vadd.f32 %v1615, %v1802
    %v1804 = vpop.f32.mrb[0].mxu0
    %1805 = vmatprep.mubr.f32.mxu0 0.0
    %1806 = vmatmul.mubr.f32.gmra.mrb[0].mxu0 %v1732
    %v1807 = vpop.f32.mrb[0].mxu0
    %v1808 = vadd.f32 %v1615, %v1807
    %v1809 = vpop.f32.mrb[0].mxu0
    %1810 = vmatprep.mubr.f32.mxu0 0.0
    %1811 = vmatmul.mubr.f32.gmra.mrb[0].mxu0 %v1734
    %v1812 = vpop.f32.mrb[0].mxu0
    %v1813 = vadd.f32 %v1615, %v1812
    %v1814 = vpop.f32.mrb[0].mxu0
    %1815 = vdwg.mxu0
    %v1816 = vadd.f32 %v1803, %v252
    %v1817 = vadd.f32 %v1808, %v257
    %v1818 = vadd.f32 %v1813, %v262
    %v1819 = vsel %vm265, %v1816, 0.0
    %1820 = vadd.xlane.f32.xlu0 %v1819
    %v1821 = vpop.xlane.xlu0 %1820
    %v1822 = vsel %vm265, %v1817, 0.0
    %1823 = vadd.xlane.f32.xlu0 %v1822
    %v1824 = vpop.xlane.xlu0 %1823
    %v1825 = vsel %vm272, %v1818, 0.0
    %1826 = vadd.xlane.f32.xlu0 %v1825
    %v1827 = vpop.xlane.xlu0 %1826
    %v1828 = vmul.f32 %v1821, %v276
    %v1829 = vmul.f32 %v1824, %v276
    %v1830 = vmul.f32 %v1827, %v276
    %v1831 = vsub.f32 %v1816, %v1828
    %v1832 = vsub.f32 %v1817, %v1829
    %v1833 = vsub.f32 %v1818, %v1830
    %v1834 = vmul.f32 %v1831, %v1831
    %v1835 = vmul.f32 %v1832, %v1832
    %v1836 = vmul.f32 %v1833, %v1833
    %v1837 = vsel %vm265, %v1834, 0.0
    %1838 = vadd.xlane.f32.xlu0 %v1837
    %v1839 = vpop.xlane.xlu0 %1838
    %v1840 = vsel %vm265, %v1835, 0.0
    %1841 = vadd.xlane.f32.xlu0 %v1840
    %v1842 = vpop.xlane.xlu0 %1841
    %v1843 = vsel %vm272, %v1836, 0.0
    %1844 = vadd.xlane.f32.xlu0 %v1843
    %v1845 = vpop.xlane.xlu0 %1844
    %v1846 = vmul.f32 %v1839, %v276
    %v1847 = vmul.f32 %v1842, %v276
    %v1848 = vmul.f32 %v1845, %v276
    %v1849 = vadd.f32 %v1846, 1e-05
    %v1850 = vadd.f32 %v1847, 1e-05
    %v1851 = vadd.f32 %v1848, 1e-05
    %v1852 = vrsqrt.pop %v1849
    %v1853 = vrsqrt.pop %v1850
    %v1854 = vrsqrt.pop %v1851
    %v1855 = vmul.f32 %v1831, %v1852
    %v1856 = vmul.f32 %v1832, %v1853
    %v1857 = vmul.f32 %v1833, %v1854
    %v1858 = vld [vmem:[%s7] sm:$0xff]
    %v1859 = vld [vmem:[%s7 + $0x8] sm:$0xff]
    %v1860 = vld [vmem:[%s7 + $0x10] sm:$0xff]
    %v1861 = vld [vmem:[%s7 + $0x18] sm:$0xff]
    %v1862 = vld [vmem:[%s8] sm:$0x1]
    %v1864 = vlaneseq
    %v1865 = vshrl.u32 %v1864, 7
    %v1866 = vsub.s32 0, %v1865
    %v1867 = vrot.slane %v1862, %v1866
    %v1870 = vsel %vm265, %v1855, 0
    %v1873 = vsel %vm265, %v1856, 0
    %v1876 = vsel %vm265, %v1857, 0
    %1878 = vmatprep.subr.mxu0 0.0
    %1879 = vmatpush1.msra.mxu0 %v1858
    %1880 = vmatprep.subr.mxu0 0.0
    %1881 = vmatpush1.msra.mxu0 %v1859
    %1882 = vmatprep.subr.mxu0 0.0
    %1883 = vmatpush1.msra.mxu0 %v1860
    %1884 = vmatprep.subr.mxu0 0.0
    %1885 = vmatpush1.msra.mxu0 %v1861
    %1886 = vmatprep.subr.mxu0 0.0
    %1887 = vmatpush1.msra.mxu0 0.0
    %1888 = vmatprep.subr.mxu0 0.0
    %1889 = vmatpush1.msra.mxu0 0.0
    %1890 = vmatprep.subr.mxu0 0.0
    %1891 = vmatpush1.msra.mxu0 0.0
    %1892 = vmatprep.subr.mxu0 0.0
    %1893 = vmatpush1.msra.mxu0 0.0
    %1894 = vmatprep.subr.mxu0 0.0
    %1895 = vmatpush1.msra.mxu0 0.0
    %1896 = vmatprep.subr.mxu0 0.0
    %1897 = vmatpush1.msra.mxu0 0.0
    %1898 = vmatprep.subr.mxu0 0.0
    %1899 = vmatpush1.msra.mxu0 0.0
    %1900 = vmatprep.subr.mxu0 0.0
    %1901 = vmatpush1.msra.mxu0 0.0
    %1902 = vmatprep.subr.mxu0 0.0
    %1903 = vmatpush1.msra.mxu0 0.0
    %1904 = vmatprep.subr.mxu0 0.0
    %1905 = vmatpush1.msra.mxu0 0.0
    %1906 = vmatprep.subr.mxu0 0.0
    %1907 = vmatpush1.msra.mxu0 0.0
    %1908 = vmatprep.subr.mxu0 0.0
    %1909 = vmatpush1.msra.mxu0 0.0
    %1910 = vmatprep.subr.mxu0 0.0
    %1911 = vmatpush1.msra.mxu0 0.0
    %1912 = vmatprep.subr.mxu0 0.0
    %1913 = vmatpush1.msra.mxu0 0.0
    %1914 = vmatprep.subr.mxu0 0.0
    %1915 = vmatpush1.msra.mxu0 0.0
    %1916 = vmatprep.subr.mxu0 0.0
    %1917 = vmatpush1.msra.mxu0 0.0
    %1918 = vmatprep.subr.mxu0 0.0
    %1919 = vmatpush1.msra.mxu0 0.0
    %1920 = vmatprep.subr.mxu0 0.0
    %1921 = vmatpush1.msra.mxu0 0.0
    %1922 = vmatprep.subr.mxu0 0.0
    %1923 = vmatpush1.msra.mxu0 0.0
    %1924 = vmatprep.subr.mxu0 0.0
    %1925 = vmatpush1.msra.mxu0 0.0
    %1926 = vmatprep.subr.mxu0 0.0
    %1927 = vmatpush1.msra.mxu0 0.0
    %1928 = vmatprep.subr.mxu0 0.0
    %1929 = vmatpush1.msra.mxu0 0.0
    %1930 = vmatprep.subr.mxu0 0.0
    %1931 = vmatpush1.msra.mxu0 0.0
    %1932 = vmatprep.subr.mxu0 0.0
    %1933 = vmatpush1.msra.mxu0 0.0
    %1934 = vmatprep.subr.mxu0 0.0
    %1935 = vmatpush1.msra.mxu0 0.0
    %1936 = vmatprep.subr.mxu0 0.0
    %1937 = vmatpush1.msra.mxu0 0.0
    %1938 = vmatprep.subr.mxu0 0.0
    %1939 = vmatpush1.msra.mxu0 0.0
    %1940 = vmatprep.subr.mxu0 0.0
    %1941 = vmatpush1.msra.mxu0 0.0
    %1942 = vmatprep.mubr.f32.mxu0 0.0
    %1943 = vmatmul.mubr.f32.gmra.mrb[0].mxu0 %v1870
    %v1944 = vpop.f32.mrb[0].mxu0
    %v1945 = vadd.f32 %v1867, %v1944
    %v1946 = vpop.f32.mrb[0].mxu0
    %1947 = vmatprep.mubr.f32.mxu0 0.0
    %1948 = vmatmul.mubr.f32.gmra.mrb[0].mxu0 %v1873
    %v1949 = vpop.f32.mrb[0].mxu0
    %v1950 = vadd.f32 %v1867, %v1949
    %v1951 = vpop.f32.mrb[0].mxu0
    %1952 = vmatprep.mubr.f32.mxu0 0.0
    %1953 = vmatmul.mubr.f32.gmra.mrb[0].mxu0 %v1876
    %v1954 = vpop.f32.mrb[0].mxu0
    %v1955 = vadd.f32 %v1867, %v1954
    %v1956 = vpop.f32.mrb[0].mxu0
    %1957 = vdwg.mxu0
    %v1958 = vlaneseq
    %v1959 = vand.u32 %v1958, 127
    %vm1960 = vcmp.lt.s32.totalorder %v1959, 64
    %v1961 = vmul.f32 %v1945, 0.5
    %v1962 = vmul.f32 %v1950, 0.5
    %v1963 = vmul.f32 %v1955, 0.5
    %v1964 = vmul.f32 %v1945, 0.70710677
    %v1965 = vmul.f32 %v1950, 0.70710677
    %v1966 = vmul.f32 %v1955, 0.70710677
    %v1967 = verf.f32.pop %v1964
    %v1968 = verf.f32.pop %v1965
    %v1969 = verf.f32.pop %v1966
    %v1970 = vadd.f32 %v1967, 1.0
    %v1971 = vadd.f32 %v1968, 1.0
    %v1972 = vadd.f32 %v1969, 1.0
    %v1973 = vmul.f32 %v1961, %v1970
    %v1974 = vmul.f32 %v1962, %v1971
    %v1975 = vmul.f32 %v1963, %v1972
    %v1976 = vmax.f32 %v1945, 0.0
    %v1977 = vmax.f32 %v1950, 0.0
    %v1978 = vmax.f32 %v1955, 0.0
    %v1979 = vsel %vm1960, %v1973, %v1976
    %v1980 = vsel %vm1960, %v1974, %v1977
    %v1981 = vsel %vm1960, %v1975, %v1978
    %v1982 = vld [vmem:[%s9] sm:$0xff]
    %v1983 = vld [vmem:[%s9 + $0x8] sm:$0xff]
    %v1984 = vld [vmem:[%s9 + $0x10] sm:$0xff]
    %v1985 = vld [vmem:[%s9 + $0x18] sm:$0xff]
    %v1986 = vld [vmem:[%s9 + $0x20] sm:$0xff]
    %v1987 = vld [vmem:[%s9 + $0x28] sm:$0xff]
    %v1988 = vld [vmem:[%s9 + $0x30] sm:$0xff]
    %v1989 = vld [vmem:[%s9 + $0x38] sm:$0xff]
    %v1990 = vld [vmem:[%s9 + $0x40] sm:$0xff]
    %v1991 = vld [vmem:[%s9 + $0x48] sm:$0xff]
    %v1992 = vld [vmem:[%s9 + $0x50] sm:$0xff]
    %v1993 = vld [vmem:[%s9 + $0x58] sm:$0xff]
    %v1994 = vld [vmem:[%s9 + $0x60] sm:$0xff]
    %v1995 = vld [vmem:[%s9 + $0x68] sm:$0xff]
    %v1996 = vld [vmem:[%s9 + $0x70] sm:$0xff]
    %v1997 = vld [vmem:[%s9 + $0x78] sm:$0xff]
    %v1998 = vld [vmem:[%s10] sm:$0x1]
    %v2000 = vlaneseq
    %v2001 = vshrl.u32 %v2000, 7
    %v2002 = vsub.s32 0, %v2001
    %v2003 = vrot.slane %v1998, %v2002
    %2005 = vmatprep.subr.mxu0 0.0
    %2006 = vmatpush1.msra.mxu0 %v1982
    %2007 = vmatprep.subr.mxu0 0.0
    %2008 = vmatpush1.msra.mxu0 %v1983
    %2009 = vmatprep.subr.mxu0 0.0
    %2010 = vmatpush1.msra.mxu0 %v1984
    %2011 = vmatprep.subr.mxu0 0.0
    %2012 = vmatpush1.msra.mxu0 %v1985
    %2013 = vmatprep.subr.mxu0 0.0
    %2014 = vmatpush1.msra.mxu0 %v1986
    %2015 = vmatprep.subr.mxu0 0.0
    %2016 = vmatpush1.msra.mxu0 %v1987
    %2017 = vmatprep.subr.mxu0 0.0
    %2018 = vmatpush1.msra.mxu0 %v1988
    %2019 = vmatprep.subr.mxu0 0.0
    %2020 = vmatpush1.msra.mxu0 %v1989
    %2021 = vmatprep.subr.mxu0 0.0
    %2022 = vmatpush1.msra.mxu0 %v1990
    %2023 = vmatprep.subr.mxu0 0.0
    %2024 = vmatpush1.msra.mxu0 %v1991
    %2025 = vmatprep.subr.mxu0 0.0
    %2026 = vmatpush1.msra.mxu0 %v1992
    %2027 = vmatprep.subr.mxu0 0.0
    %2028 = vmatpush1.msra.mxu0 %v1993
    %2029 = vmatprep.subr.mxu0 0.0
    %2030 = vmatpush1.msra.mxu0 %v1994
    %2031 = vmatprep.subr.mxu0 0.0
    %2032 = vmatpush1.msra.mxu0 %v1995
    %2033 = vmatprep.subr.mxu0 0.0
    %2034 = vmatpush1.msra.mxu0 %v1996
    %2035 = vmatprep.subr.mxu0 0.0
    %2036 = vmatpush1.msra.mxu0 %v1997
    %2037 = vmatprep.subr.mxu0 0.0
    %2038 = vmatpush1.msra.mxu0 0.0
    %2039 = vmatprep.subr.mxu0 0.0
    %2040 = vmatpush1.msra.mxu0 0.0
    %2041 = vmatprep.subr.mxu0 0.0
    %2042 = vmatpush1.msra.mxu0 0.0
    %2043 = vmatprep.subr.mxu0 0.0
    %2044 = vmatpush1.msra.mxu0 0.0
    %2045 = vmatprep.subr.mxu0 0.0
    %2046 = vmatpush1.msra.mxu0 0.0
    %2047 = vmatprep.subr.mxu0 0.0
    %2048 = vmatpush1.msra.mxu0 0.0
    %2049 = vmatprep.subr.mxu0 0.0
    %2050 = vmatpush1.msra.mxu0 0.0
    %2051 = vmatprep.subr.mxu0 0.0
    %2052 = vmatpush1.msra.mxu0 0.0
    %2053 = vmatprep.subr.mxu0 0.0
    %2054 = vmatpush1.msra.mxu0 0.0
    %2055 = vmatprep.subr.mxu0 0.0
    %2056 = vmatpush1.msra.mxu0 0.0
    %2057 = vmatprep.subr.mxu0 0.0
    %2058 = vmatpush1.msra.mxu0 0.0
    %2059 = vmatprep.subr.mxu0 0.0
    %2060 = vmatpush1.msra.mxu0 0.0
    %2061 = vmatprep.subr.mxu0 0.0
    %2062 = vmatpush1.msra.mxu0 0.0
    %2063 = vmatprep.subr.mxu0 0.0
    %2064 = vmatpush1.msra.mxu0 0.0
    %2065 = vmatprep.subr.mxu0 0.0
    %2066 = vmatpush1.msra.mxu0 0.0
    %2067 = vmatprep.subr.mxu0 0.0
    %2068 = vmatpush1.msra.mxu0 0.0
    %2069 = vmatprep.mubr.f32.mxu0 0.0
    %2070 = vmatmul.mubr.f32.gmra.mrb[0].mxu0 %v1979
    %v2071 = vpop.f32.mrb[0].mxu0
    %v2072 = vadd.f32 %v2003, %v2071
    %v2073 = vpop.f32.mrb[0].mxu0
    %2074 = vmatprep.mubr.f32.mxu0 0.0
    %2075 = vmatmul.mubr.f32.gmra.mrb[0].mxu0 %v1980
    %v2076 = vpop.f32.mrb[0].mxu0
    %v2077 = vadd.f32 %v2003, %v2076
    %v2078 = vpop.f32.mrb[0].mxu0
    %2079 = vmatprep.mubr.f32.mxu0 0.0
    %2080 = vmatmul.mubr.f32.gmra.mrb[0].mxu0 %v1981
    %v2081 = vpop.f32.mrb[0].mxu0
    %v2082 = vadd.f32 %v2003, %v2081
    %v2083 = vpop.f32.mrb[0].mxu0
    %2084 = vdwg.mxu0
    %v2085 = vadd.f32 %v2072, %v1816
    %v2086 = vadd.f32 %v2077, %v1817
    %v2087 = vadd.f32 %v2082, %v1818
    %v2088 = vsel %vm265, %v2085, 0.0
    %2089 = vadd.xlane.f32.xlu0 %v2088
    %v2090 = vpop.xlane.xlu0 %2089
    %v2091 = vsel %vm265, %v2086, 0.0
    %2092 = vadd.xlane.f32.xlu0 %v2091
    %v2093 = vpop.xlane.xlu0 %2092
    %v2094 = vsel %vm272, %v2087, 0.0
    %2095 = vadd.xlane.f32.xlu0 %v2094
    %v2096 = vpop.xlane.xlu0 %2095
    %v2097 = vmul.f32 %v2090, %v276
    %v2098 = vmul.f32 %v2093, %v276
    %v2099 = vmul.f32 %v2096, %v276
    %v2100 = vsub.f32 %v2085, %v2097
    %v2101 = vsub.f32 %v2086, %v2098
    %v2102 = vsub.f32 %v2087, %v2099
    %v2103 = vmul.f32 %v2100, %v2100
    %v2104 = vmul.f32 %v2101, %v2101
    %v2105 = vmul.f32 %v2102, %v2102
    %v2106 = vsel %vm265, %v2103, 0.0
    %2107 = vadd.xlane.f32.xlu0 %v2106
    %v2108 = vpop.xlane.xlu0 %2107
    %v2109 = vsel %vm265, %v2104, 0.0
    %2110 = vadd.xlane.f32.xlu0 %v2109
    %v2111 = vpop.xlane.xlu0 %2110
    %v2112 = vsel %vm272, %v2105, 0.0
    %2113 = vadd.xlane.f32.xlu0 %v2112
    %v2114 = vpop.xlane.xlu0 %2113
    %v2115 = vmul.f32 %v2108, %v276
    %v2116 = vmul.f32 %v2111, %v276
    %v2117 = vmul.f32 %v2114, %v276
    %v2118 = vadd.f32 %v2115, 1e-05
    %v2119 = vadd.f32 %v2116, 1e-05
    %v2120 = vadd.f32 %v2117, 1e-05
    %v2121 = vrsqrt.pop %v2118
    %v2122 = vrsqrt.pop %v2119
    %v2123 = vrsqrt.pop %v2120
    %v2124 = vmul.f32 %v2100, %v2121
    %v2125 = vmul.f32 %v2101, %v2122
    %v2126 = vmul.f32 %v2102, %v2123
    %s2127 = scalar_lea.vmem %s3, 32
    %v2128 = vld [vmem:[%s2127] sm:$0xff]
    %v2129 = vld [vmem:[%s2127 + $0x8] sm:$0xff]
    %v2130 = vld [vmem:[%s2127 + $0x10] sm:$0xff]
    %v2131 = vld [vmem:[%s2127 + $0x18] sm:$0xff]
    %s2132 = scalar_lea.vmem %s4, 1
    %v2133 = vld [vmem:[%s2132] sm:$0x1]
    %v2135 = vlaneseq
    %v2136 = vshrl.u32 %v2135, 7
    %v2137 = vsub.s32 0, %v2136
    %v2138 = vrot.slane %v2133, %v2137
    %v2141 = vsel %vm265, %v2124, 0
    %v2144 = vsel %vm265, %v2125, 0
    %v2147 = vsel %vm265, %v2126, 0
    %2149 = vmatprep.subr.mxu0 0.0
    %2150 = vmatpush1.msra.mxu0 %v2128
    %2151 = vmatprep.subr.mxu0 0.0
    %2152 = vmatpush1.msra.mxu0 %v2129
    %2153 = vmatprep.subr.mxu0 0.0
    %2154 = vmatpush1.msra.mxu0 %v2130
    %2155 = vmatprep.subr.mxu0 0.0
    %2156 = vmatpush1.msra.mxu0 %v2131
    %2157 = vmatprep.subr.mxu0 0.0
    %2158 = vmatpush1.msra.mxu0 0.0
    %2159 = vmatprep.subr.mxu0 0.0
    %2160 = vmatpush1.msra.mxu0 0.0
    %2161 = vmatprep.subr.mxu0 0.0
    %2162 = vmatpush1.msra.mxu0 0.0
    %2163 = vmatprep.subr.mxu0 0.0
    %2164 = vmatpush1.msra.mxu0 0.0
    %2165 = vmatprep.subr.mxu0 0.0
    %2166 = vmatpush1.msra.mxu0 0.0
    %2167 = vmatprep.subr.mxu0 0.0
    %2168 = vmatpush1.msra.mxu0 0.0
    %2169 = vmatprep.subr.mxu0 0.0
    %2170 = vmatpush1.msra.mxu0 0.0
    %2171 = vmatprep.subr.mxu0 0.0
    %2172 = vmatpush1.msra.mxu0 0.0
    %2173 = vmatprep.subr.mxu0 0.0
    %2174 = vmatpush1.msra.mxu0 0.0
    %2175 = vmatprep.subr.mxu0 0.0
    %2176 = vmatpush1.msra.mxu0 0.0
    %2177 = vmatprep.subr.mxu0 0.0
    %2178 = vmatpush1.msra.mxu0 0.0
    %2179 = vmatprep.subr.mxu0 0.0
    %2180 = vmatpush1.msra.mxu0 0.0
    %2181 = vmatprep.subr.mxu0 0.0
    %2182 = vmatpush1.msra.mxu0 0.0
    %2183 = vmatprep.subr.mxu0 0.0
    %2184 = vmatpush1.msra.mxu0 0.0
    %2185 = vmatprep.subr.mxu0 0.0
    %2186 = vmatpush1.msra.mxu0 0.0
    %2187 = vmatprep.subr.mxu0 0.0
    %2188 = vmatpush1.msra.mxu0 0.0
    %2189 = vmatprep.subr.mxu0 0.0
    %2190 = vmatpush1.msra.mxu0 0.0
    %2191 = vmatprep.subr.mxu0 0.0
    %2192 = vmatpush1.msra.mxu0 0.0
    %2193 = vmatprep.subr.mxu0 0.0
    %2194 = vmatpush1.msra.mxu0 0.0
    %2195 = vmatprep.subr.mxu0 0.0
    %2196 = vmatpush1.msra.mxu0 0.0
    %2197 = vmatprep.subr.mxu0 0.0
    %2198 = vmatpush1.msra.mxu0 0.0
    %2199 = vmatprep.subr.mxu0 0.0
    %2200 = vmatpush1.msra.mxu0 0.0
    %2201 = vmatprep.subr.mxu0 0.0
    %2202 = vmatpush1.msra.mxu0 0.0
    %2203 = vmatprep.subr.mxu0 0.0
    %2204 = vmatpush1.msra.mxu0 0.0
    %2205 = vmatprep.subr.mxu0 0.0
    %2206 = vmatpush1.msra.mxu0 0.0
    %2207 = vmatprep.subr.mxu0 0.0
    %2208 = vmatpush1.msra.mxu0 0.0
    %2209 = vmatprep.subr.mxu0 0.0
    %2210 = vmatpush1.msra.mxu0 0.0
    %2211 = vmatprep.subr.mxu0 0.0
    %2212 = vmatpush1.msra.mxu0 0.0
    %2213 = vmatprep.mubr.f32.mxu0 0.0
    %2214 = vmatmul.mubr.f32.gmra.mrb[0].mxu0 %v2141
    %v2215 = vpop.f32.mrb[0].mxu0
    %v2216 = vadd.f32 %v2138, %v2215
    %v2217 = vpop.f32.mrb[0].mxu0
    %2218 = vmatprep.mubr.f32.mxu0 0.0
    %2219 = vmatmul.mubr.f32.gmra.mrb[0].mxu0 %v2144
    %v2220 = vpop.f32.mrb[0].mxu0
    %v2221 = vadd.f32 %v2138, %v2220
    %v2222 = vpop.f32.mrb[0].mxu0
    %2223 = vmatprep.mubr.f32.mxu0 0.0
    %2224 = vmatmul.mubr.f32.gmra.mrb[0].mxu0 %v2147
    %v2225 = vpop.f32.mrb[0].mxu0
    %v2226 = vadd.f32 %v2138, %v2225
    %v2227 = vpop.f32.mrb[0].mxu0
    %2228 = vdwg.mxu0
    %v2232 = vcombine.high %v2216, %v2216
    %v2234 = vunpack.c.l.s4 1966171168
    %v2235 = vunpack.c.0.s8 %v2234
    %v2236 = vlaneseq
    %v2237 = vshrl.u32 %v2236, 7
    %v2238 = vsub.s32 %v2235, %v2237
    %v2239 = vrot.slane %v2216, %v2238
    %v2241 = vunpack.c.l.s4 1966171168
    %v2242 = vunpack.c.0.s8 %v2241
    %v2243 = vlaneseq
    %v2244 = vshrl.u32 %v2243, 7
    %v2245 = vsub.s32 %v2242, %v2244
    %v2246 = vrot.slane %v2232, %v2245
    %v2247 = vcombine.high %v2239, %v2239
    %v2248 = vcombine.high %v2246, %v2246
    %v2250 = vunpack.c.l.s4 1966171168
    %v2251 = vunpack.c.0.s8 %v2250
    %v2252 = vlaneseq
    %v2253 = vshrl.u32 %v2252, 7
    %v2254 = vsub.s32 %v2251, %v2253
    %v2255 = vrot.slane %v2239, %v2254
    %v2257 = vunpack.c.l.s4 1966171168
    %v2258 = vunpack.c.0.s8 %v2257
    %v2259 = vlaneseq
    %v2260 = vshrl.u32 %v2259, 7
    %v2261 = vsub.s32 %v2258, %v2260
    %v2262 = vrot.slane %v2246, %v2261
    %v2264 = vunpack.c.l.s4 1966171168
    %v2265 = vunpack.c.0.s8 %v2264
    %v2266 = vlaneseq
    %v2267 = vshrl.u32 %v2266, 7
    %v2268 = vsub.s32 %v2265, %v2267
    %v2269 = vrot.slane %v2247, %v2268
    %v2271 = vunpack.c.l.s4 1966171168
    %v2272 = vunpack.c.0.s8 %v2271
    %v2273 = vlaneseq
    %v2274 = vshrl.u32 %v2273, 7
    %v2275 = vsub.s32 %v2272, %v2274
    %v2276 = vrot.slane %v2248, %v2275
    %v2277 = vcombine.high %v2255, %v2255
    %v2278 = vcombine.high %v2262, %v2262
    %v2279 = vcombine.high %v2269, %v2269
    %v2280 = vcombine.high %v2276, %v2276
    %v2281 = vcombine.high %v2221, %v2221
    %v2283 = vunpack.c.l.s4 1966171168
    %v2284 = vunpack.c.0.s8 %v2283
    %v2285 = vlaneseq
    %v2286 = vshrl.u32 %v2285, 7
    %v2287 = vsub.s32 %v2284, %v2286
    %v2288 = vrot.slane %v2221, %v2287
    %v2290 = vunpack.c.l.s4 1966171168
    %v2291 = vunpack.c.0.s8 %v2290
    %v2292 = vlaneseq
    %v2293 = vshrl.u32 %v2292, 7
    %v2294 = vsub.s32 %v2291, %v2293
    %v2295 = vrot.slane %v2281, %v2294
    %v2296 = vcombine.high %v2288, %v2288
    %v2297 = vcombine.high %v2295, %v2295
    %v2299 = vunpack.c.l.s4 1966171168
    %v2300 = vunpack.c.0.s8 %v2299
    %v2301 = vlaneseq
    %v2302 = vshrl.u32 %v2301, 7
    %v2303 = vsub.s32 %v2300, %v2302
    %v2304 = vrot.slane %v2288, %v2303
    %v2306 = vunpack.c.l.s4 1966171168
    %v2307 = vunpack.c.0.s8 %v2306
    %v2308 = vlaneseq
    %v2309 = vshrl.u32 %v2308, 7
    %v2310 = vsub.s32 %v2307, %v2309
    %v2311 = vrot.slane %v2295, %v2310
    %v2313 = vunpack.c.l.s4 1966171168
    %v2314 = vunpack.c.0.s8 %v2313
    %v2315 = vlaneseq
    %v2316 = vshrl.u32 %v2315, 7
    %v2317 = vsub.s32 %v2314, %v2316
    %v2318 = vrot.slane %v2296, %v2317
    %v2320 = vunpack.c.l.s4 1966171168
    %v2321 = vunpack.c.0.s8 %v2320
    %v2322 = vlaneseq
    %v2323 = vshrl.u32 %v2322, 7
    %v2324 = vsub.s32 %v2321, %v2323
    %v2325 = vrot.slane %v2297, %v2324
    %v2326 = vcombine.high %v2304, %v2304
    %v2327 = vcombine.high %v2311, %v2311
    %v2328 = vcombine.high %v2318, %v2318
    %v2329 = vcombine.high %v2325, %v2325
    %v2331 = vunpack.c.l.s4 1966171168
    %v2332 = vunpack.c.0.s8 %v2331
    %v2333 = vlaneseq
    %v2334 = vshrl.u32 %v2333, 7
    %v2335 = vsub.s32 %v2332, %v2334
    %v2336 = vrot.slane %v2226, %v2335
    %v2337 = vcombine.high %v2336, %v2336
    %v2339 = vunpack.c.l.s4 1966171168
    %v2340 = vunpack.c.0.s8 %v2339
    %v2341 = vlaneseq
    %v2342 = vshrl.u32 %v2341, 7
    %v2343 = vsub.s32 %v2340, %v2342
    %v2344 = vrot.slane %v2336, %v2343
    %v2346 = vunpack.c.l.s4 1966171168
    %v2347 = vunpack.c.0.s8 %v2346
    %v2348 = vlaneseq
    %v2349 = vshrl.u32 %v2348, 7
    %v2350 = vsub.s32 %v2347, %v2349
    %v2351 = vrot.slane %v2337, %v2350
    %v2352 = vcombine.low %v2255, %v2269
    %v2353 = vcombine.low %v2277, %v2279
    %v2354 = vcombine.low %v2262, %v2276
    %v2355 = vcombine.low %v2278, %v2280
    %v2357 = vunpack.c.l.s4 1966171168
    %v2358 = vunpack.c.0.s8 %v2357
    %v2359 = vlaneseq
    %v2360 = vshrl.u32 %v2359, 7
    %v2361 = vsub.s32 %v2358, %v2360
    %v2362 = vrot.slane %v2352, %v2361
    %v2364 = vunpack.c.l.s4 1966171168
    %v2365 = vunpack.c.0.s8 %v2364
    %v2366 = vlaneseq
    %v2367 = vshrl.u32 %v2366, 7
    %v2368 = vsub.s32 %v2365, %v2367
    %v2369 = vrot.slane %v2353, %v2368
    %v2371 = vunpack.c.l.s4 1966171168
    %v2372 = vunpack.c.0.s8 %v2371
    %v2373 = vlaneseq
    %v2374 = vshrl.u32 %v2373, 7
    %v2375 = vsub.s32 %v2372, %v2374
    %v2376 = vrot.slane %v2354, %v2375
    %v2378 = vunpack.c.l.s4 1966171168
    %v2379 = vunpack.c.0.s8 %v2378
    %v2380 = vlaneseq
    %v2381 = vshrl.u32 %v2380, 7
    %v2382 = vsub.s32 %v2379, %v2381
    %v2383 = vrot.slane %v2355, %v2382
    %v2384 = vcombine.low %v2362, %v2369
    %v2385 = vcombine.low %v2376, %v2383
    %v2387 = vunpack.c.l.s4 1966171168
    %v2388 = vunpack.c.0.s8 %v2387
    %v2389 = vlaneseq
    %v2390 = vshrl.u32 %v2389, 7
    %v2391 = vsub.s32 %v2388, %v2390
    %v2392 = vrot.slane %v2384, %v2391
    %v2394 = vunpack.c.l.s4 1966171168
    %v2395 = vunpack.c.0.s8 %v2394
    %v2396 = vlaneseq
    %v2397 = vshrl.u32 %v2396, 7
    %v2398 = vsub.s32 %v2395, %v2397
    %v2399 = vrot.slane %v2385, %v2398
    %v2400 = vcombine.low %v2392, %v2399
    %v2402 = vunpack.c.l.s4 1966171168
    %v2403 = vunpack.c.0.s8 %v2402
    %v2404 = vlaneseq
    %v2405 = vshrl.u32 %v2404, 7
    %v2406 = vsub.s32 %v2403, %v2405
    %v2407 = vrot.slane %v2304, %v2406
    %v2409 = vunpack.c.l.s4 1966171168
    %v2410 = vunpack.c.0.s8 %v2409
    %v2411 = vlaneseq
    %v2412 = vshrl.u32 %v2411, 7
    %v2413 = vsub.s32 %v2410, %v2412
    %v2414 = vrot.slane %v2407, %v2413
    %2415 = vrot.lane.b32.xlu0 %v2400, 96
    %v2416 = vpop.permute.xlu0 %2415
    %2417 = vrot.lane.b32.xlu0 %v2414, 96
    %v2418 = vpop.permute.xlu0 %2417
    %v2419 = vsel %vm597, %v2400, 0
    %v2421 = vsel %vm597, %v2414, 0
    %v2423 = vsel %vm597, %v2416, 0
    %v2425 = vsel %vm597, %v2418, 0
    %2427 = vmatprep.subr.mxu0 0.0
    %2428 = vmatpush1.xpose.msra.mxu0 %v2423
    %2429 = vmatprep.subr.mxu0 0.0
    %2430 = vmatpush1.xpose.msra.mxu0 %v2425
    %2431 = vmatprep.subr.mxu0 0.0
    %2432 = vmatpush1.xpose.msra.mxu0 0.0
    %2433 = vmatprep.subr.mxu0 0.0
    %2434 = vmatpush1.xpose.msra.mxu0 0.0
    %2435 = vmatprep.subr.mxu0 0.0
    %2436 = vmatpush1.xpose.msra.mxu0 0.0
    %2437 = vmatprep.subr.mxu0 0.0
    %2438 = vmatpush1.xpose.msra.mxu0 0.0
    %2439 = vmatprep.subr.mxu0 0.0
    %2440 = vmatpush1.xpose.msra.mxu0 0.0
    %2441 = vmatprep.subr.mxu0 0.0
    %2442 = vmatpush1.xpose.msra.mxu0 0.0
    %2443 = vmatprep.subr.mxu0 0.0
    %2444 = vmatpush1.xpose.msra.mxu0 0.0
    %2445 = vmatprep.subr.mxu0 0.0
    %2446 = vmatpush1.xpose.msra.mxu0 0.0
    %2447 = vmatprep.subr.mxu0 0.0
    %2448 = vmatpush1.xpose.msra.mxu0 0.0
    %2449 = vmatprep.subr.mxu0 0.0
    %2450 = vmatpush1.xpose.msra.mxu0 0.0
    %2451 = vmatprep.subr.mxu0 0.0
    %2452 = vmatpush1.xpose.msra.mxu0 0.0
    %2453 = vmatprep.subr.mxu0 0.0
    %2454 = vmatpush1.xpose.msra.mxu0 0.0
    %2455 = vmatprep.subr.mxu0 0.0
    %2456 = vmatpush1.xpose.msra.mxu0 0.0
    %2457 = vmatprep.subr.mxu0 0.0
    %2458 = vmatpush1.xpose.msra.mxu0 0.0
    %2459 = vmatprep.subr.mxu0 0.0
    %2460 = vmatpush1.xpose.msra.mxu0 0.0
    %2461 = vmatprep.subr.mxu0 0.0
    %2462 = vmatpush1.xpose.msra.mxu0 0.0
    %2463 = vmatprep.subr.mxu0 0.0
    %2464 = vmatpush1.xpose.msra.mxu0 0.0
    %2465 = vmatprep.subr.mxu0 0.0
    %2466 = vmatpush1.xpose.msra.mxu0 0.0
    %2467 = vmatprep.subr.mxu0 0.0
    %2468 = vmatpush1.xpose.msra.mxu0 0.0
    %2469 = vmatprep.subr.mxu0 0.0
    %2470 = vmatpush1.xpose.msra.mxu0 0.0
    %2471 = vmatprep.subr.mxu0 0.0
    %2472 = vmatpush1.xpose.msra.mxu0 0.0
    %2473 = vmatprep.subr.mxu0 0.0
    %2474 = vmatpush1.xpose.msra.mxu0 0.0
    %2475 = vmatprep.subr.mxu0 0.0
    %2476 = vmatpush1.xpose.msra.mxu0 0.0
    %2477 = vmatprep.subr.mxu0 0.0
    %2478 = vmatpush1.xpose.msra.mxu0 0.0
    %2479 = vmatprep.subr.mxu0 0.0
    %2480 = vmatpush1.xpose.msra.mxu0 0.0
    %2481 = vmatprep.subr.mxu0 0.0
    %2482 = vmatpush1.xpose.msra.mxu0 0.0
    %2483 = vmatprep.subr.mxu0 0.0
    %2484 = vmatpush1.xpose.msra.mxu0 0.0
    %2485 = vmatprep.subr.mxu0 0.0
    %2486 = vmatpush1.xpose.msra.mxu0 0.0
    %2487 = vmatprep.subr.mxu0 0.0
    %2488 = vmatpush1.xpose.msra.mxu0 0.0
    %2489 = vmatprep.subr.mxu0 0.0
    %2490 = vmatpush1.xpose.msra.mxu0 0.0
    %2491 = vmatprep.mubr.f32.mxu0 0.0
    %2492 = vmatmul.mubr.f32.gmra.mrb[0].mxu0 %v2419
    %v2493 = vpop.f32.mrb[0].mxu0
    %v2494 = vadd.f32 0.0, %v2493
    %v2495 = vpop.f32.mrb[0].mxu0
    %2496 = vmatprep.mubr.f32.mxu0 0.0
    %2497 = vmatmul.mubr.f32.gmra.mrb[0].mxu0 %v2421
    %v2498 = vpop.f32.mrb[0].mxu0
    %v2499 = vadd.f32 0.0, %v2498
    %v2500 = vpop.f32.mrb[0].mxu0
    %2501 = vdwg.mxu0
    %v2502 = vcombine.low %v2318, %v2326
    %v2503 = vcombine.low %v2328, %v2311
    %v2504 = vcombine.low %v2325, %v2327
    %v2505 = vcombine.low %v2329, %v2344
    %v2507 = vunpack.c.l.s4 1966171168
    %v2508 = vunpack.c.0.s8 %v2507
    %v2509 = vlaneseq
    %v2510 = vshrl.u32 %v2509, 7
    %v2511 = vsub.s32 %v2508, %v2510
    %v2512 = vrot.slane %v2502, %v2511
    %v2514 = vunpack.c.l.s4 1966171168
    %v2515 = vunpack.c.0.s8 %v2514
    %v2516 = vlaneseq
    %v2517 = vshrl.u32 %v2516, 7
    %v2518 = vsub.s32 %v2515, %v2517
    %v2519 = vrot.slane %v2503, %v2518
    %v2521 = vunpack.c.l.s4 1966171168
    %v2522 = vunpack.c.0.s8 %v2521
    %v2523 = vlaneseq
    %v2524 = vshrl.u32 %v2523, 7
    %v2525 = vsub.s32 %v2522, %v2524
    %v2526 = vrot.slane %v2504, %v2525
    %v2528 = vunpack.c.l.s4 1966171168
    %v2529 = vunpack.c.0.s8 %v2528
    %v2530 = vlaneseq
    %v2531 = vshrl.u32 %v2530, 7
    %v2532 = vsub.s32 %v2529, %v2531
    %v2533 = vrot.slane %v2505, %v2532
    %v2534 = vcombine.low %v2512, %v2519
    %v2535 = vcombine.low %v2526, %v2533
    %v2537 = vunpack.c.l.s4 1966171168
    %v2538 = vunpack.c.0.s8 %v2537
    %v2539 = vlaneseq
    %v2540 = vshrl.u32 %v2539, 7
    %v2541 = vsub.s32 %v2538, %v2540
    %v2542 = vrot.slane %v2534, %v2541
    %v2544 = vunpack.c.l.s4 1966171168
    %v2545 = vunpack.c.0.s8 %v2544
    %v2546 = vlaneseq
    %v2547 = vshrl.u32 %v2546, 7
    %v2548 = vsub.s32 %v2545, %v2547
    %v2549 = vrot.slane %v2535, %v2548
    %v2550 = vcombine.low %v2542, %v2549
    %v2552 = vunpack.c.l.s4 1966171168
    %v2553 = vunpack.c.0.s8 %v2552
    %v2554 = vlaneseq
    %v2555 = vshrl.u32 %v2554, 7
    %v2556 = vsub.s32 %v2553, %v2555
    %v2557 = vrot.slane %v2351, %v2556
    %v2559 = vunpack.c.l.s4 1966171168
    %v2560 = vunpack.c.0.s8 %v2559
    %v2561 = vlaneseq
    %v2562 = vshrl.u32 %v2561, 7
    %v2563 = vsub.s32 %v2560, %v2562
    %v2564 = vrot.slane %v2557, %v2563
    %2565 = vrot.lane.b32.xlu0 %v2550, 96
    %v2566 = vpop.permute.xlu0 %2565
    %2567 = vrot.lane.b32.xlu0 %v2564, 96
    %v2568 = vpop.permute.xlu0 %2567
    %v2569 = vsel %vm597, %v2550, 0
    %v2571 = vsel %vm597, %v2564, 0
    %v2573 = vsel %vm597, %v2566, 0
    %v2575 = vsel %vm597, %v2568, 0
    %2577 = vmatprep.subr.mxu0 0.0
    %2578 = vmatpush1.xpose.msra.mxu0 %v2573
    %2579 = vmatprep.subr.mxu0 0.0
    %2580 = vmatpush1.xpose.msra.mxu0 %v2575
    %2581 = vmatprep.subr.mxu0 0.0
    %2582 = vmatpush1.xpose.msra.mxu0 0.0
    %2583 = vmatprep.subr.mxu0 0.0
    %2584 = vmatpush1.xpose.msra.mxu0 0.0
    %2585 = vmatprep.subr.mxu0 0.0
    %2586 = vmatpush1.xpose.msra.mxu0 0.0
    %2587 = vmatprep.subr.mxu0 0.0
    %2588 = vmatpush1.xpose.msra.mxu0 0.0
    %2589 = vmatprep.subr.mxu0 0.0
    %2590 = vmatpush1.xpose.msra.mxu0 0.0
    %2591 = vmatprep.subr.mxu0 0.0
    %2592 = vmatpush1.xpose.msra.mxu0 0.0
    %2593 = vmatprep.subr.mxu0 0.0
    %2594 = vmatpush1.xpose.msra.mxu0 0.0
    %2595 = vmatprep.subr.mxu0 0.0
    %2596 = vmatpush1.xpose.msra.mxu0 0.0
    %2597 = vmatprep.subr.mxu0 0.0
    %2598 = vmatpush1.xpose.msra.mxu0 0.0
    %2599 = vmatprep.subr.mxu0 0.0
    %2600 = vmatpush1.xpose.msra.mxu0 0.0
    %2601 = vmatprep.subr.mxu0 0.0
    %2602 = vmatpush1.xpose.msra.mxu0 0.0
    %2603 = vmatprep.subr.mxu0 0.0
    %2604 = vmatpush1.xpose.msra.mxu0 0.0
    %2605 = vmatprep.subr.mxu0 0.0
    %2606 = vmatpush1.xpose.msra.mxu0 0.0
    %2607 = vmatprep.subr.mxu0 0.0
    %2608 = vmatpush1.xpose.msra.mxu0 0.0
    %2609 = vmatprep.subr.mxu0 0.0
    %2610 = vmatpush1.xpose.msra.mxu0 0.0
    %2611 = vmatprep.subr.mxu0 0.0
    %2612 = vmatpush1.xpose.msra.mxu0 0.0
    %2613 = vmatprep.subr.mxu0 0.0
    %2614 = vmatpush1.xpose.msra.mxu0 0.0
    %2615 = vmatprep.subr.mxu0 0.0
    %2616 = vmatpush1.xpose.msra.mxu0 0.0
    %2617 = vmatprep.subr.mxu0 0.0
    %2618 = vmatpush1.xpose.msra.mxu0 0.0
    %2619 = vmatprep.subr.mxu0 0.0
    %2620 = vmatpush1.xpose.msra.mxu0 0.0
    %2621 = vmatprep.subr.mxu0 0.0
    %2622 = vmatpush1.xpose.msra.mxu0 0.0
    %2623 = vmatprep.subr.mxu0 0.0
    %2624 = vmatpush1.xpose.msra.mxu0 0.0
    %2625 = vmatprep.subr.mxu0 0.0
    %2626 = vmatpush1.xpose.msra.mxu0 0.0
    %2627 = vmatprep.subr.mxu0 0.0
    %2628 = vmatpush1.xpose.msra.mxu0 0.0
    %2629 = vmatprep.subr.mxu0 0.0
    %2630 = vmatpush1.xpose.msra.mxu0 0.0
    %2631 = vmatprep.subr.mxu0 0.0
    %2632 = vmatpush1.xpose.msra.mxu0 0.0
    %2633 = vmatprep.subr.mxu0 0.0
    %2634 = vmatpush1.xpose.msra.mxu0 0.0
    %2635 = vmatprep.subr.mxu0 0.0
    %2636 = vmatpush1.xpose.msra.mxu0 0.0
    %2637 = vmatprep.subr.mxu0 0.0
    %2638 = vmatpush1.xpose.msra.mxu0 0.0
    %2639 = vmatprep.subr.mxu0 0.0
    %2640 = vmatpush1.xpose.msra.mxu0 0.0
    %2641 = vmatprep.mubr.f32.mxu0 0.0
    %2642 = vmatmul.mubr.f32.gmra.mrb[0].mxu0 %v2569
    %v2643 = vpop.f32.mrb[0].mxu0
    %v2644 = vadd.f32 0.0, %v2643
    %v2645 = vpop.f32.mrb[0].mxu0
    %2646 = vmatprep.mubr.f32.mxu0 0.0
    %2647 = vmatmul.mubr.f32.gmra.mrb[0].mxu0 %v2571
    %v2648 = vpop.f32.mrb[0].mxu0
    %v2649 = vadd.f32 0.0, %v2648
    %v2650 = vpop.f32.mrb[0].mxu0
    %2651 = vdwg.mxu0
    %v2652 = vsel %vm831, %v2494, -inf
    %2653 = vmax.xlane.f32.xlu0 %v2652
    %v2654 = vpop.xlane.xlu0 %2653
    %v2655 = vsel %vm835, %v2499, -inf
    %2656 = vmax.xlane.f32.xlu0 %v2655
    %v2657 = vpop.xlane.xlu0 %2656
    %v2658 = vsel %vm831, %v2644, -inf
    %2659 = vmax.xlane.f32.xlu0 %v2658
    %v2660 = vpop.xlane.xlu0 %2659
    %v2661 = vsel %vm835, %v2649, -inf
    %2662 = vmax.xlane.f32.xlu0 %v2661
    %v2663 = vpop.xlane.xlu0 %2662
    %v2664 = vsub.f32 %v2494, %v2654
    %v2665 = vsub.f32 %v2499, %v2657
    %v2666 = vsub.f32 %v2644, %v2660
    %v2667 = vsub.f32 %v2649, %v2663
    %v2668 = vmul.f32 %v2664, 1.442695
    %v2669 = vpow.pop %v2668
    %v2670 = vmul.f32 %v2665, 1.442695
    %v2671 = vpow.pop %v2670
    %v2672 = vmul.f32 %v2666, 1.442695
    %v2673 = vpow.pop %v2672
    %v2674 = vmul.f32 %v2667, 1.442695
    %v2675 = vpow.pop %v2674
    %v2676 = vsel %vm831, %v2669, 0.0
    %2677 = vadd.xlane.f32.xlu0 %v2676
    %v2678 = vpop.xlane.xlu0 %2677
    %v2679 = vsel %vm835, %v2671, 0.0
    %2680 = vadd.xlane.f32.xlu0 %v2679
    %v2681 = vpop.xlane.xlu0 %2680
    %v2682 = vsel %vm831, %v2673, 0.0
    %2683 = vadd.xlane.f32.xlu0 %v2682
    %v2684 = vpop.xlane.xlu0 %2683
    %v2685 = vsel %vm835, %v2675, 0.0
    %2686 = vadd.xlane.f32.xlu0 %v2685
    %v2687 = vpop.xlane.xlu0 %2686
    %v2688 = vrcp.pop %v2678
    %v2689 = vrcp.pop %v2681
    %v2690 = vrcp.pop %v2684
    %v2691 = vrcp.pop %v2687
    %v2692 = vmul.f32 %v2669, %v2688
    %v2693 = vmul.f32 %v2671, %v2689
    %v2694 = vmul.f32 %v2673, %v2690
    %v2695 = vmul.f32 %v2675, %v2691
    %2696 = vrot.lane.b32.xlu0 %v2400, 64
    %v2697 = vpop.permute.xlu0 %2696
    %2698 = vrot.lane.b32.xlu0 %v2414, 64
    %v2699 = vpop.permute.xlu0 %2698
    %v2702 = vsel %vm831, %v2692, 0
    %v2705 = vsel %vm831, %v2693, 0
    %v2707 = vsel %vm888, %v2699, 0
    %2709 = vmatprep.subr.mxu0 0.0
    %2710 = vmatpush1.msra.mxu0 %v2697
    %2711 = vmatprep.subr.mxu0 0.0
    %2712 = vmatpush1.msra.mxu0 %v2707
    %2713 = vmatprep.subr.mxu0 0.0
    %2714 = vmatpush1.msra.mxu0 0.0
    %2715 = vmatprep.subr.mxu0 0.0
    %2716 = vmatpush1.msra.mxu0 0.0
    %2717 = vmatprep.subr.mxu0 0.0
    %2718 = vmatpush1.msra.mxu0 0.0
    %2719 = vmatprep.subr.mxu0 0.0
    %2720 = vmatpush1.msra.mxu0 0.0
    %2721 = vmatprep.subr.mxu0 0.0
    %2722 = vmatpush1.msra.mxu0 0.0
    %2723 = vmatprep.subr.mxu0 0.0
    %2724 = vmatpush1.msra.mxu0 0.0
    %2725 = vmatprep.subr.mxu0 0.0
    %2726 = vmatpush1.msra.mxu0 0.0
    %2727 = vmatprep.subr.mxu0 0.0
    %2728 = vmatpush1.msra.mxu0 0.0
    %2729 = vmatprep.subr.mxu0 0.0
    %2730 = vmatpush1.msra.mxu0 0.0
    %2731 = vmatprep.subr.mxu0 0.0
    %2732 = vmatpush1.msra.mxu0 0.0
    %2733 = vmatprep.subr.mxu0 0.0
    %2734 = vmatpush1.msra.mxu0 0.0
    %2735 = vmatprep.subr.mxu0 0.0
    %2736 = vmatpush1.msra.mxu0 0.0
    %2737 = vmatprep.subr.mxu0 0.0
    %2738 = vmatpush1.msra.mxu0 0.0
    %2739 = vmatprep.subr.mxu0 0.0
    %2740 = vmatpush1.msra.mxu0 0.0
    %2741 = vmatprep.subr.mxu0 0.0
    %2742 = vmatpush1.msra.mxu0 0.0
    %2743 = vmatprep.subr.mxu0 0.0
    %2744 = vmatpush1.msra.mxu0 0.0
    %2745 = vmatprep.subr.mxu0 0.0
    %2746 = vmatpush1.msra.mxu0 0.0
    %2747 = vmatprep.subr.mxu0 0.0
    %2748 = vmatpush1.msra.mxu0 0.0
    %2749 = vmatprep.subr.mxu0 0.0
    %2750 = vmatpush1.msra.mxu0 0.0
    %2751 = vmatprep.subr.mxu0 0.0
    %2752 = vmatpush1.msra.mxu0 0.0
    %2753 = vmatprep.subr.mxu0 0.0
    %2754 = vmatpush1.msra.mxu0 0.0
    %2755 = vmatprep.subr.mxu0 0.0
    %2756 = vmatpush1.msra.mxu0 0.0
    %2757 = vmatprep.subr.mxu0 0.0
    %2758 = vmatpush1.msra.mxu0 0.0
    %2759 = vmatprep.subr.mxu0 0.0
    %2760 = vmatpush1.msra.mxu0 0.0
    %2761 = vmatprep.subr.mxu0 0.0
    %2762 = vmatpush1.msra.mxu0 0.0
    %2763 = vmatprep.subr.mxu0 0.0
    %2764 = vmatpush1.msra.mxu0 0.0
    %2765 = vmatprep.subr.mxu0 0.0
    %2766 = vmatpush1.msra.mxu0 0.0
    %2767 = vmatprep.subr.mxu0 0.0
    %2768 = vmatpush1.msra.mxu0 0.0
    %2769 = vmatprep.subr.mxu0 0.0
    %2770 = vmatpush1.msra.mxu0 0.0
    %2771 = vmatprep.subr.mxu0 0.0
    %2772 = vmatpush1.msra.mxu0 0.0
    %2773 = vmatprep.mubr.f32.mxu0 0.0
    %2774 = vmatmul.mubr.f32.gmra.mrb[0].mxu0 %v2702
    %v2775 = vpop.f32.mrb[0].mxu0
    %v2776 = vadd.f32 0.0, %v2775
    %v2777 = vpop.f32.mrb[0].mxu0
    %2778 = vmatprep.mubr.f32.mxu0 0.0
    %2779 = vmatmul.mubr.f32.gmra.mrb[0].mxu0 %v2705
    %v2780 = vpop.f32.mrb[0].mxu0
    %v2781 = vadd.f32 0.0, %v2780
    %v2782 = vpop.f32.mrb[0].mxu0
    %2783 = vdwg.mxu0
    %2784 = vrot.lane.b32.xlu0 %v2550, 64
    %v2785 = vpop.permute.xlu0 %2784
    %2786 = vrot.lane.b32.xlu0 %v2564, 64
    %v2787 = vpop.permute.xlu0 %2786
    %v2790 = vsel %vm831, %v2694, 0
    %v2793 = vsel %vm831, %v2695, 0
    %v2795 = vsel %vm888, %v2787, 0
    %2797 = vmatprep.subr.mxu0 0.0
    %2798 = vmatpush1.msra.mxu0 %v2785
    %2799 = vmatprep.subr.mxu0 0.0
    %2800 = vmatpush1.msra.mxu0 %v2795
    %2801 = vmatprep.subr.mxu0 0.0
    %2802 = vmatpush1.msra.mxu0 0.0
    %2803 = vmatprep.subr.mxu0 0.0
    %2804 = vmatpush1.msra.mxu0 0.0
    %2805 = vmatprep.subr.mxu0 0.0
    %2806 = vmatpush1.msra.mxu0 0.0
    %2807 = vmatprep.subr.mxu0 0.0
    %2808 = vmatpush1.msra.mxu0 0.0
    %2809 = vmatprep.subr.mxu0 0.0
    %2810 = vmatpush1.msra.mxu0 0.0
    %2811 = vmatprep.subr.mxu0 0.0
    %2812 = vmatpush1.msra.mxu0 0.0
    %2813 = vmatprep.subr.mxu0 0.0
    %2814 = vmatpush1.msra.mxu0 0.0
    %2815 = vmatprep.subr.mxu0 0.0
    %2816 = vmatpush1.msra.mxu0 0.0
    %2817 = vmatprep.subr.mxu0 0.0
    %2818 = vmatpush1.msra.mxu0 0.0
    %2819 = vmatprep.subr.mxu0 0.0
    %2820 = vmatpush1.msra.mxu0 0.0
    %2821 = vmatprep.subr.mxu0 0.0
    %2822 = vmatpush1.msra.mxu0 0.0
    %2823 = vmatprep.subr.mxu0 0.0
    %2824 = vmatpush1.msra.mxu0 0.0
    %2825 = vmatprep.subr.mxu0 0.0
    %2826 = vmatpush1.msra.mxu0 0.0
    %2827 = vmatprep.subr.mxu0 0.0
    %2828 = vmatpush1.msra.mxu0 0.0
    %2829 = vmatprep.subr.mxu0 0.0
    %2830 = vmatpush1.msra.mxu0 0.0
    %2831 = vmatprep.subr.mxu0 0.0
    %2832 = vmatpush1.msra.mxu0 0.0
    %2833 = vmatprep.subr.mxu0 0.0
    %2834 = vmatpush1.msra.mxu0 0.0
    %2835 = vmatprep.subr.mxu0 0.0
    %2836 = vmatpush1.msra.mxu0 0.0
    %2837 = vmatprep.subr.mxu0 0.0
    %2838 = vmatpush1.msra.mxu0 0.0
    %2839 = vmatprep.subr.mxu0 0.0
    %2840 = vmatpush1.msra.mxu0 0.0
    %2841 = vmatprep.subr.mxu0 0.0
    %2842 = vmatpush1.msra.mxu0 0.0
    %2843 = vmatprep.subr.mxu0 0.0
    %2844 = vmatpush1.msra.mxu0 0.0
    %2845 = vmatprep.subr.mxu0 0.0
    %2846 = vmatpush1.msra.mxu0 0.0
    %2847 = vmatprep.subr.mxu0 0.0
    %2848 = vmatpush1.msra.mxu0 0.0
    %2849 = vmatprep.subr.mxu0 0.0
    %2850 = vmatpush1.msra.mxu0 0.0
    %2851 = vmatprep.subr.mxu0 0.0
    %2852 = vmatpush1.msra.mxu0 0.0
    %2853 = vmatprep.subr.mxu0 0.0
    %2854 = vmatpush1.msra.mxu0 0.0
    %2855 = vmatprep.subr.mxu0 0.0
    %2856 = vmatpush1.msra.mxu0 0.0
    %2857 = vmatprep.subr.mxu0 0.0
    %2858 = vmatpush1.msra.mxu0 0.0
    %2859 = vmatprep.subr.mxu0 0.0
    %2860 = vmatpush1.msra.mxu0 0.0
    %2861 = vmatprep.mubr.f32.mxu0 0.0
    %2862 = vmatmul.mubr.f32.gmra.mrb[0].mxu0 %v2790
    %v2863 = vpop.f32.mrb[0].mxu0
    %v2864 = vadd.f32 0.0, %v2863
    %v2865 = vpop.f32.mrb[0].mxu0
    %2866 = vmatprep.mubr.f32.mxu0 0.0
    %2867 = vmatmul.mubr.f32.gmra.mrb[0].mxu0 %v2793
    %v2868 = vpop.f32.mrb[0].mxu0
    %v2869 = vadd.f32 0.0, %v2868
    %v2870 = vpop.f32.mrb[0].mxu0
    %2871 = vdwg.mxu0
    %2872 = vrot.lane.b32.xlu0 %v2400, 112
    %v2873 = vpop.permute.xlu0 %2872
    %2874 = vrot.lane.b32.xlu0 %v2414, 112
    %v2875 = vpop.permute.xlu0 %2874
    %2876 = vrot.lane.b32.xlu0 %v2400, 80
    %v2877 = vpop.permute.xlu0 %2876
    %2878 = vrot.lane.b32.xlu0 %v2414, 80
    %v2879 = vpop.permute.xlu0 %2878
    %v2880 = vsel %vm597, %v2873, 0
    %v2882 = vsel %vm597, %v2875, 0
    %v2884 = vsel %vm597, %v2877, 0
    %v2886 = vsel %vm597, %v2879, 0
    %2888 = vmatprep.subr.mxu0 0.0
    %2889 = vmatpush1.xpose.msra.mxu0 %v2884
    %2890 = vmatprep.subr.mxu0 0.0
    %2891 = vmatpush1.xpose.msra.mxu0 %v2886
    %2892 = vmatprep.subr.mxu0 0.0
    %2893 = vmatpush1.xpose.msra.mxu0 0.0
    %2894 = vmatprep.subr.mxu0 0.0
    %2895 = vmatpush1.xpose.msra.mxu0 0.0
    %2896 = vmatprep.subr.mxu0 0.0
    %2897 = vmatpush1.xpose.msra.mxu0 0.0
    %2898 = vmatprep.subr.mxu0 0.0
    %2899 = vmatpush1.xpose.msra.mxu0 0.0
    %2900 = vmatprep.subr.mxu0 0.0
    %2901 = vmatpush1.xpose.msra.mxu0 0.0
    %2902 = vmatprep.subr.mxu0 0.0
    %2903 = vmatpush1.xpose.msra.mxu0 0.0
    %2904 = vmatprep.subr.mxu0 0.0
    %2905 = vmatpush1.xpose.msra.mxu0 0.0
    %2906 = vmatprep.subr.mxu0 0.0
    %2907 = vmatpush1.xpose.msra.mxu0 0.0
    %2908 = vmatprep.subr.mxu0 0.0
    %2909 = vmatpush1.xpose.msra.mxu0 0.0
    %2910 = vmatprep.subr.mxu0 0.0
    %2911 = vmatpush1.xpose.msra.mxu0 0.0
    %2912 = vmatprep.subr.mxu0 0.0
    %2913 = vmatpush1.xpose.msra.mxu0 0.0
    %2914 = vmatprep.subr.mxu0 0.0
    %2915 = vmatpush1.xpose.msra.mxu0 0.0
    %2916 = vmatprep.subr.mxu0 0.0
    %2917 = vmatpush1.xpose.msra.mxu0 0.0
    %2918 = vmatprep.subr.mxu0 0.0
    %2919 = vmatpush1.xpose.msra.mxu0 0.0
    %2920 = vmatprep.subr.mxu0 0.0
    %2921 = vmatpush1.xpose.msra.mxu0 0.0
    %2922 = vmatprep.subr.mxu0 0.0
    %2923 = vmatpush1.xpose.msra.mxu0 0.0
    %2924 = vmatprep.subr.mxu0 0.0
    %2925 = vmatpush1.xpose.msra.mxu0 0.0
    %2926 = vmatprep.subr.mxu0 0.0
    %2927 = vmatpush1.xpose.msra.mxu0 0.0
    %2928 = vmatprep.subr.mxu0 0.0
    %2929 = vmatpush1.xpose.msra.mxu0 0.0
    %2930 = vmatprep.subr.mxu0 0.0
    %2931 = vmatpush1.xpose.msra.mxu0 0.0
    %2932 = vmatprep.subr.mxu0 0.0
    %2933 = vmatpush1.xpose.msra.mxu0 0.0
    %2934 = vmatprep.subr.mxu0 0.0
    %2935 = vmatpush1.xpose.msra.mxu0 0.0
    %2936 = vmatprep.subr.mxu0 0.0
    %2937 = vmatpush1.xpose.msra.mxu0 0.0
    %2938 = vmatprep.subr.mxu0 0.0
    %2939 = vmatpush1.xpose.msra.mxu0 0.0
    %2940 = vmatprep.subr.mxu0 0.0
    %2941 = vmatpush1.xpose.msra.mxu0 0.0
    %2942 = vmatprep.subr.mxu0 0.0
    %2943 = vmatpush1.xpose.msra.mxu0 0.0
    %2944 = vmatprep.subr.mxu0 0.0
    %2945 = vmatpush1.xpose.msra.mxu0 0.0
    %2946 = vmatprep.subr.mxu0 0.0
    %2947 = vmatpush1.xpose.msra.mxu0 0.0
    %2948 = vmatprep.subr.mxu0 0.0
    %2949 = vmatpush1.xpose.msra.mxu0 0.0
    %2950 = vmatprep.subr.mxu0 0.0
    %2951 = vmatpush1.xpose.msra.mxu0 0.0
    %2952 = vmatprep.mubr.f32.mxu0 0.0
    %2953 = vmatmul.mubr.f32.gmra.mrb[0].mxu0 %v2880
    %v2954 = vpop.f32.mrb[0].mxu0
    %v2955 = vadd.f32 0.0, %v2954
    %v2956 = vpop.f32.mrb[0].mxu0
    %2957 = vmatprep.mubr.f32.mxu0 0.0
    %2958 = vmatmul.mubr.f32.gmra.mrb[0].mxu0 %v2882
    %v2959 = vpop.f32.mrb[0].mxu0
    %v2960 = vadd.f32 0.0, %v2959
    %v2961 = vpop.f32.mrb[0].mxu0
    %2962 = vdwg.mxu0
    %2963 = vrot.lane.b32.xlu0 %v2550, 112
    %v2964 = vpop.permute.xlu0 %2963
    %2965 = vrot.lane.b32.xlu0 %v2564, 112
    %v2966 = vpop.permute.xlu0 %2965
    %2967 = vrot.lane.b32.xlu0 %v2550, 80
    %v2968 = vpop.permute.xlu0 %2967
    %2969 = vrot.lane.b32.xlu0 %v2564, 80
    %v2970 = vpop.permute.xlu0 %2969
    %v2971 = vsel %vm597, %v2964, 0
    %v2973 = vsel %vm597, %v2966, 0
    %v2975 = vsel %vm597, %v2968, 0
    %v2977 = vsel %vm597, %v2970, 0
    %2979 = vmatprep.subr.mxu0 0.0
    %2980 = vmatpush1.xpose.msra.mxu0 %v2975
    %2981 = vmatprep.subr.mxu0 0.0
    %2982 = vmatpush1.xpose.msra.mxu0 %v2977
    %2983 = vmatprep.subr.mxu0 0.0
    %2984 = vmatpush1.xpose.msra.mxu0 0.0
    %2985 = vmatprep.subr.mxu0 0.0
    %2986 = vmatpush1.xpose.msra.mxu0 0.0
    %2987 = vmatprep.subr.mxu0 0.0
    %2988 = vmatpush1.xpose.msra.mxu0 0.0
    %2989 = vmatprep.subr.mxu0 0.0
    %2990 = vmatpush1.xpose.msra.mxu0 0.0
    %2991 = vmatprep.subr.mxu0 0.0
    %2992 = vmatpush1.xpose.msra.mxu0 0.0
    %2993 = vmatprep.subr.mxu0 0.0
    %2994 = vmatpush1.xpose.msra.mxu0 0.0
    %2995 = vmatprep.subr.mxu0 0.0
    %2996 = vmatpush1.xpose.msra.mxu0 0.0
    %2997 = vmatprep.subr.mxu0 0.0
    %2998 = vmatpush1.xpose.msra.mxu0 0.0
    %2999 = vmatprep.subr.mxu0 0.0
    %3000 = vmatpush1.xpose.msra.mxu0 0.0
    %3001 = vmatprep.subr.mxu0 0.0
    %3002 = vmatpush1.xpose.msra.mxu0 0.0
    %3003 = vmatprep.subr.mxu0 0.0
    %3004 = vmatpush1.xpose.msra.mxu0 0.0
    %3005 = vmatprep.subr.mxu0 0.0
    %3006 = vmatpush1.xpose.msra.mxu0 0.0
    %3007 = vmatprep.subr.mxu0 0.0
    %3008 = vmatpush1.xpose.msra.mxu0 0.0
    %3009 = vmatprep.subr.mxu0 0.0
    %3010 = vmatpush1.xpose.msra.mxu0 0.0
    %3011 = vmatprep.subr.mxu0 0.0
    %3012 = vmatpush1.xpose.msra.mxu0 0.0
    %3013 = vmatprep.subr.mxu0 0.0
    %3014 = vmatpush1.xpose.msra.mxu0 0.0
    %3015 = vmatprep.subr.mxu0 0.0
    %3016 = vmatpush1.xpose.msra.mxu0 0.0
    %3017 = vmatprep.subr.mxu0 0.0
    %3018 = vmatpush1.xpose.msra.mxu0 0.0
    %3019 = vmatprep.subr.mxu0 0.0
    %3020 = vmatpush1.xpose.msra.mxu0 0.0
    %3021 = vmatprep.subr.mxu0 0.0
    %3022 = vmatpush1.xpose.msra.mxu0 0.0
    %3023 = vmatprep.subr.mxu0 0.0
    %3024 = vmatpush1.xpose.msra.mxu0 0.0
    %3025 = vmatprep.subr.mxu0 0.0
    %3026 = vmatpush1.xpose.msra.mxu0 0.0
    %3027 = vmatprep.subr.mxu0 0.0
    %3028 = vmatpush1.xpose.msra.mxu0 0.0
    %3029 = vmatprep.subr.mxu0 0.0
    %3030 = vmatpush1.xpose.msra.mxu0 0.0
    %3031 = vmatprep.subr.mxu0 0.0
    %3032 = vmatpush1.xpose.msra.mxu0 0.0
    %3033 = vmatprep.subr.mxu0 0.0
    %3034 = vmatpush1.xpose.msra.mxu0 0.0
    %3035 = vmatprep.subr.mxu0 0.0
    %3036 = vmatpush1.xpose.msra.mxu0 0.0
    %3037 = vmatprep.subr.mxu0 0.0
    %3038 = vmatpush1.xpose.msra.mxu0 0.0
    %3039 = vmatprep.subr.mxu0 0.0
    %3040 = vmatpush1.xpose.msra.mxu0 0.0
    %3041 = vmatprep.subr.mxu0 0.0
    %3042 = vmatpush1.xpose.msra.mxu0 0.0
    %3043 = vmatprep.mubr.f32.mxu0 0.0
    %3044 = vmatmul.mubr.f32.gmra.mrb[0].mxu0 %v2971
    %v3045 = vpop.f32.mrb[0].mxu0
    %v3046 = vadd.f32 0.0, %v3045
    %v3047 = vpop.f32.mrb[0].mxu0
    %3048 = vmatprep.mubr.f32.mxu0 0.0
    %3049 = vmatmul.mubr.f32.gmra.mrb[0].mxu0 %v2973
    %v3050 = vpop.f32.mrb[0].mxu0
    %v3051 = vadd.f32 0.0, %v3050
    %v3052 = vpop.f32.mrb[0].mxu0
    %3053 = vdwg.mxu0
    %v3054 = vsel %vm831, %v2955, -inf
    %3055 = vmax.xlane.f32.xlu0 %v3054
    %v3056 = vpop.xlane.xlu0 %3055
    %v3057 = vsel %vm835, %v2960, -inf
    %3058 = vmax.xlane.f32.xlu0 %v3057
    %v3059 = vpop.xlane.xlu0 %3058
    %v3060 = vsel %vm831, %v3046, -inf
    %3061 = vmax.xlane.f32.xlu0 %v3060
    %v3062 = vpop.xlane.xlu0 %3061
    %v3063 = vsel %vm835, %v3051, -inf
    %3064 = vmax.xlane.f32.xlu0 %v3063
    %v3065 = vpop.xlane.xlu0 %3064
    %v3066 = vsub.f32 %v2955, %v3056
    %v3067 = vsub.f32 %v2960, %v3059
    %v3068 = vsub.f32 %v3046, %v3062
    %v3069 = vsub.f32 %v3051, %v3065
    %v3070 = vmul.f32 %v3066, 1.442695
    %v3071 = vpow.pop %v3070
    %v3072 = vmul.f32 %v3067, 1.442695
    %v3073 = vpow.pop %v3072
    %v3074 = vmul.f32 %v3068, 1.442695
    %v3075 = vpow.pop %v3074
    %v3076 = vmul.f32 %v3069, 1.442695
    %v3077 = vpow.pop %v3076
    %v3078 = vsel %vm831, %v3071, 0.0
    %3079 = vadd.xlane.f32.xlu0 %v3078
    %v3080 = vpop.xlane.xlu0 %3079
    %v3081 = vsel %vm835, %v3073, 0.0
    %3082 = vadd.xlane.f32.xlu0 %v3081
    %v3083 = vpop.xlane.xlu0 %3082
    %v3084 = vsel %vm831, %v3075, 0.0
    %3085 = vadd.xlane.f32.xlu0 %v3084
    %v3086 = vpop.xlane.xlu0 %3085
    %v3087 = vsel %vm835, %v3077, 0.0
    %3088 = vadd.xlane.f32.xlu0 %v3087
    %v3089 = vpop.xlane.xlu0 %3088
    %v3090 = vrcp.pop %v3080
    %v3091 = vrcp.pop %v3083
    %v3092 = vrcp.pop %v3086
    %v3093 = vrcp.pop %v3089
    %v3094 = vmul.f32 %v3071, %v3090
    %v3095 = vmul.f32 %v3073, %v3091
    %v3096 = vmul.f32 %v3075, %v3092
    %v3097 = vmul.f32 %v3077, %v3093
    %3098 = vrot.lane.b32.xlu0 %v2400, 48
    %v3099 = vpop.permute.xlu0 %3098
    %3100 = vrot.lane.b32.xlu0 %v2414, 48
    %v3101 = vpop.permute.xlu0 %3100
    %v3104 = vsel %vm831, %v3094, 0
    %v3107 = vsel %vm831, %v3095, 0
    %v3109 = vsel %vm888, %v3101, 0
    %3111 = vmatprep.subr.mxu0 0.0
    %3112 = vmatpush1.msra.mxu0 %v3099
    %3113 = vmatprep.subr.mxu0 0.0
    %3114 = vmatpush1.msra.mxu0 %v3109
    %3115 = vmatprep.subr.mxu0 0.0
    %3116 = vmatpush1.msra.mxu0 0.0
    %3117 = vmatprep.subr.mxu0 0.0
    %3118 = vmatpush1.msra.mxu0 0.0
    %3119 = vmatprep.subr.mxu0 0.0
    %3120 = vmatpush1.msra.mxu0 0.0
    %3121 = vmatprep.subr.mxu0 0.0
    %3122 = vmatpush1.msra.mxu0 0.0
    %3123 = vmatprep.subr.mxu0 0.0
    %3124 = vmatpush1.msra.mxu0 0.0
    %3125 = vmatprep.subr.mxu0 0.0
    %3126 = vmatpush1.msra.mxu0 0.0
    %3127 = vmatprep.subr.mxu0 0.0
    %3128 = vmatpush1.msra.mxu0 0.0
    %3129 = vmatprep.subr.mxu0 0.0
    %3130 = vmatpush1.msra.mxu0 0.0
    %3131 = vmatprep.subr.mxu0 0.0
    %3132 = vmatpush1.msra.mxu0 0.0
    %3133 = vmatprep.subr.mxu0 0.0
    %3134 = vmatpush1.msra.mxu0 0.0
    %3135 = vmatprep.subr.mxu0 0.0
    %3136 = vmatpush1.msra.mxu0 0.0
    %3137 = vmatprep.subr.mxu0 0.0
    %3138 = vmatpush1.msra.mxu0 0.0
    %3139 = vmatprep.subr.mxu0 0.0
    %3140 = vmatpush1.msra.mxu0 0.0
    %3141 = vmatprep.subr.mxu0 0.0
    %3142 = vmatpush1.msra.mxu0 0.0
    %3143 = vmatprep.subr.mxu0 0.0
    %3144 = vmatpush1.msra.mxu0 0.0
    %3145 = vmatprep.subr.mxu0 0.0
    %3146 = vmatpush1.msra.mxu0 0.0
    %3147 = vmatprep.subr.mxu0 0.0
    %3148 = vmatpush1.msra.mxu0 0.0
    %3149 = vmatprep.subr.mxu0 0.0
    %3150 = vmatpush1.msra.mxu0 0.0
    %3151 = vmatprep.subr.mxu0 0.0
    %3152 = vmatpush1.msra.mxu0 0.0
    %3153 = vmatprep.subr.mxu0 0.0
    %3154 = vmatpush1.msra.mxu0 0.0
    %3155 = vmatprep.subr.mxu0 0.0
    %3156 = vmatpush1.msra.mxu0 0.0
    %3157 = vmatprep.subr.mxu0 0.0
    %3158 = vmatpush1.msra.mxu0 0.0
    %3159 = vmatprep.subr.mxu0 0.0
    %3160 = vmatpush1.msra.mxu0 0.0
    %3161 = vmatprep.subr.mxu0 0.0
    %3162 = vmatpush1.msra.mxu0 0.0
    %3163 = vmatprep.subr.mxu0 0.0
    %3164 = vmatpush1.msra.mxu0 0.0
    %3165 = vmatprep.subr.mxu0 0.0
    %3166 = vmatpush1.msra.mxu0 0.0
    %3167 = vmatprep.subr.mxu0 0.0
    %3168 = vmatpush1.msra.mxu0 0.0
    %3169 = vmatprep.subr.mxu0 0.0
    %3170 = vmatpush1.msra.mxu0 0.0
    %3171 = vmatprep.subr.mxu0 0.0
    %3172 = vmatpush1.msra.mxu0 0.0
    %3173 = vmatprep.subr.mxu0 0.0
    %3174 = vmatpush1.msra.mxu0 0.0
    %3175 = vmatprep.mubr.f32.mxu0 0.0
    %3176 = vmatmul.mubr.f32.gmra.mrb[0].mxu0 %v3104
    %v3177 = vpop.f32.mrb[0].mxu0
    %v3178 = vadd.f32 0.0, %v3177
    %v3179 = vpop.f32.mrb[0].mxu0
    %3180 = vmatprep.mubr.f32.mxu0 0.0
    %3181 = vmatmul.mubr.f32.gmra.mrb[0].mxu0 %v3107
    %v3182 = vpop.f32.mrb[0].mxu0
    %v3183 = vadd.f32 0.0, %v3182
    %v3184 = vpop.f32.mrb[0].mxu0
    %3185 = vdwg.mxu0
    %3186 = vrot.lane.b32.xlu0 %v2550, 48
    %v3187 = vpop.permute.xlu0 %3186
    %3188 = vrot.lane.b32.xlu0 %v2564, 48
    %v3189 = vpop.permute.xlu0 %3188
    %v3192 = vsel %vm831, %v3096, 0
    %v3195 = vsel %vm831, %v3097, 0
    %v3197 = vsel %vm888, %v3189, 0
    %3199 = vmatprep.subr.mxu0 0.0
    %3200 = vmatpush1.msra.mxu0 %v3187
    %3201 = vmatprep.subr.mxu0 0.0
    %3202 = vmatpush1.msra.mxu0 %v3197
    %3203 = vmatprep.subr.mxu0 0.0
    %3204 = vmatpush1.msra.mxu0 0.0
    %3205 = vmatprep.subr.mxu0 0.0
    %3206 = vmatpush1.msra.mxu0 0.0
    %3207 = vmatprep.subr.mxu0 0.0
    %3208 = vmatpush1.msra.mxu0 0.0
    %3209 = vmatprep.subr.mxu0 0.0
    %3210 = vmatpush1.msra.mxu0 0.0
    %3211 = vmatprep.subr.mxu0 0.0
    %3212 = vmatpush1.msra.mxu0 0.0
    %3213 = vmatprep.subr.mxu0 0.0
    %3214 = vmatpush1.msra.mxu0 0.0
    %3215 = vmatprep.subr.mxu0 0.0
    %3216 = vmatpush1.msra.mxu0 0.0
    %3217 = vmatprep.subr.mxu0 0.0
    %3218 = vmatpush1.msra.mxu0 0.0
    %3219 = vmatprep.subr.mxu0 0.0
    %3220 = vmatpush1.msra.mxu0 0.0
    %3221 = vmatprep.subr.mxu0 0.0
    %3222 = vmatpush1.msra.mxu0 0.0
    %3223 = vmatprep.subr.mxu0 0.0
    %3224 = vmatpush1.msra.mxu0 0.0
    %3225 = vmatprep.subr.mxu0 0.0
    %3226 = vmatpush1.msra.mxu0 0.0
    %3227 = vmatprep.subr.mxu0 0.0
    %3228 = vmatpush1.msra.mxu0 0.0
    %3229 = vmatprep.subr.mxu0 0.0
    %3230 = vmatpush1.msra.mxu0 0.0
    %3231 = vmatprep.subr.mxu0 0.0
    %3232 = vmatpush1.msra.mxu0 0.0
    %3233 = vmatprep.subr.mxu0 0.0
    %3234 = vmatpush1.msra.mxu0 0.0
    %3235 = vmatprep.subr.mxu0 0.0
    %3236 = vmatpush1.msra.mxu0 0.0
    %3237 = vmatprep.subr.mxu0 0.0
    %3238 = vmatpush1.msra.mxu0 0.0
    %3239 = vmatprep.subr.mxu0 0.0
    %3240 = vmatpush1.msra.mxu0 0.0
    %3241 = vmatprep.subr.mxu0 0.0
    %3242 = vmatpush1.msra.mxu0 0.0
    %3243 = vmatprep.subr.mxu0 0.0
    %3244 = vmatpush1.msra.mxu0 0.0
    %3245 = vmatprep.subr.mxu0 0.0
    %3246 = vmatpush1.msra.mxu0 0.0
    %3247 = vmatprep.subr.mxu0 0.0
    %3248 = vmatpush1.msra.mxu0 0.0
    %3249 = vmatprep.subr.mxu0 0.0
    %3250 = vmatpush1.msra.mxu0 0.0
    %3251 = vmatprep.subr.mxu0 0.0
    %3252 = vmatpush1.msra.mxu0 0.0
    %3253 = vmatprep.subr.mxu0 0.0
    %3254 = vmatpush1.msra.mxu0 0.0
    %3255 = vmatprep.subr.mxu0 0.0
    %3256 = vmatpush1.msra.mxu0 0.0
    %3257 = vmatprep.subr.mxu0 0.0
    %3258 = vmatpush1.msra.mxu0 0.0
    %3259 = vmatprep.subr.mxu0 0.0
    %3260 = vmatpush1.msra.mxu0 0.0
    %3261 = vmatprep.subr.mxu0 0.0
    %3262 = vmatpush1.msra.mxu0 0.0
    %3263 = vmatprep.mubr.f32.mxu0 0.0
    %3264 = vmatmul.mubr.f32.gmra.mrb[0].mxu0 %v3192
    %v3265 = vpop.f32.mrb[0].mxu0
    %v3266 = vadd.f32 0.0, %v3265
    %v3267 = vpop.f32.mrb[0].mxu0
    %3268 = vmatprep.mubr.f32.mxu0 0.0
    %3269 = vmatmul.mubr.f32.gmra.mrb[0].mxu0 %v3195
    %v3270 = vpop.f32.mrb[0].mxu0
    %v3271 = vadd.f32 0.0, %v3270
    %v3272 = vpop.f32.mrb[0].mxu0
    %3273 = vdwg.mxu0
    %3278 = vrot.lane.b32.xlu0 %v3178, 16
    %v3279 = vpop.permute.xlu0 %3278
    %3280 = vrot.lane.b32.xlu0 %v3183, 16
    %v3281 = vpop.permute.xlu0 %3280
    %3282 = vrot.lane.b32.xlu0 %v3266, 16
    %v3283 = vpop.permute.xlu0 %3282
    %3284 = vrot.lane.b32.xlu0 %v3271, 16
    %v3285 = vpop.permute.xlu0 %3284
    %v3290 = vsel %vm597, %v2776, %v3279
    %v3291 = vsel %vm597, %v2781, %v3281
    %v3292 = vsel %vm597, %v2864, %v3283
    %v3293 = vsel %vm597, %v2869, %v3285
    %v3298 = vcombine.high %v3290, %v3290
    %v3300 = vunpack.c.l.s4 1966171168
    %v3301 = vunpack.c.0.s8 %v3300
    %v3302 = vlaneseq
    %v3303 = vshrl.u32 %v3302, 7
    %v3304 = vsub.s32 %v3301, %v3303
    %v3305 = vrot.slane %v3290, %v3304
    %v3307 = vunpack.c.l.s4 1966171168
    %v3308 = vunpack.c.0.s8 %v3307
    %v3309 = vlaneseq
    %v3310 = vshrl.u32 %v3309, 7
    %v3311 = vsub.s32 %v3308, %v3310
    %v3312 = vrot.slane %v3298, %v3311
    %v3313 = vcombine.high %v3305, %v3305
    %v3314 = vcombine.high %v3312, %v3312
    %v3316 = vunpack.c.l.s4 1966171168
    %v3317 = vunpack.c.0.s8 %v3316
    %v3318 = vlaneseq
    %v3319 = vshrl.u32 %v3318, 7
    %v3320 = vsub.s32 %v3317, %v3319
    %v3321 = vrot.slane %v3305, %v3320
    %v3323 = vunpack.c.l.s4 1966171168
    %v3324 = vunpack.c.0.s8 %v3323
    %v3325 = vlaneseq
    %v3326 = vshrl.u32 %v3325, 7
    %v3327 = vsub.s32 %v3324, %v3326
    %v3328 = vrot.slane %v3312, %v3327
    %v3330 = vunpack.c.l.s4 1966171168
    %v3331 = vunpack.c.0.s8 %v3330
    %v3332 = vlaneseq
    %v3333 = vshrl.u32 %v3332, 7
    %v3334 = vsub.s32 %v3331, %v3333
    %v3335 = vrot.slane %v3313, %v3334
    %v3337 = vunpack.c.l.s4 1966171168
    %v3338 = vunpack.c.0.s8 %v3337
    %v3339 = vlaneseq
    %v3340 = vshrl.u32 %v3339, 7
    %v3341 = vsub.s32 %v3338, %v3340
    %v3342 = vrot.slane %v3314, %v3341
    %v3343 = vcombine.high %v3321, %v3321
    %v3344 = vcombine.high %v3328, %v3328
    %v3345 = vcombine.high %v3335, %v3335
    %v3346 = vcombine.high %v3342, %v3342
    %v3348 = vunpack.c.l.s4 1966171168
    %v3349 = vunpack.c.0.s8 %v3348
    %v3350 = vlaneseq
    %v3351 = vshrl.u32 %v3350, 7
    %v3352 = vsub.s32 %v3349, %v3351
    %v3353 = vrot.slane %v3291, %v3352
    %v3355 = vunpack.c.l.s4 1966171168
    %v3356 = vunpack.c.0.s8 %v3355
    %v3357 = vlaneseq
    %v3358 = vshrl.u32 %v3357, 7
    %v3359 = vsub.s32 %v3356, %v3358
    %v3360 = vrot.slane %v3353, %v3359
    %v3361 = vcombine.high %v3292, %v3292
    %v3363 = vunpack.c.l.s4 1966171168
    %v3364 = vunpack.c.0.s8 %v3363
    %v3365 = vlaneseq
    %v3366 = vshrl.u32 %v3365, 7
    %v3367 = vsub.s32 %v3364, %v3366
    %v3368 = vrot.slane %v3292, %v3367
    %v3370 = vunpack.c.l.s4 1966171168
    %v3371 = vunpack.c.0.s8 %v3370
    %v3372 = vlaneseq
    %v3373 = vshrl.u32 %v3372, 7
    %v3374 = vsub.s32 %v3371, %v3373
    %v3375 = vrot.slane %v3361, %v3374
    %v3376 = vcombine.high %v3368, %v3368
    %v3377 = vcombine.high %v3375, %v3375
    %v3379 = vunpack.c.l.s4 1966171168
    %v3380 = vunpack.c.0.s8 %v3379
    %v3381 = vlaneseq
    %v3382 = vshrl.u32 %v3381, 7
    %v3383 = vsub.s32 %v3380, %v3382
    %v3384 = vrot.slane %v3368, %v3383
    %v3386 = vunpack.c.l.s4 1966171168
    %v3387 = vunpack.c.0.s8 %v3386
    %v3388 = vlaneseq
    %v3389 = vshrl.u32 %v3388, 7
    %v3390 = vsub.s32 %v3387, %v3389
    %v3391 = vrot.slane %v3375, %v3390
    %v3393 = vunpack.c.l.s4 1966171168
    %v3394 = vunpack.c.0.s8 %v3393
    %v3395 = vlaneseq
    %v3396 = vshrl.u32 %v3395, 7
    %v3397 = vsub.s32 %v3394, %v3396
    %v3398 = vrot.slane %v3376, %v3397
    %v3400 = vunpack.c.l.s4 1966171168
    %v3401 = vunpack.c.0.s8 %v3400
    %v3402 = vlaneseq
    %v3403 = vshrl.u32 %v3402, 7
    %v3404 = vsub.s32 %v3401, %v3403
    %v3405 = vrot.slane %v3377, %v3404
    %v3406 = vcombine.high %v3384, %v3384
    %v3407 = vcombine.high %v3391, %v3391
    %v3408 = vcombine.high %v3398, %v3398
    %v3409 = vcombine.high %v3405, %v3405
    %v3411 = vunpack.c.l.s4 1966171168
    %v3412 = vunpack.c.0.s8 %v3411
    %v3413 = vlaneseq
    %v3414 = vshrl.u32 %v3413, 7
    %v3415 = vsub.s32 %v3412, %v3414
    %v3416 = vrot.slane %v3293, %v3415
    %v3418 = vunpack.c.l.s4 1966171168
    %v3419 = vunpack.c.0.s8 %v3418
    %v3420 = vlaneseq
    %v3421 = vshrl.u32 %v3420, 7
    %v3422 = vsub.s32 %v3419, %v3421
    %v3423 = vrot.slane %v3416, %v3422
    %s3424 = scalar_lea.vmem %s5, 32
    %v3425 = vld [vmem:[%s3424] sm:$0xff]
    %v3426 = vld [vmem:[%s3424 + $0x8] sm:$0xff]
    %v3427 = vld [vmem:[%s3424 + $0x10] sm:$0xff]
    %v3428 = vld [vmem:[%s3424 + $0x18] sm:$0xff]
    %s3429 = scalar_lea.vmem %s6, 1
    %v3430 = vld [vmem:[%s3429] sm:$0x1]
    %v3432 = vlaneseq
    %v3433 = vshrl.u32 %v3432, 7
    %v3434 = vsub.s32 0, %v3433
    %v3435 = vrot.slane %v3430, %v3434
    %v3437 = vcombine.low %v3321, %v3335
    %v3438 = vcombine.low %v3343, %v3345
    %v3439 = vcombine.low %v3328, %v3342
    %v3440 = vcombine.low %v3344, %v3346
    %v3442 = vunpack.c.l.s4 1966171168
    %v3443 = vunpack.c.0.s8 %v3442
    %v3444 = vlaneseq
    %v3445 = vshrl.u32 %v3444, 7
    %v3446 = vsub.s32 %v3443, %v3445
    %v3447 = vrot.slane %v3437, %v3446
    %v3449 = vunpack.c.l.s4 1966171168
    %v3450 = vunpack.c.0.s8 %v3449
    %v3451 = vlaneseq
    %v3452 = vshrl.u32 %v3451, 7
    %v3453 = vsub.s32 %v3450, %v3452
    %v3454 = vrot.slane %v3438, %v3453
    %v3456 = vunpack.c.l.s4 1966171168
    %v3457 = vunpack.c.0.s8 %v3456
    %v3458 = vlaneseq
    %v3459 = vshrl.u32 %v3458, 7
    %v3460 = vsub.s32 %v3457, %v3459
    %v3461 = vrot.slane %v3439, %v3460
    %v3463 = vunpack.c.l.s4 1966171168
    %v3464 = vunpack.c.0.s8 %v3463
    %v3465 = vlaneseq
    %v3466 = vshrl.u32 %v3465, 7
    %v3467 = vsub.s32 %v3464, %v3466
    %v3468 = vrot.slane %v3440, %v3467
    %v3469 = vcombine.low %v3447, %v3454
    %v3470 = vcombine.low %v3461, %v3468
    %v3472 = vunpack.c.l.s4 1966171168
    %v3473 = vunpack.c.0.s8 %v3472
    %v3474 = vlaneseq
    %v3475 = vshrl.u32 %v3474, 7
    %v3476 = vsub.s32 %v3473, %v3475
    %v3477 = vrot.slane %v3469, %v3476
    %v3479 = vunpack.c.l.s4 1966171168
    %v3480 = vunpack.c.0.s8 %v3479
    %v3481 = vlaneseq
    %v3482 = vshrl.u32 %v3481, 7
    %v3483 = vsub.s32 %v3480, %v3482
    %v3484 = vrot.slane %v3470, %v3483
    %v3485 = vcombine.low %v3477, %v3484
    %v3486 = vcombine.low %v3360, %v3384
    %v3487 = vcombine.low %v3398, %v3406
    %v3488 = vcombine.low %v3408, %v3391
    %v3489 = vcombine.low %v3405, %v3407
    %v3491 = vunpack.c.l.s4 1966171168
    %v3492 = vunpack.c.0.s8 %v3491
    %v3493 = vlaneseq
    %v3494 = vshrl.u32 %v3493, 7
    %v3495 = vsub.s32 %v3492, %v3494
    %v3496 = vrot.slane %v3486, %v3495
    %v3498 = vunpack.c.l.s4 1966171168
    %v3499 = vunpack.c.0.s8 %v3498
    %v3500 = vlaneseq
    %v3501 = vshrl.u32 %v3500, 7
    %v3502 = vsub.s32 %v3499, %v3501
    %v3503 = vrot.slane %v3487, %v3502
    %v3505 = vunpack.c.l.s4 1966171168
    %v3506 = vunpack.c.0.s8 %v3505
    %v3507 = vlaneseq
    %v3508 = vshrl.u32 %v3507, 7
    %v3509 = vsub.s32 %v3506, %v3508
    %v3510 = vrot.slane %v3488, %v3509
    %v3512 = vunpack.c.l.s4 1966171168
    %v3513 = vunpack.c.0.s8 %v3512
    %v3514 = vlaneseq
    %v3515 = vshrl.u32 %v3514, 7
    %v3516 = vsub.s32 %v3513, %v3515
    %v3517 = vrot.slane %v3489, %v3516
    %v3518 = vcombine.low %v3496, %v3503
    %v3519 = vcombine.low %v3510, %v3517
    %v3521 = vunpack.c.l.s4 1966171168
    %v3522 = vunpack.c.0.s8 %v3521
    %v3523 = vlaneseq
    %v3524 = vshrl.u32 %v3523, 7
    %v3525 = vsub.s32 %v3522, %v3524
    %v3526 = vrot.slane %v3518, %v3525
    %v3528 = vunpack.c.l.s4 1966171168
    %v3529 = vunpack.c.0.s8 %v3528
    %v3530 = vlaneseq
    %v3531 = vshrl.u32 %v3530, 7
    %v3532 = vsub.s32 %v3529, %v3531
    %v3533 = vrot.slane %v3519, %v3532
    %v3534 = vcombine.low %v3526, %v3533
    %v3535 = vcombine.low %v3409, %v3423
    %v3537 = vunpack.c.l.s4 1966171168
    %v3538 = vunpack.c.0.s8 %v3537
    %v3539 = vlaneseq
    %v3540 = vshrl.u32 %v3539, 7
    %v3541 = vsub.s32 %v3538, %v3540
    %v3542 = vrot.slane %v3535, %v3541
    %v3544 = vunpack.c.l.s4 1966171168
    %v3545 = vunpack.c.0.s8 %v3544
    %v3546 = vlaneseq
    %v3547 = vshrl.u32 %v3546, 7
    %v3548 = vsub.s32 %v3545, %v3547
    %v3549 = vrot.slane %v3542, %v3548
    %v3550 = vsel %vm265, %v3485, 0
    %v3552 = vsel %vm265, %v3534, 0
    %v3554 = vsel %vm265, %v3549, 0
    %3556 = vmatprep.subr.mxu0 0.0
    %3557 = vmatpush1.msra.mxu0 %v3425
    %3558 = vmatprep.subr.mxu0 0.0
    %3559 = vmatpush1.msra.mxu0 %v3426
    %3560 = vmatprep.subr.mxu0 0.0
    %3561 = vmatpush1.msra.mxu0 %v3427
    %3562 = vmatprep.subr.mxu0 0.0
    %3563 = vmatpush1.msra.mxu0 %v3428
    %3564 = vmatprep.subr.mxu0 0.0
    %3565 = vmatpush1.msra.mxu0 0.0
    %3566 = vmatprep.subr.mxu0 0.0
    %3567 = vmatpush1.msra.mxu0 0.0
    %3568 = vmatprep.subr.mxu0 0.0
    %3569 = vmatpush1.msra.mxu0 0.0
    %3570 = vmatprep.subr.mxu0 0.0
    %3571 = vmatpush1.msra.mxu0 0.0
    %3572 = vmatprep.subr.mxu0 0.0
    %3573 = vmatpush1.msra.mxu0 0.0
    %3574 = vmatprep.subr.mxu0 0.0
    %3575 = vmatpush1.msra.mxu0 0.0
    %3576 = vmatprep.subr.mxu0 0.0
    %3577 = vmatpush1.msra.mxu0 0.0
    %3578 = vmatprep.subr.mxu0 0.0
    %3579 = vmatpush1.msra.mxu0 0.0
    %3580 = vmatprep.subr.mxu0 0.0
    %3581 = vmatpush1.msra.mxu0 0.0
    %3582 = vmatprep.subr.mxu0 0.0
    %3583 = vmatpush1.msra.mxu0 0.0
    %3584 = vmatprep.subr.mxu0 0.0
    %3585 = vmatpush1.msra.mxu0 0.0
    %3586 = vmatprep.subr.mxu0 0.0
    %3587 = vmatpush1.msra.mxu0 0.0
    %3588 = vmatprep.subr.mxu0 0.0
    %3589 = vmatpush1.msra.mxu0 0.0
    %3590 = vmatprep.subr.mxu0 0.0
    %3591 = vmatpush1.msra.mxu0 0.0
    %3592 = vmatprep.subr.mxu0 0.0
    %3593 = vmatpush1.msra.mxu0 0.0
    %3594 = vmatprep.subr.mxu0 0.0
    %3595 = vmatpush1.msra.mxu0 0.0
    %3596 = vmatprep.subr.mxu0 0.0
    %3597 = vmatpush1.msra.mxu0 0.0
    %3598 = vmatprep.subr.mxu0 0.0
    %3599 = vmatpush1.msra.mxu0 0.0
    %3600 = vmatprep.subr.mxu0 0.0
    %3601 = vmatpush1.msra.mxu0 0.0
    %3602 = vmatprep.subr.mxu0 0.0
    %3603 = vmatpush1.msra.mxu0 0.0
    %3604 = vmatprep.subr.mxu0 0.0
    %3605 = vmatpush1.msra.mxu0 0.0
    %3606 = vmatprep.subr.mxu0 0.0
    %3607 = vmatpush1.msra.mxu0 0.0
    %3608 = vmatprep.subr.mxu0 0.0
    %3609 = vmatpush1.msra.mxu0 0.0
    %3610 = vmatprep.subr.mxu0 0.0
    %3611 = vmatpush1.msra.mxu0 0.0
    %3612 = vmatprep.subr.mxu0 0.0
    %3613 = vmatpush1.msra.mxu0 0.0
    %3614 = vmatprep.subr.mxu0 0.0
    %3615 = vmatpush1.msra.mxu0 0.0
    %3616 = vmatprep.subr.mxu0 0.0
    %3617 = vmatpush1.msra.mxu0 0.0
    %3618 = vmatprep.subr.mxu0 0.0
    %3619 = vmatpush1.msra.mxu0 0.0
    %3620 = vmatprep.mubr.f32.mxu0 0.0
    %3621 = vmatmul.mubr.f32.gmra.mrb[0].mxu0 %v3550
    %v3622 = vpop.f32.mrb[0].mxu0
    %v3623 = vadd.f32 %v3435, %v3622
    %v3624 = vpop.f32.mrb[0].mxu0
    %3625 = vmatprep.mubr.f32.mxu0 0.0
    %3626 = vmatmul.mubr.f32.gmra.mrb[0].mxu0 %v3552
    %v3627 = vpop.f32.mrb[0].mxu0
    %v3628 = vadd.f32 %v3435, %v3627
    %v3629 = vpop.f32.mrb[0].mxu0
    %3630 = vmatprep.mubr.f32.mxu0 0.0
    %3631 = vmatmul.mubr.f32.gmra.mrb[0].mxu0 %v3554
    %v3632 = vpop.f32.mrb[0].mxu0
    %v3633 = vadd.f32 %v3435, %v3632
    %v3634 = vpop.f32.mrb[0].mxu0
    %3635 = vdwg.mxu0
    %v3636 = vadd.f32 %v3623, %v2085
    %v3637 = vadd.f32 %v3628, %v2086
    %v3638 = vadd.f32 %v3633, %v2087
    %v3639 = vsel %vm265, %v3636, 0.0
    %3640 = vadd.xlane.f32.xlu0 %v3639
    %v3641 = vpop.xlane.xlu0 %3640
    %v3642 = vsel %vm265, %v3637, 0.0
    %3643 = vadd.xlane.f32.xlu0 %v3642
    %v3644 = vpop.xlane.xlu0 %3643
    %v3645 = vsel %vm272, %v3638, 0.0
    %3646 = vadd.xlane.f32.xlu0 %v3645
    %v3647 = vpop.xlane.xlu0 %3646
    %v3648 = vmul.f32 %v3641, %v276
    %v3649 = vmul.f32 %v3644, %v276
    %v3650 = vmul.f32 %v3647, %v276
    %v3651 = vsub.f32 %v3636, %v3648
    %v3652 = vsub.f32 %v3637, %v3649
    %v3653 = vsub.f32 %v3638, %v3650
    %v3654 = vmul.f32 %v3651, %v3651
    %v3655 = vmul.f32 %v3652, %v3652
    %v3656 = vmul.f32 %v3653, %v3653
    %v3657 = vsel %vm265, %v3654, 0.0
    %3658 = vadd.xlane.f32.xlu0 %v3657
    %v3659 = vpop.xlane.xlu0 %3658
    %v3660 = vsel %vm265, %v3655, 0.0
    %3661 = vadd.xlane.f32.xlu0 %v3660
    %v3662 = vpop.xlane.xlu0 %3661
    %v3663 = vsel %vm272, %v3656, 0.0
    %3664 = vadd.xlane.f32.xlu0 %v3663
    %v3665 = vpop.xlane.xlu0 %3664
    %v3666 = vmul.f32 %v3659, %v276
    %v3667 = vmul.f32 %v3662, %v276
    %v3668 = vmul.f32 %v3665, %v276
    %v3669 = vadd.f32 %v3666, 1e-05
    %v3670 = vadd.f32 %v3667, 1e-05
    %v3671 = vadd.f32 %v3668, 1e-05
    %v3672 = vrsqrt.pop %v3669
    %v3673 = vrsqrt.pop %v3670
    %v3674 = vrsqrt.pop %v3671
    %v3675 = vmul.f32 %v3651, %v3672
    %v3676 = vmul.f32 %v3652, %v3673
    %v3677 = vmul.f32 %v3653, %v3674
    %s3678 = scalar_lea.vmem %s7, 32
    %v3679 = vld [vmem:[%s3678] sm:$0xff]
    %v3680 = vld [vmem:[%s3678 + $0x8] sm:$0xff]
    %v3681 = vld [vmem:[%s3678 + $0x10] sm:$0xff]
    %v3682 = vld [vmem:[%s3678 + $0x18] sm:$0xff]
    %s3683 = scalar_lea.vmem %s8, 1
    %v3684 = vld [vmem:[%s3683] sm:$0x1]
    %v3686 = vlaneseq
    %v3687 = vshrl.u32 %v3686, 7
    %v3688 = vsub.s32 0, %v3687
    %v3689 = vrot.slane %v3684, %v3688
    %v3692 = vsel %vm265, %v3675, 0
    %v3695 = vsel %vm265, %v3676, 0
    %v3698 = vsel %vm265, %v3677, 0
    %3700 = vmatprep.subr.mxu0 0.0
    %3701 = vmatpush1.msra.mxu0 %v3679
    %3702 = vmatprep.subr.mxu0 0.0
    %3703 = vmatpush1.msra.mxu0 %v3680
    %3704 = vmatprep.subr.mxu0 0.0
    %3705 = vmatpush1.msra.mxu0 %v3681
    %3706 = vmatprep.subr.mxu0 0.0
    %3707 = vmatpush1.msra.mxu0 %v3682
    %3708 = vmatprep.subr.mxu0 0.0
    %3709 = vmatpush1.msra.mxu0 0.0
    %3710 = vmatprep.subr.mxu0 0.0
    %3711 = vmatpush1.msra.mxu0 0.0
    %3712 = vmatprep.subr.mxu0 0.0
    %3713 = vmatpush1.msra.mxu0 0.0
    %3714 = vmatprep.subr.mxu0 0.0
    %3715 = vmatpush1.msra.mxu0 0.0
    %3716 = vmatprep.subr.mxu0 0.0
    %3717 = vmatpush1.msra.mxu0 0.0
    %3718 = vmatprep.subr.mxu0 0.0
    %3719 = vmatpush1.msra.mxu0 0.0
    %3720 = vmatprep.subr.mxu0 0.0
    %3721 = vmatpush1.msra.mxu0 0.0
    %3722 = vmatprep.subr.mxu0 0.0
    %3723 = vmatpush1.msra.mxu0 0.0
    %3724 = vmatprep.subr.mxu0 0.0
    %3725 = vmatpush1.msra.mxu0 0.0
    %3726 = vmatprep.subr.mxu0 0.0
    %3727 = vmatpush1.msra.mxu0 0.0
    %3728 = vmatprep.subr.mxu0 0.0
    %3729 = vmatpush1.msra.mxu0 0.0
    %3730 = vmatprep.subr.mxu0 0.0
    %3731 = vmatpush1.msra.mxu0 0.0
    %3732 = vmatprep.subr.mxu0 0.0
    %3733 = vmatpush1.msra.mxu0 0.0
    %3734 = vmatprep.subr.mxu0 0.0
    %3735 = vmatpush1.msra.mxu0 0.0
    %3736 = vmatprep.subr.mxu0 0.0
    %3737 = vmatpush1.msra.mxu0 0.0
    %3738 = vmatprep.subr.mxu0 0.0
    %3739 = vmatpush1.msra.mxu0 0.0
    %3740 = vmatprep.subr.mxu0 0.0
    %3741 = vmatpush1.msra.mxu0 0.0
    %3742 = vmatprep.subr.mxu0 0.0
    %3743 = vmatpush1.msra.mxu0 0.0
    %3744 = vmatprep.subr.mxu0 0.0
    %3745 = vmatpush1.msra.mxu0 0.0
    %3746 = vmatprep.subr.mxu0 0.0
    %3747 = vmatpush1.msra.mxu0 0.0
    %3748 = vmatprep.subr.mxu0 0.0
    %3749 = vmatpush1.msra.mxu0 0.0
    %3750 = vmatprep.subr.mxu0 0.0
    %3751 = vmatpush1.msra.mxu0 0.0
    %3752 = vmatprep.subr.mxu0 0.0
    %3753 = vmatpush1.msra.mxu0 0.0
    %3754 = vmatprep.subr.mxu0 0.0
    %3755 = vmatpush1.msra.mxu0 0.0
    %3756 = vmatprep.subr.mxu0 0.0
    %3757 = vmatpush1.msra.mxu0 0.0
    %3758 = vmatprep.subr.mxu0 0.0
    %3759 = vmatpush1.msra.mxu0 0.0
    %3760 = vmatprep.subr.mxu0 0.0
    %3761 = vmatpush1.msra.mxu0 0.0
    %3762 = vmatprep.subr.mxu0 0.0
    %3763 = vmatpush1.msra.mxu0 0.0
    %3764 = vmatprep.mubr.f32.mxu0 0.0
    %3765 = vmatmul.mubr.f32.gmra.mrb[0].mxu0 %v3692
    %v3766 = vpop.f32.mrb[0].mxu0
    %v3767 = vadd.f32 %v3689, %v3766
    %v3768 = vpop.f32.mrb[0].mxu0
    %3769 = vmatprep.mubr.f32.mxu0 0.0
    %3770 = vmatmul.mubr.f32.gmra.mrb[0].mxu0 %v3695
    %v3771 = vpop.f32.mrb[0].mxu0
    %v3772 = vadd.f32 %v3689, %v3771
    %v3773 = vpop.f32.mrb[0].mxu0
    %3774 = vmatprep.mubr.f32.mxu0 0.0
    %3775 = vmatmul.mubr.f32.gmra.mrb[0].mxu0 %v3698
    %v3776 = vpop.f32.mrb[0].mxu0
    %v3777 = vadd.f32 %v3689, %v3776
    %v3778 = vpop.f32.mrb[0].mxu0
    %3779 = vdwg.mxu0
    %v3780 = vmul.f32 %v3767, 0.5
    %v3781 = vmul.f32 %v3772, 0.5
    %v3782 = vmul.f32 %v3777, 0.5
    %v3783 = vmul.f32 %v3767, 0.70710677
    %v3784 = vmul.f32 %v3772, 0.70710677
    %v3785 = vmul.f32 %v3777, 0.70710677
    %v3786 = verf.f32.pop %v3783
    %v3787 = verf.f32.pop %v3784
    %v3788 = verf.f32.pop %v3785
    %v3789 = vadd.f32 %v3786, 1.0
    %v3790 = vadd.f32 %v3787, 1.0
    %v3791 = vadd.f32 %v3788, 1.0
    %v3792 = vmul.f32 %v3780, %v3789
    %v3793 = vmul.f32 %v3781, %v3790
    %v3794 = vmul.f32 %v3782, %v3791
    %v3795 = vmax.f32 %v3767, 0.0
    %v3796 = vmax.f32 %v3772, 0.0
    %v3797 = vmax.f32 %v3777, 0.0
    %v3798 = vsel %vm1960, %v3792, %v3795
    %v3799 = vsel %vm1960, %v3793, %v3796
    %v3800 = vsel %vm1960, %v3794, %v3797
    %s3801 = scalar_lea.vmem %s9, 128
    %v3802 = vld [vmem:[%s3801] sm:$0xff]
    %v3803 = vld [vmem:[%s3801 + $0x8] sm:$0xff]
    %v3804 = vld [vmem:[%s3801 + $0x10] sm:$0xff]
    %v3805 = vld [vmem:[%s3801 + $0x18] sm:$0xff]
    %v3806 = vld [vmem:[%s3801 + $0x20] sm:$0xff]
    %v3807 = vld [vmem:[%s3801 + $0x28] sm:$0xff]
    %v3808 = vld [vmem:[%s3801 + $0x30] sm:$0xff]
    %v3809 = vld [vmem:[%s3801 + $0x38] sm:$0xff]
    %v3810 = vld [vmem:[%s3801 + $0x40] sm:$0xff]
    %v3811 = vld [vmem:[%s3801 + $0x48] sm:$0xff]
    %v3812 = vld [vmem:[%s3801 + $0x50] sm:$0xff]
    %v3813 = vld [vmem:[%s3801 + $0x58] sm:$0xff]
    %v3814 = vld [vmem:[%s3801 + $0x60] sm:$0xff]
    %v3815 = vld [vmem:[%s3801 + $0x68] sm:$0xff]
    %v3816 = vld [vmem:[%s3801 + $0x70] sm:$0xff]
    %v3817 = vld [vmem:[%s3801 + $0x78] sm:$0xff]
    %s3818 = scalar_lea.vmem %s10, 1
    %v3819 = vld [vmem:[%s3818] sm:$0x1]
    %v3821 = vlaneseq
    %v3822 = vshrl.u32 %v3821, 7
    %v3823 = vsub.s32 0, %v3822
    %v3824 = vrot.slane %v3819, %v3823
    %3826 = vmatprep.subr.mxu0 0.0
    %3827 = vmatpush1.msra.mxu0 %v3802
    %3828 = vmatprep.subr.mxu0 0.0
    %3829 = vmatpush1.msra.mxu0 %v3803
    %3830 = vmatprep.subr.mxu0 0.0
    %3831 = vmatpush1.msra.mxu0 %v3804
    %3832 = vmatprep.subr.mxu0 0.0
    %3833 = vmatpush1.msra.mxu0 %v3805
    %3834 = vmatprep.subr.mxu0 0.0
    %3835 = vmatpush1.msra.mxu0 %v3806
    %3836 = vmatprep.subr.mxu0 0.0
    %3837 = vmatpush1.msra.mxu0 %v3807
    %3838 = vmatprep.subr.mxu0 0.0
    %3839 = vmatpush1.msra.mxu0 %v3808
    %3840 = vmatprep.subr.mxu0 0.0
    %3841 = vmatpush1.msra.mxu0 %v3809
    %3842 = vmatprep.subr.mxu0 0.0
    %3843 = vmatpush1.msra.mxu0 %v3810
    %3844 = vmatprep.subr.mxu0 0.0
    %3845 = vmatpush1.msra.mxu0 %v3811
    %3846 = vmatprep.subr.mxu0 0.0
    %3847 = vmatpush1.msra.mxu0 %v3812
    %3848 = vmatprep.subr.mxu0 0.0
    %3849 = vmatpush1.msra.mxu0 %v3813
    %3850 = vmatprep.subr.mxu0 0.0
    %3851 = vmatpush1.msra.mxu0 %v3814
    %3852 = vmatprep.subr.mxu0 0.0
    %3853 = vmatpush1.msra.mxu0 %v3815
    %3854 = vmatprep.subr.mxu0 0.0
    %3855 = vmatpush1.msra.mxu0 %v3816
    %3856 = vmatprep.subr.mxu0 0.0
    %3857 = vmatpush1.msra.mxu0 %v3817
    %3858 = vmatprep.subr.mxu0 0.0
    %3859 = vmatpush1.msra.mxu0 0.0
    %3860 = vmatprep.subr.mxu0 0.0
    %3861 = vmatpush1.msra.mxu0 0.0
    %3862 = vmatprep.subr.mxu0 0.0
    %3863 = vmatpush1.msra.mxu0 0.0
    %3864 = vmatprep.subr.mxu0 0.0
    %3865 = vmatpush1.msra.mxu0 0.0
    %3866 = vmatprep.subr.mxu0 0.0
    %3867 = vmatpush1.msra.mxu0 0.0
    %3868 = vmatprep.subr.mxu0 0.0
    %3869 = vmatpush1.msra.mxu0 0.0
    %3870 = vmatprep.subr.mxu0 0.0
    %3871 = vmatpush1.msra.mxu0 0.0
    %3872 = vmatprep.subr.mxu0 0.0
    %3873 = vmatpush1.msra.mxu0 0.0
    %3874 = vmatprep.subr.mxu0 0.0
    %3875 = vmatpush1.msra.mxu0 0.0
    %3876 = vmatprep.subr.mxu0 0.0
    %3877 = vmatpush1.msra.mxu0 0.0
    %3878 = vmatprep.subr.mxu0 0.0
    %3879 = vmatpush1.msra.mxu0 0.0
    %3880 = vmatprep.subr.mxu0 0.0
    %3881 = vmatpush1.msra.mxu0 0.0
    %3882 = vmatprep.subr.mxu0 0.0
    %3883 = vmatpush1.msra.mxu0 0.0
    %3884 = vmatprep.subr.mxu0 0.0
    %3885 = vmatpush1.msra.mxu0 0.0
    %3886 = vmatprep.subr.mxu0 0.0
    %3887 = vmatpush1.msra.mxu0 0.0
    %3888 = vmatprep.subr.mxu0 0.0
    %3889 = vmatpush1.msra.mxu0 0.0
    %3890 = vmatprep.mubr.f32.mxu0 0.0
    %3891 = vmatmul.mubr.f32.gmra.mrb[0].mxu0 %v3798
    %v3892 = vpop.f32.mrb[0].mxu0
    %v3893 = vadd.f32 %v3824, %v3892
    %v3894 = vpop.f32.mrb[0].mxu0
    %3895 = vmatprep.mubr.f32.mxu0 0.0
    %3896 = vmatmul.mubr.f32.gmra.mrb[0].mxu0 %v3799
    %v3897 = vpop.f32.mrb[0].mxu0
    %v3898 = vadd.f32 %v3824, %v3897
    %v3899 = vpop.f32.mrb[0].mxu0
    %3900 = vmatprep.mubr.f32.mxu0 0.0
    %3901 = vmatmul.mubr.f32.gmra.mrb[0].mxu0 %v3800
    %v3902 = vpop.f32.mrb[0].mxu0
    %v3903 = vpop.f32.mrb[0].mxu0
    %3904 = vdwg.mxu0
    %v3905 = vadd.f32 %v3893, %v3636
    %v3906 = vadd.f32 %v3898, %v3637
    %v3910 = vunpack.c.l.s4 1966171168
    %v3911 = vunpack.c.0.s8 %v3910
    %v3912 = vlaneseq
    %v3913 = vshrl.u32 %v3912, 7
    %v3914 = vsub.s32 %v3911, %v3913
    %v3915 = vrot.slane %v3905, %v3914
    %v3917 = vunpack.c.l.s4 1966171168
    %v3918 = vunpack.c.0.s8 %v3917
    %v3919 = vlaneseq
    %v3920 = vshrl.u32 %v3919, 7
    %v3921 = vsub.s32 %v3918, %v3920
    %v3922 = vrot.slane %v3915, %v3921
    %v3924 = vunpack.c.l.s4 1966171168
    %v3925 = vunpack.c.0.s8 %v3924
    %v3926 = vlaneseq
    %v3927 = vshrl.u32 %v3926, 7
    %v3928 = vsub.s32 %v3925, %v3927
    %v3929 = vrot.slane %v3906, %v3928
    %v3930 = vcombine.high %v3929, %v3929
    %v3932 = vunpack.c.l.s4 1966171168
    %v3933 = vunpack.c.0.s8 %v3932
    %v3934 = vlaneseq
    %v3935 = vshrl.u32 %v3934, 7
    %v3936 = vsub.s32 %v3933, %v3935
    %v3937 = vrot.slane %v3930, %v3936
    %v3940 = vcombine.low %v3922, %v3937
    %v3942 = vunpack.c.l.s4 1966171168
    %v3943 = vunpack.c.0.s8 %v3942
    %v3944 = vlaneseq
    %v3945 = vshrl.u32 %v3944, 7
    %v3946 = vsub.s32 %v3943, %v3945
    %v3947 = vrot.slane %v3940, %v3946
    %v3949 = vunpack.c.l.s4 1966171168
    %v3950 = vunpack.c.0.s8 %v3949
    %v3951 = vlaneseq
    %v3952 = vshrl.u32 %v3951, 7
    %v3953 = vsub.s32 %v3950, %v3952
    %v3954 = vrot.slane %v3947, %v3953
    %v3956 = vsel %vm272, %v3954, 0.0
    %3957 = vadd.xlane.f32.xlu0 %v3956
    %v3958 = vpop.xlane.xlu0 %3957
    %v3959 = vmul.f32 %v3958, %v276
    %v3961 = vlaneseq
    %v3962 = vshrl.u32 %v3961, 7
    %v3963 = vsub.s32 0, %v3962
    %v3964 = vrot.slane %v3959, %v3963
    %v3965 = vlaneseq
    %v3966 = vshrl.u32 %v3965, 7
    %v3967 = vsub.s32 1, %v3966
    %v3968 = vrot.slane %v3959, %v3967
    %v3971 = vsub.f32 %v3922, %v3964
    %v3972 = vsub.f32 %v3937, %v3968
    %v3973 = vmul.f32 %v3971, %v3971
    %v3974 = vmul.f32 %v3972, %v3972
    %v3977 = vcombine.low %v3973, %v3974
    %v3979 = vunpack.c.l.s4 1966171168
    %v3980 = vunpack.c.0.s8 %v3979
    %v3981 = vlaneseq
    %v3982 = vshrl.u32 %v3981, 7
    %v3983 = vsub.s32 %v3980, %v3982
    %v3984 = vrot.slane %v3977, %v3983
    %v3986 = vunpack.c.l.s4 1966171168
    %v3987 = vunpack.c.0.s8 %v3986
    %v3988 = vlaneseq
    %v3989 = vshrl.u32 %v3988, 7
    %v3990 = vsub.s32 %v3987, %v3989
    %v3991 = vrot.slane %v3984, %v3990
    %v3993 = vsel %vm272, %v3991, 0.0
    %3994 = vadd.xlane.f32.xlu0 %v3993
    %v3995 = vpop.xlane.xlu0 %3994
    %v3996 = vmul.f32 %v3995, %v276
    %v3997 = vadd.f32 %v3996, 1e-05
    %v3998 = vrsqrt.pop %v3997
    %v4000 = vlaneseq
    %v4001 = vshrl.u32 %v4000, 7
    %v4002 = vsub.s32 0, %v4001
    %v4003 = vrot.slane %v3998, %v4002
    %v4004 = vlaneseq
    %v4005 = vshrl.u32 %v4004, 7
    %v4006 = vsub.s32 1, %v4005
    %v4007 = vrot.slane %v3998, %v4006
    %v4010 = vmul.f32 %v3971, %v4003
    %v4011 = vmul.f32 %v3972, %v4007
    %v4012 = vld [vmem:[%s11] sm:$0xff]
    %v4013 = vld [vmem:[%s11 + $0x8] sm:$0xff]
    %v4014 = vld [vmem:[%s11 + $0x10] sm:$0xff]
    %v4015 = vld [vmem:[%s11 + $0x18] sm:$0xff]
    %v4016 = vld [vmem:[%s12] sm:$0x1]
    %v4018 = vlaneseq
    %v4019 = vshrl.u32 %v4018, 7
    %v4020 = vsub.s32 0, %v4019
    %v4021 = vrot.slane %v4016, %v4020
    %v4025 = vcombine.low %v4010, %v4011
    %v4027 = vunpack.c.l.s4 1966171168
    %v4028 = vunpack.c.0.s8 %v4027
    %v4029 = vlaneseq
    %v4030 = vshrl.u32 %v4029, 7
    %v4031 = vsub.s32 %v4028, %v4030
    %v4032 = vrot.slane %v4025, %v4031
    %v4034 = vunpack.c.l.s4 1966171168
    %v4035 = vunpack.c.0.s8 %v4034
    %v4036 = vlaneseq
    %v4037 = vshrl.u32 %v4036, 7
    %v4038 = vsub.s32 %v4035, %v4037
    %v4039 = vrot.slane %v4032, %v4038
    %v4040 = vsel %vm265, %v4039, 0
    %4042 = vmatprep.subr.mxu0 0.0
    %4043 = vmatpush1.msra.mxu0 %v4012
    %4044 = vmatprep.subr.mxu0 0.0
    %4045 = vmatpush1.msra.mxu0 %v4013
    %4046 = vmatprep.subr.mxu0 0.0
    %4047 = vmatpush1.msra.mxu0 %v4014
    %4048 = vmatprep.subr.mxu0 0.0
    %4049 = vmatpush1.msra.mxu0 %v4015
    %4050 = vmatprep.subr.mxu0 0.0
    %4051 = vmatpush1.msra.mxu0 0.0
    %4052 = vmatprep.subr.mxu0 0.0
    %4053 = vmatpush1.msra.mxu0 0.0
    %4054 = vmatprep.subr.mxu0 0.0
    %4055 = vmatpush1.msra.mxu0 0.0
    %4056 = vmatprep.subr.mxu0 0.0
    %4057 = vmatpush1.msra.mxu0 0.0
    %4058 = vmatprep.subr.mxu0 0.0
    %4059 = vmatpush1.msra.mxu0 0.0
    %4060 = vmatprep.subr.mxu0 0.0
    %4061 = vmatpush1.msra.mxu0 0.0
    %4062 = vmatprep.subr.mxu0 0.0
    %4063 = vmatpush1.msra.mxu0 0.0
    %4064 = vmatprep.subr.mxu0 0.0
    %4065 = vmatpush1.msra.mxu0 0.0
    %4066 = vmatprep.subr.mxu0 0.0
    %4067 = vmatpush1.msra.mxu0 0.0
    %4068 = vmatprep.subr.mxu0 0.0
    %4069 = vmatpush1.msra.mxu0 0.0
    %4070 = vmatprep.subr.mxu0 0.0
    %4071 = vmatpush1.msra.mxu0 0.0
    %4072 = vmatprep.subr.mxu0 0.0
    %4073 = vmatpush1.msra.mxu0 0.0
    %4074 = vmatprep.subr.mxu0 0.0
    %4075 = vmatpush1.msra.mxu0 0.0
    %4076 = vmatprep.subr.mxu0 0.0
    %4077 = vmatpush1.msra.mxu0 0.0
    %4078 = vmatprep.subr.mxu0 0.0
    %4079 = vmatpush1.msra.mxu0 0.0
    %4080 = vmatprep.subr.mxu0 0.0
    %4081 = vmatpush1.msra.mxu0 0.0
    %4082 = vmatprep.subr.mxu0 0.0
    %4083 = vmatpush1.msra.mxu0 0.0
    %4084 = vmatprep.subr.mxu0 0.0
    %4085 = vmatpush1.msra.mxu0 0.0
    %4086 = vmatprep.subr.mxu0 0.0
    %4087 = vmatpush1.msra.mxu0 0.0
    %4088 = vmatprep.subr.mxu0 0.0
    %4089 = vmatpush1.msra.mxu0 0.0
    %4090 = vmatprep.subr.mxu0 0.0
    %4091 = vmatpush1.msra.mxu0 0.0
    %4092 = vmatprep.subr.mxu0 0.0
    %4093 = vmatpush1.msra.mxu0 0.0
    %4094 = vmatprep.subr.mxu0 0.0
    %4095 = vmatpush1.msra.mxu0 0.0
    %4096 = vmatprep.subr.mxu0 0.0
    %4097 = vmatpush1.msra.mxu0 0.0
    %4098 = vmatprep.subr.mxu0 0.0
    %4099 = vmatpush1.msra.mxu0 0.0
    %4100 = vmatprep.subr.mxu0 0.0
    %4101 = vmatpush1.msra.mxu0 0.0
    %4102 = vmatprep.subr.mxu0 0.0
    %4103 = vmatpush1.msra.mxu0 0.0
    %4104 = vmatprep.subr.mxu0 0.0
    %4105 = vmatpush1.msra.mxu0 0.0
    %4106 = vmatprep.mubr.f32.mxu0 0.0
    %4107 = vmatmul.mubr.f32.gmra.mrb[0].mxu0 %v4040
    %v4108 = vpop.f32.mrb[0].mxu0
    %v4109 = vadd.f32 %v4021, %v4108
    %v4110 = vpop.f32.mrb[0].mxu0
    %4111 = vdwg.mxu0
    %vm4112 = vcmask 74752
    %4113 = vst.msk [vmem:[#allocation2] sm:$0x3] %vm4112, %v4109
    // Predicated region
    $region54: #{adaptformer_forward.1} parent=1 // pred_check
      _
    $region55: #{adaptformer_forward.1} parent=1 // pred_check_branch
      %4115 = sbr.rel (0) target = $region57
    $region56: #{adaptformer_forward.1} parent=1 // pred_region
      %s4117 = ssub.s32 32, 32
      %4118 = vsyncadd [#allocation3], %s4117
      %s4120 = sshll.u32 [#allocation2], 4
      %s4121 = int_to_ptr.vmem [resolvable:$true] %s4120
      %4123 = dma.vmem_to_hbm [thread:$0]  %s4121, 32, %s13, [#allocation3]
    $region57: #{adaptformer_forward.1} parent=1 // pred_fallthru
      _
    // Predicated region
    $region58: #{adaptformer_forward.1} parent=1 // pred_check
      _
    $region59: #{adaptformer_forward.1} parent=1 // pred_check_branch
      %4125 = sbr.rel (0) target = $region61
    $region60: #{adaptformer_forward.1} parent=1 // pred_region
      %4126 = dma.done [#allocation3], 32
    $region61: #{adaptformer_forward.1} parent=1 // pred_fallthru
      _
    %4127 = vsyncpa [#allocation3], 1

</llo_original>
